<compile_context>
chip_gen: v5e
topology: v5e:2x2
jax: 0.10.0
libtpu: 0.0.40
codegen_flags: <defaults>
</compile_context>

<pallas_src>
import functools
import math

import jax
import jax.numpy as jnp
import numpy as np
from jax.experimental import pallas as pl
from jax.experimental.pallas import tpu as pltpu


def _round_up(n, m):
  return ((n + m - 1) // m) * m


def _reorder_gate_cols(w, h):
  """Reorder gate columns from PyTorch order (i, f, g, o) to (i, f, o, g)."""
  return jnp.concatenate(
      [w[..., :2 * h], w[..., 3 * h:4 * h], w[..., 2 * h:3 * h]], axis=-1)


# ---------------------------------------------------------------------------
# Host-side weight packing: one (rows, 128k) f32 buffer, 8-row aligned blocks.
# ---------------------------------------------------------------------------
def _pack_layout(*, input_dim, sa_hidden, ta_hidden, seq_length, output_dim):
  D, HS, HT, T, O = input_dim, sa_hidden, ta_hidden, seq_length, output_dim
  blocks = [
      ("sa_Wa", D, D),
      ("sa_ba", 1, D),
      ("sa_Ua", 2 * HS, D),
      ("sa_Va", D, D),
      ("sa_gate_W", D + HS, 4 * HS),   # vstack(W, U), cols reordered (i,f,o,g)
      ("sa_b", 1, 4 * HS),             # cols (i,f,o,g)
      ("ta_Wa", HS, T),
      ("ta_ba", 1, T),
      ("ta_Va", T, T),
      ("ta_W", HS, 4 * HT),            # (i,f,o,g) - used in the hoisted matmul
      ("ta_U", HT, 4 * HT),            # (i,f,o,g) - recurrent matmul
      ("ta_Wy", O, 4 * HT),            # (i,f,o,g)
      ("ta_b", 1, 4 * HT),             # (i,f,o,g)
      ("fc_W", O, HT),                 # PyTorch nn.Linear layout
      ("fc_b", 1, O),
  ]
  lane = _round_up(max(c for _, _, c in blocks), 128)
  layout = {}
  row = 0
  for name, nr, nc in blocks:
    layout[name] = (row, nr, nc)
    row += _round_up(nr, 8)            # 8-row alignment -> aligned slices
  return layout, _round_up(row, 8), lane


def _pack_params(params, layout, total_rows, lane, *, sa_hidden, ta_hidden):
  HS, HT = sa_hidden, ta_hidden
  mats = {
      "sa_Wa": params["sa_Wa"],
      "sa_ba": params["sa_ba"],
      "sa_Ua": params["sa_Ua"],
      "sa_Va": params["sa_Va"],
      "sa_gate_W": _reorder_gate_cols(
          jnp.concatenate([params["sa_W"], params["sa_U"]], axis=0), HS),
      "sa_b": _reorder_gate_cols(params["sa_b"], HS),
      "ta_Wa": params["ta_Wa"],
      "ta_ba": params["ta_ba"],
      "ta_Va": params["ta_Va"],
      "ta_W": _reorder_gate_cols(params["ta_W"], HT),
      "ta_U": _reorder_gate_cols(params["ta_U"], HT),
      "ta_Wy": _reorder_gate_cols(params["ta_Wy"], HT),
      "ta_b": _reorder_gate_cols(params["ta_b"], HT),
      "fc_W": params["fc_W"],
      "fc_b": params["fc_b"],
  }
  buf = jnp.zeros((total_rows, lane), jnp.float32)
  for name, (r0, nr, nc) in layout.items():
    m = mats[name].astype(jnp.float32)
    assert m.shape == (nr, nc), (name, m.shape, (nr, nc))
    buf = buf.at[r0:r0 + nr, 0:nc].set(m)
  return buf


# ---------------------------------------------------------------------------
# Pallas kernel (one batch block per grid step; time loops fully unrolled)
# ---------------------------------------------------------------------------
def _sta_lstm_kernel(
    x_ref, y0_ref, wp_ref,                 # inputs  (x is time-major (T,bb,D))
    y_pred_ref, alpha_ref, beta_ref,       # outputs (alpha/beta lane-dense slabs)
    *, seq_len, input_dim, sa_hidden, ta_hidden, output_dim, layout):
  f32 = jnp.float32
  T, D, HS, HT, O = seq_len, input_dim, sa_hidden, ta_hidden, output_dim
  B = x_ref.shape[1]

  def w(name):
    r0, nr, nc = layout[name]
    return wp_ref[r0:r0 + nr, 0:nc]

  def dot(a, b):
    return jnp.dot(a, b, preferred_element_type=f32)

  def softmax_rows(a):                     # softmax over dim=1
    a = a - jnp.max(a, axis=1, keepdims=True)
    e = jnp.exp(a)
    return e / jnp.sum(e, axis=1, keepdims=True)

  # -------------------- Phase 1: SpatialLSTM --------------------
  sa_Wa = w("sa_Wa")           # (D, D)
  sa_ba = w("sa_ba")           # (1, D)
  sa_Ua = w("sa_Ua")           # (2*HS, D)
  sa_Va = w("sa_Va")           # (D, D)
  sa_gate_W = w("sa_gate_W")   # (D + HS, 4*HS), cols (i,f,o,g)
  sa_b = w("sa_b")             # (1, 4*HS),      cols (i,f,o,g)

  # Hoist the non-recurrent attention matmul: x_t @ Wa (+ba) for all t at once.
  x_all = jnp.concatenate([x_ref[t] for t in range(T)], axis=0)   # (T*B, D)
  xWa_all = dot(x_all, sa_Wa) + sa_ba                             # (T*B, D)

  h_t = jnp.zeros((B, HS), f32)
  c_t = jnp.zeros((B, HS), f32)
  h_list, alpha_list = [], []
  # NOTE: seq_len is small & static so both recurrences are fully unrolled;
  # for large T switch to lax.fori_loop + a VMEM hidden-sequence scratch.
  for t in range(T):
    x_t = x_ref[t]                                        # (B, D) natural slab
    pre = jnp.tanh(xWa_all[t * B:(t + 1) * B, :]
                   + dot(jnp.concatenate([h_t, c_t], axis=1), sa_Ua))
    alpha_t = softmax_rows(dot(pre, sa_Va))
    alpha_list.append(alpha_t)
    # fused-K recurrent gate matmul: [alpha*x | h] @ vstack(W, U)
    gates = dot(jnp.concatenate([alpha_t * x_t, h_t], axis=1), sa_gate_W) + sa_b
    sg = jax.nn.sigmoid(gates[:, :3 * HS])                # (i, f, o) contiguous
    g_t = jnp.tanh(gates[:, 3 * HS:])                     # g
    i_t = sg[:, 0:HS]
    f_t = sg[:, HS:2 * HS]
    o_t = sg[:, 2 * HS:3 * HS]
    c_t = f_t * c_t + i_t * g_t
    h_t = o_t * jnp.tanh(c_t)
    h_list.append(h_t)

  # Single lane-dense store of all alphas: (B, T*D) (+ zero pad to slab width).
  a_cat = jnp.concatenate(alpha_list, axis=1)
  aw = alpha_ref.shape[1]
  if aw > T * D:
    a_cat = jnp.concatenate([a_cat, jnp.zeros((B, aw - T * D), f32)], axis=1)
  alpha_ref[...] = a_cat

  # -------------------- Phase 2: TemporalLSTM --------------------
  ta_Wa = w("ta_Wa")           # (HS, T)
  ta_ba = w("ta_ba")           # (1, T)
  ta_Va = w("ta_Va")           # (T, T)
  ta_W = w("ta_W")             # (HS, 4*HT)
  ta_U = w("ta_U")             # (HT, 4*HT)
  ta_Wy = w("ta_Wy")           # (O, 4*HT)
  ta_b = w("ta_b")             # (1, 4*HT)
  fc_W = w("fc_W")             # (O, HT)
  fc_b = w("fc_b")             # (1, O)

  # s_t is never updated in the reference module (stays zero), so temporal
  # attention depends only on the SA hidden sequence: all T betas come from
  # one stacked matmul (the dead `s_t @ Ua` term is dropped).
  h_all = jnp.concatenate(h_list, axis=0)              # (T*B, HS)
  pre2 = jnp.tanh(dot(h_all, ta_Wa) + ta_ba)           # (T*B, T)
  beta_all = softmax_rows(dot(pre2, ta_Va))            # (T*B, T)

  # Consume the betas immediately (short live ranges): per t, slice, fold into
  # the context, and collect for one lane-dense beta store.
  beta_list, ctx_list = [], []
  for t in range(T):
    beta_t = beta_all[t * B:(t + 1) * B, :]            # (B, T)
    beta_list.append(beta_t)
    ctx = beta_t[:, 0:1] * h_list[0]
    for tp in range(1, T):
      ctx = ctx + beta_t[:, tp:tp + 1] * h_list[tp]
    ctx_list.append(ctx)

  b_cat = jnp.concatenate(beta_list, axis=1)           # (B, T*T)
  bw = beta_ref.shape[1]
  if bw > T * T:
    b_cat = jnp.concatenate([b_cat, jnp.zeros((B, bw - T * T), f32)], axis=1)
  beta_ref[...] = b_cat

  # Hoist the non-recurrent gate matmul: ctx_t @ W (+ bias) for all t at once.
  ctx_all = jnp.concatenate(ctx_list, axis=0)          # (T*B, HS)
  gate_ctx_all = dot(ctx_all, ta_W) + ta_b             # (T*B, 4*HT)

  lh = jnp.zeros((B, HT), f32)
  lc = jnp.zeros((B, HT), f32)
  y_prev = y0_ref[...]                                 # (B, O)
  for t in range(T):
    gates = gate_ctx_all[t * B:(t + 1) * B, :] + dot(lh, ta_U)
    if O == 1:
      gates = gates + y_prev * ta_Wy                   # (B,1)*(1,4HT) on the VPU
    else:
      gates = gates + dot(y_prev, ta_Wy)
    sg = jax.nn.sigmoid(gates[:, :3 * HT])             # (i, f, o)
    g_t = jnp.tanh(gates[:, 3 * HT:])                  # g
    i_t = sg[:, 0:HT]
    f_t = sg[:, HT:2 * HT]
    o_t = sg[:, 2 * HT:3 * HT]
    lc = f_t * lc + i_t * g_t
    lh = o_t * jnp.tanh(lc)
    if O == 1:
      # nn.Linear with a single output: VPU multiply + lane reduction instead
      # of a 1-lane-wide MXU matmul (and no per-step fc_W transpose).
      y_prev = jnp.sum(lh * fc_W, axis=1, keepdims=True) + fc_b
    else:
      y_prev = jax.lax.dot_general(lh, fc_W, (((1,), (1,)), ((), ())),
                                   preferred_element_type=f32) + fc_b

  y_pred_ref[...] = y_prev


# ---------------------------------------------------------------------------
# Wrapper
# ---------------------------------------------------------------------------
def sta_lstm_forward(X, params, *, input_dim, sa_hidden, ta_hidden, seq_length,
                     output_dim, batch_block=64):
  B, T, _ = X.shape
  assert T == seq_length
  D, O = input_dim, output_dim

  # Glue (slicing) from STA_LSTM.forward, in plain JAX.
  # NOTE: like the reference module, the target y is the last input feature.
  x = X[:, :, 0:D].astype(jnp.float32)
  y = X[:, :, D - 1:].reshape(B, T, O).astype(jnp.float32)
  y0 = y[:, 0, :]

  layout, total_rows, lane = _pack_layout(
      input_dim=D, sa_hidden=sa_hidden, ta_hidden=ta_hidden,
      seq_length=T, output_dim=O)
  packed = _pack_params(params, layout, total_rows, lane,
                        sa_hidden=sa_hidden, ta_hidden=ta_hidden)

  # Choose the batch block: small enough to keep the live set near the vreg
  # file, and (when the batch allows) <= ceil(B/2) so the "parallel" batch
  # grid has >= 2 steps (v7x megacore can split it).
  B8 = _round_up(B, 8)
  bb = min(batch_block, B8)
  if B8 >= 16:
    bb = min(bb, _round_up((B8 + 1) // 2, 8))
  bb = max(bb, 8)
  Bp = _round_up(B8, bb)
  nb = Bp // bb

  # Time-major input: each per-step slice is a natural (bb, D) slab.
  x_tm = jnp.transpose(x, (1, 0, 2))                   # (T, B, D)
  if Bp != B:
    x_tm = jnp.pad(x_tm, ((0, 0), (0, Bp - B), (0, 0)))
    y0 = jnp.pad(y0, ((0, Bp - B), (0, 0)))

  # Lane-dense output slabs (padded up to a multiple of 128 lanes).
  aw = _round_up(T * D, 128)
  bw = _round_up(T * T, 128)

  kernel = functools.partial(
      _sta_lstm_kernel, seq_len=T, input_dim=D, sa_hidden=sa_hidden,
      ta_hidden=ta_hidden, output_dim=O, layout=layout)

  y_pred, a_slab, b_slab = pl.pallas_call(
      kernel,
      grid=(nb,),
      in_specs=[
          pl.BlockSpec((T, bb, D), lambda i: (0, i, 0)),
          pl.BlockSpec((bb, O), lambda i: (i, 0)),
          pl.BlockSpec((total_rows, lane), lambda i: (0, 0)),  # weights (grid-invariant)
      ],
      out_specs=(
          pl.BlockSpec((bb, O), lambda i: (i, 0)),
          pl.BlockSpec((bb, aw), lambda i: (i, 0)),
          pl.BlockSpec((bb, bw), lambda i: (i, 0)),
      ),
      out_shape=(
          jax.ShapeDtypeStruct((Bp, O), jnp.float32),
          jax.ShapeDtypeStruct((Bp, aw), jnp.float32),
          jax.ShapeDtypeStruct((Bp, bw), jnp.float32),
      ),
      compiler_params=pltpu.CompilerParams(
          dimension_semantics=("parallel",)),
  )(x_tm, y0, packed)

  # Unpack the lane-dense slabs back to the reference shapes (cheap XLA ops).
  alphas = a_slab[:B, :T * D].reshape(B, T, D).transpose(1, 0, 2)   # (T, B, D)
  betas = b_slab[:B, :T * T].reshape(B, T, T).transpose(1, 0, 2)    # (T, B, T)
  return y_pred[:B], alphas, betas


# ---------------------------------------------------------------------------
# Pure-JAX reference (mirrors the PyTorch module; HIGHEST-precision matmuls)
# ---------------------------------------------------------------------------
def sta_lstm_reference(X, p, *, input_dim, sa_hidden, ta_hidden, seq_length,
                       output_dim):
  B, T, _ = X.shape
  x = X[:, :, 0:input_dim]
  y = X[:, :, input_dim - 1:].reshape(B, T, output_dim)

  def dot(a, b):
    return jnp.dot(a, b, precision=jax.lax.Precision.HIGHEST)

  def softmax_rows(a):
    a = a - jnp.max(a, axis=1, keepdims=True)
    e = jnp.exp(a)
    return e / jnp.sum(e, axis=1, keepdims=True)

  HS = sa_hidden
  h_t = jnp.zeros((B, HS))
  c_t = jnp.zeros((B, HS))
  hseq, alphas = [], []
  for t in range(T):
    x_t = x[:, t, :]
    a_t = dot(jnp.tanh(dot(x_t, p["sa_Wa"])
                       + dot(jnp.concatenate([h_t, c_t], 1), p["sa_Ua"])
                       + p["sa_ba"]), p["sa_Va"])
    alpha_t = softmax_rows(a_t)
    alphas.append(alpha_t)
    gates = dot(alpha_t * x_t, p["sa_W"]) + dot(h_t, p["sa_U"]) + p["sa_b"]
    i_t = jax.nn.sigmoid(gates[:, :HS])
    f_t = jax.nn.sigmoid(gates[:, HS:2 * HS])
    g_t = jnp.tanh(gates[:, 2 * HS:3 * HS])
    o_t = jax.nn.sigmoid(gates[:, 3 * HS:])
    c_t = f_t * c_t + i_t * g_t
    h_t = o_t * jnp.tanh(c_t)
    hseq.append(h_t)
  H = jnp.stack(hseq, axis=1)  # (B, T, HS)

  HT = ta_hidden
  s_t = jnp.zeros((B, HT))
  lh = jnp.zeros((B, HT))
  lc = jnp.zeros((B, HT))
  y_prev = y[:, 0, :]
  betas = []
  for t in range(T):
    h_t = H[:, t, :]
    beta_t = softmax_rows(dot(jnp.tanh(dot(h_t, p["ta_Wa"])
                                       + dot(s_t, p["ta_Ua"]) + p["ta_ba"]),
                              p["ta_Va"]))
    betas.append(beta_t)
    ctx = jnp.sum(beta_t[:, :, None] * H, axis=1)
    gates = (dot(ctx, p["ta_W"]) + dot(lh, p["ta_U"])
             + dot(y_prev, p["ta_Wy"]) + p["ta_b"])
    i_t = jax.nn.sigmoid(gates[:, :HT])
    f_t = jax.nn.sigmoid(gates[:, HT:2 * HT])
    g_t = jnp.tanh(gates[:, 2 * HT:3 * HT])
    o_t = jax.nn.sigmoid(gates[:, 3 * HT:])
    lc = f_t * lc + i_t * g_t
    lh = o_t * jnp.tanh(lc)
    y_prev = dot(lh, p["fc_W"].T) + p["fc_b"]
  return y_prev, jnp.stack(alphas, 0), jnp.stack(betas, 0)


# ---------------------------------------------------------------------------
# Parameter init (mirrors init_weights: uniform(-stdv, stdv))
# ---------------------------------------------------------------------------
def init_params(key, *, input_dim, sa_hidden, ta_hidden, seq_length, output_dim):
  stdv_sa = 1.0 / math.sqrt(sa_hidden)
  stdv_ta = 1.0 / math.sqrt(ta_hidden)

  def uni(k, shape, s):
    return jax.random.uniform(k, shape, jnp.float32, minval=-s, maxval=s)

  ks = jax.random.split(key, 17)
  D, T, O = input_dim, seq_length, output_dim
  return {
      # SpatialLSTM
      "sa_W": uni(ks[0], (D, 4 * sa_hidden), stdv_sa),
      "sa_U": uni(ks[1], (sa_hidden, 4 * sa_hidden), stdv_sa),
      "sa_b": uni(ks[2], (1, 4 * sa_hidden), stdv_sa),
      "sa_Wa": uni(ks[3], (D, D), stdv_sa),
      "sa_Ua": uni(ks[4], (2 * sa_hidden, D), stdv_sa),
      "sa_ba": uni(ks[5], (1, D), stdv_sa),
      "sa_Va": uni(ks[6], (D, D), stdv_sa),
      # TemporalLSTM
      "ta_Wa": uni(ks[7], (sa_hidden, T), stdv_ta),
      "ta_Ua": uni(ks[8], (ta_hidden, T), stdv_ta),   # dead in fwd (s_t == 0)
      "ta_ba": uni(ks[9], (1, T), stdv_ta),
      "ta_Va": uni(ks[10], (T, T), stdv_ta),
      "ta_W": uni(ks[11], (sa_hidden, 4 * ta_hidden), stdv_ta),
      "ta_U": uni(ks[12], (ta_hidden, 4 * ta_hidden), stdv_ta),
      "ta_b": uni(ks[13], (1, 4 * ta_hidden), stdv_ta),
      "ta_Wy": uni(ks[14], (O, 4 * ta_hidden), stdv_ta),
      "fc_W": uni(ks[15], (O, ta_hidden), stdv_ta),
      "fc_b": uni(ks[16], (1, O), stdv_ta),
  }


if __name__ == "__main__":
  # Small shapes consistent with the module: y is the last column of x,
  # output_dim = 1.  B = 8 fills the vreg sublanes.
  B, T = 8, 8
  input_dim, sa_hidden, ta_hidden, output_dim = 16, 32, 32, 1

  key = jax.random.PRNGKey(0)
  kx, kp = jax.random.split(key)
  X = jax.random.normal(kx, (B, T, input_dim), jnp.float32)
  params = init_params(kp, input_dim=input_dim, sa_hidden=sa_hidden,
                       ta_hidden=ta_hidden, seq_length=T, output_dim=output_dim)

  y_pred, alphas, betas = sta_lstm_forward(
      X, params, input_dim=input_dim, sa_hidden=sa_hidden, ta_hidden=ta_hidden,
      seq_length=T, output_dim=output_dim)
  jax.block_until_ready((y_pred, alphas, betas))

  y_ref, a_ref, b_ref = sta_lstm_reference(
      X, params, input_dim=input_dim, sa_hidden=sa_hidden, ta_hidden=ta_hidden,
      seq_length=T, output_dim=output_dim)
  # The kernel runs matmuls at the MXU's default (bf16-pass) precision while
  # the reference uses HIGHEST (full f32); 1e-2 tolerance absorbs that while
  # any structural error would be orders of magnitude larger.
  np.testing.assert_allclose(np.asarray(y_pred), np.asarray(y_ref),
                             rtol=1e-2, atol=1e-2)
  np.testing.assert_allclose(np.asarray(alphas), np.asarray(a_ref),
                             rtol=1e-2, atol=1e-2)
  np.testing.assert_allclose(np.asarray(betas), np.asarray(b_ref),
                             rtol=1e-2, atol=1e-2)

  print("KERNEL_OK")
</pallas_src>

<mosaic_0001>
module attributes {stable_mosaic.version = 11 : i64} {
  func.func @_sta_lstm_kernel(%arg0: i32, %arg1: memref<8x8x16xf32, #tpu.memory_space<vmem>>, %arg2: memref<8x1xf32, #tpu.memory_space<vmem>>, %arg3: memref<304x128xf32, #tpu.memory_space<vmem>>, %arg4: memref<8x1xf32, #tpu.memory_space<vmem>>, %arg5: memref<8x128xf32, #tpu.memory_space<vmem>>, %arg6: memref<8x128xf32, #tpu.memory_space<vmem>>) attributes {dimension_semantics = [#tpu.dimension_semantics<parallel>], iteration_bounds = array<i64: 1>, scalar_prefetch = 0 : i64, scratch_operands = 0 : i64, tpu.core_type = #tpu.core_type<tc>, window_params = [{transform_indices = @transform_0, window_bounds = array<i64: 8, 8, 16>}, {transform_indices = @transform_1, window_bounds = array<i64: 8, 1>}, {pipeline_mode = #tpu.pipeline_mode<synchronous>, transform_indices = @transform_2, window_bounds = array<i64: 304, 128>}, {transform_indices = @transform_3, window_bounds = array<i64: 8, 1>}, {transform_indices = @transform_4, window_bounds = array<i64: 8, 128>}, {transform_indices = @transform_5, window_bounds = array<i64: 8, 128>}]} {
    %c0 = arith.constant 0 : index
    %c0_0 = arith.constant 0 : index
    %0 = vector.load %arg3[%c0, %c0_0] : memref<304x128xf32, #tpu.memory_space<vmem>>, vector<16x16xf32>
    %c16 = arith.constant 16 : index
    %c0_1 = arith.constant 0 : index
    %1 = vector.load %arg3[%c16, %c0_1] : memref<304x128xf32, #tpu.memory_space<vmem>>, vector<1x16xf32>
    %c24 = arith.constant 24 : index
    %c0_2 = arith.constant 0 : index
    %2 = vector.load %arg3[%c24, %c0_2] : memref<304x128xf32, #tpu.memory_space<vmem>>, vector<64x16xf32>
    %c88 = arith.constant 88 : index
    %c0_3 = arith.constant 0 : index
    %3 = vector.load %arg3[%c88, %c0_3] : memref<304x128xf32, #tpu.memory_space<vmem>>, vector<16x16xf32>
    %c104 = arith.constant 104 : index
    %c0_4 = arith.constant 0 : index
    %4 = vector.load %arg3[%c104, %c0_4] : memref<304x128xf32, #tpu.memory_space<vmem>>, vector<48x128xf32>
    %c152 = arith.constant 152 : index
    %c0_5 = arith.constant 0 : index
    %5 = vector.load %arg3[%c152, %c0_5] : memref<304x128xf32, #tpu.memory_space<vmem>>, vector<1x128xf32>
    %c0_6 = arith.constant 0 : index
    %c0_7 = arith.constant 0 : index
    %c0_8 = arith.constant 0 : index
    %6 = vector.load %arg1[%c0_6, %c0_7, %c0_8] : memref<8x8x16xf32, #tpu.memory_space<vmem>>, vector<1x8x16xf32>
    %7 = vector.shape_cast %6 : vector<1x8x16xf32> to vector<8x16xf32>
    %c1 = arith.constant 1 : index
    %c0_9 = arith.constant 0 : index
    %c0_10 = arith.constant 0 : index
    %8 = vector.load %arg1[%c1, %c0_9, %c0_10] : memref<8x8x16xf32, #tpu.memory_space<vmem>>, vector<1x8x16xf32>
    %9 = vector.shape_cast %8 : vector<1x8x16xf32> to vector<8x16xf32>
    %c2 = arith.constant 2 : index
    %c0_11 = arith.constant 0 : index
    %c0_12 = arith.constant 0 : index
    %10 = vector.load %arg1[%c2, %c0_11, %c0_12] : memref<8x8x16xf32, #tpu.memory_space<vmem>>, vector<1x8x16xf32>
    %11 = vector.shape_cast %10 : vector<1x8x16xf32> to vector<8x16xf32>
    %c3 = arith.constant 3 : index
    %c0_13 = arith.constant 0 : index
    %c0_14 = arith.constant 0 : index
    %12 = vector.load %arg1[%c3, %c0_13, %c0_14] : memref<8x8x16xf32, #tpu.memory_space<vmem>>, vector<1x8x16xf32>
    %13 = vector.shape_cast %12 : vector<1x8x16xf32> to vector<8x16xf32>
    %c4 = arith.constant 4 : index
    %c0_15 = arith.constant 0 : index
    %c0_16 = arith.constant 0 : index
    %14 = vector.load %arg1[%c4, %c0_15, %c0_16] : memref<8x8x16xf32, #tpu.memory_space<vmem>>, vector<1x8x16xf32>
    %15 = vector.shape_cast %14 : vector<1x8x16xf32> to vector<8x16xf32>
    %c5 = arith.constant 5 : index
    %c0_17 = arith.constant 0 : index
    %c0_18 = arith.constant 0 : index
    %16 = vector.load %arg1[%c5, %c0_17, %c0_18] : memref<8x8x16xf32, #tpu.memory_space<vmem>>, vector<1x8x16xf32>
    %17 = vector.shape_cast %16 : vector<1x8x16xf32> to vector<8x16xf32>
    %c6 = arith.constant 6 : index
    %c0_19 = arith.constant 0 : index
    %c0_20 = arith.constant 0 : index
    %18 = vector.load %arg1[%c6, %c0_19, %c0_20] : memref<8x8x16xf32, #tpu.memory_space<vmem>>, vector<1x8x16xf32>
    %19 = vector.shape_cast %18 : vector<1x8x16xf32> to vector<8x16xf32>
    %c7 = arith.constant 7 : index
    %c0_21 = arith.constant 0 : index
    %c0_22 = arith.constant 0 : index
    %20 = vector.load %arg1[%c7, %c0_21, %c0_22] : memref<8x8x16xf32, #tpu.memory_space<vmem>>, vector<1x8x16xf32>
    %21 = vector.shape_cast %20 : vector<1x8x16xf32> to vector<8x16xf32>
    %22 = tpu.concatenate %7, %9, %11, %13, %15, %17, %19, %21 in 0 : vector<8x16xf32>, vector<8x16xf32>, vector<8x16xf32>, vector<8x16xf32>, vector<8x16xf32>, vector<8x16xf32>, vector<8x16xf32>, vector<8x16xf32> -> vector<64x16xf32>
    %cst = arith.constant dense<0.000000e+00> : vector<64x16xf32>
    %23 = tpu.matmul %22, %0, %cst {dimension_numbers = #tpu.dot_dimension_numbers<[1], [0], [0], [1], [0, 0, 1, 1], [], []>} : vector<64x16xf32>, vector<16x16xf32>, vector<64x16xf32> -> vector<64x16xf32>
    %24 = vector.broadcast %1 : vector<1x16xf32> to vector<64x16xf32>
    %25 = arith.addf %23, %24 : vector<64x16xf32>
    %cst_23 = arith.constant 0.000000e+00 : f32
    %26 = vector.broadcast %cst_23 : f32 to vector<8x32xf32>
    %cst_24 = arith.constant 0.000000e+00 : f32
    %27 = vector.broadcast %cst_24 : f32 to vector<8x32xf32>
    %c0_25 = arith.constant 0 : index
    %c0_26 = arith.constant 0 : index
    %c0_27 = arith.constant 0 : index
    %28 = vector.load %arg1[%c0_25, %c0_26, %c0_27] : memref<8x8x16xf32, #tpu.memory_space<vmem>>, vector<1x8x16xf32>
    %29 = vector.shape_cast %28 : vector<1x8x16xf32> to vector<8x16xf32>
    %30 = vector.extract_strided_slice %25 {offsets = [0, 0], sizes = [8, 16], strides = [1, 1]} : vector<64x16xf32> to vector<8x16xf32>
    %31 = tpu.concatenate %26, %27 in 1 : vector<8x32xf32>, vector<8x32xf32> -> vector<8x64xf32>
    %cst_28 = arith.constant dense<0.000000e+00> : vector<8x16xf32>
    %32 = tpu.matmul %31, %2, %cst_28 {dimension_numbers = #tpu.dot_dimension_numbers<[1], [0], [0], [1], [0, 0, 1, 1], [], []>} : vector<8x64xf32>, vector<64x16xf32>, vector<8x16xf32> -> vector<8x16xf32>
    %33 = arith.addf %30, %32 : vector<8x16xf32>
    %34 = math.tanh %33 : vector<8x16xf32>
    %cst_29 = arith.constant dense<0.000000e+00> : vector<8x16xf32>
    %35 = tpu.matmul %34, %3, %cst_29 {dimension_numbers = #tpu.dot_dimension_numbers<[1], [0], [0], [1], [0, 0, 1, 1], [], []>} : vector<8x16xf32>, vector<16x16xf32>, vector<8x16xf32> -> vector<8x16xf32>
    %cst_30 = arith.constant dense<0xFF800000> : vector<8xf32>
    %36 = vector.multi_reduction <maximumf>, %35, %cst_30 [1] : vector<8x16xf32> to vector<8xf32>
    %37 = vector.shape_cast %36 : vector<8xf32> to vector<8x1xf32>
    %38 = vector.broadcast %37 : vector<8x1xf32> to vector<8x16xf32>
    %39 = arith.subf %35, %38 : vector<8x16xf32>
    %40 = math.exp %39 : vector<8x16xf32>
    %cst_31 = arith.constant dense<0.000000e+00> : vector<8xf32>
    %41 = vector.multi_reduction <add>, %40, %cst_31 [1] : vector<8x16xf32> to vector<8xf32>
    %42 = vector.shape_cast %41 : vector<8xf32> to vector<8x1xf32>
    %43 = vector.broadcast %42 : vector<8x1xf32> to vector<8x16xf32>
    %44 = arith.divf %40, %43 : vector<8x16xf32>
    %45 = arith.mulf %44, %29 : vector<8x16xf32>
    %46 = tpu.concatenate %45, %26 in 1 : vector<8x16xf32>, vector<8x32xf32> -> vector<8x48xf32>
    %cst_32 = arith.constant dense<0.000000e+00> : vector<8x128xf32>
    %47 = tpu.matmul %46, %4, %cst_32 {dimension_numbers = #tpu.dot_dimension_numbers<[1], [0], [0], [1], [0, 0, 1, 1], [], []>} : vector<8x48xf32>, vector<48x128xf32>, vector<8x128xf32> -> vector<8x128xf32>
    %48 = vector.broadcast %5 : vector<1x128xf32> to vector<8x128xf32>
    %49 = arith.addf %47, %48 : vector<8x128xf32>
    %50 = vector.extract_strided_slice %49 {offsets = [0, 0], sizes = [8, 96], strides = [1, 1]} : vector<8x128xf32> to vector<8x96xf32>
    %51 = arith.negf %50 : vector<8x96xf32>
    %52 = math.exp %51 : vector<8x96xf32>
    %cst_33 = arith.constant 1.000000e+00 : f32
    %53 = vector.broadcast %cst_33 : f32 to vector<8x96xf32>
    %54 = arith.addf %53, %52 : vector<8x96xf32>
    %55 = arith.divf %53, %54 : vector<8x96xf32>
    %56 = vector.extract_strided_slice %49 {offsets = [0, 96], sizes = [8, 32], strides = [1, 1]} : vector<8x128xf32> to vector<8x32xf32>
    %57 = math.tanh %56 : vector<8x32xf32>
    %58 = vector.extract_strided_slice %55 {offsets = [0, 0], sizes = [8, 32], strides = [1, 1]} : vector<8x96xf32> to vector<8x32xf32>
    %59 = vector.extract_strided_slice %55 {offsets = [0, 32], sizes = [8, 32], strides = [1, 1]} : vector<8x96xf32> to vector<8x32xf32>
    %60 = vector.extract_strided_slice %55 {offsets = [0, 64], sizes = [8, 32], strides = [1, 1]} : vector<8x96xf32> to vector<8x32xf32>
    %61 = arith.mulf %59, %27 : vector<8x32xf32>
    %62 = arith.mulf %58, %57 : vector<8x32xf32>
    %63 = arith.addf %61, %62 : vector<8x32xf32>
    %64 = math.tanh %63 : vector<8x32xf32>
    %65 = arith.mulf %60, %64 : vector<8x32xf32>
    %c1_34 = arith.constant 1 : index
    %c0_35 = arith.constant 0 : index
    %c0_36 = arith.constant 0 : index
    %66 = vector.load %arg1[%c1_34, %c0_35, %c0_36] : memref<8x8x16xf32, #tpu.memory_space<vmem>>, vector<1x8x16xf32>
    %67 = vector.shape_cast %66 : vector<1x8x16xf32> to vector<8x16xf32>
    %68 = vector.extract_strided_slice %25 {offsets = [8, 0], sizes = [8, 16], strides = [1, 1]} : vector<64x16xf32> to vector<8x16xf32>
    %69 = tpu.concatenate %65, %63 in 1 : vector<8x32xf32>, vector<8x32xf32> -> vector<8x64xf32>
    %cst_37 = arith.constant dense<0.000000e+00> : vector<8x16xf32>
    %70 = tpu.matmul %69, %2, %cst_37 {dimension_numbers = #tpu.dot_dimension_numbers<[1], [0], [0], [1], [0, 0, 1, 1], [], []>} : vector<8x64xf32>, vector<64x16xf32>, vector<8x16xf32> -> vector<8x16xf32>
    %71 = arith.addf %68, %70 : vector<8x16xf32>
    %72 = math.tanh %71 : vector<8x16xf32>
    %cst_38 = arith.constant dense<0.000000e+00> : vector<8x16xf32>
    %73 = tpu.matmul %72, %3, %cst_38 {dimension_numbers = #tpu.dot_dimension_numbers<[1], [0], [0], [1], [0, 0, 1, 1], [], []>} : vector<8x16xf32>, vector<16x16xf32>, vector<8x16xf32> -> vector<8x16xf32>
    %cst_39 = arith.constant dense<0xFF800000> : vector<8xf32>
    %74 = vector.multi_reduction <maximumf>, %73, %cst_39 [1] : vector<8x16xf32> to vector<8xf32>
    %75 = vector.shape_cast %74 : vector<8xf32> to vector<8x1xf32>
    %76 = vector.broadcast %75 : vector<8x1xf32> to vector<8x16xf32>
    %77 = arith.subf %73, %76 : vector<8x16xf32>
    %78 = math.exp %77 : vector<8x16xf32>
    %cst_40 = arith.constant dense<0.000000e+00> : vector<8xf32>
    %79 = vector.multi_reduction <add>, %78, %cst_40 [1] : vector<8x16xf32> to vector<8xf32>
    %80 = vector.shape_cast %79 : vector<8xf32> to vector<8x1xf32>
    %81 = vector.broadcast %80 : vector<8x1xf32> to vector<8x16xf32>
    %82 = arith.divf %78, %81 : vector<8x16xf32>
    %83 = arith.mulf %82, %67 : vector<8x16xf32>
    %84 = tpu.concatenate %83, %65 in 1 : vector<8x16xf32>, vector<8x32xf32> -> vector<8x48xf32>
    %cst_41 = arith.constant dense<0.000000e+00> : vector<8x128xf32>
    %85 = tpu.matmul %84, %4, %cst_41 {dimension_numbers = #tpu.dot_dimension_numbers<[1], [0], [0], [1], [0, 0, 1, 1], [], []>} : vector<8x48xf32>, vector<48x128xf32>, vector<8x128xf32> -> vector<8x128xf32>
    %86 = vector.broadcast %5 : vector<1x128xf32> to vector<8x128xf32>
    %87 = arith.addf %85, %86 : vector<8x128xf32>
    %88 = vector.extract_strided_slice %87 {offsets = [0, 0], sizes = [8, 96], strides = [1, 1]} : vector<8x128xf32> to vector<8x96xf32>
    %89 = arith.negf %88 : vector<8x96xf32>
    %90 = math.exp %89 : vector<8x96xf32>
    %cst_42 = arith.constant 1.000000e+00 : f32
    %91 = vector.broadcast %cst_42 : f32 to vector<8x96xf32>
    %92 = arith.addf %91, %90 : vector<8x96xf32>
    %93 = arith.divf %91, %92 : vector<8x96xf32>
    %94 = vector.extract_strided_slice %87 {offsets = [0, 96], sizes = [8, 32], strides = [1, 1]} : vector<8x128xf32> to vector<8x32xf32>
    %95 = math.tanh %94 : vector<8x32xf32>
    %96 = vector.extract_strided_slice %93 {offsets = [0, 0], sizes = [8, 32], strides = [1, 1]} : vector<8x96xf32> to vector<8x32xf32>
    %97 = vector.extract_strided_slice %93 {offsets = [0, 32], sizes = [8, 32], strides = [1, 1]} : vector<8x96xf32> to vector<8x32xf32>
    %98 = vector.extract_strided_slice %93 {offsets = [0, 64], sizes = [8, 32], strides = [1, 1]} : vector<8x96xf32> to vector<8x32xf32>
    %99 = arith.mulf %97, %63 : vector<8x32xf32>
    %100 = arith.mulf %96, %95 : vector<8x32xf32>
    %101 = arith.addf %99, %100 : vector<8x32xf32>
    %102 = math.tanh %101 : vector<8x32xf32>
    %103 = arith.mulf %98, %102 : vector<8x32xf32>
    %c2_43 = arith.constant 2 : index
    %c0_44 = arith.constant 0 : index
    %c0_45 = arith.constant 0 : index
    %104 = vector.load %arg1[%c2_43, %c0_44, %c0_45] : memref<8x8x16xf32, #tpu.memory_space<vmem>>, vector<1x8x16xf32>
    %105 = vector.shape_cast %104 : vector<1x8x16xf32> to vector<8x16xf32>
    %106 = vector.extract_strided_slice %25 {offsets = [16, 0], sizes = [8, 16], strides = [1, 1]} : vector<64x16xf32> to vector<8x16xf32>
    %107 = tpu.concatenate %103, %101 in 1 : vector<8x32xf32>, vector<8x32xf32> -> vector<8x64xf32>
    %cst_46 = arith.constant dense<0.000000e+00> : vector<8x16xf32>
    %108 = tpu.matmul %107, %2, %cst_46 {dimension_numbers = #tpu.dot_dimension_numbers<[1], [0], [0], [1], [0, 0, 1, 1], [], []>} : vector<8x64xf32>, vector<64x16xf32>, vector<8x16xf32> -> vector<8x16xf32>
    %109 = arith.addf %106, %108 : vector<8x16xf32>
    %110 = math.tanh %109 : vector<8x16xf32>
    %cst_47 = arith.constant dense<0.000000e+00> : vector<8x16xf32>
    %111 = tpu.matmul %110, %3, %cst_47 {dimension_numbers = #tpu.dot_dimension_numbers<[1], [0], [0], [1], [0, 0, 1, 1], [], []>} : vector<8x16xf32>, vector<16x16xf32>, vector<8x16xf32> -> vector<8x16xf32>
    %cst_48 = arith.constant dense<0xFF800000> : vector<8xf32>
    %112 = vector.multi_reduction <maximumf>, %111, %cst_48 [1] : vector<8x16xf32> to vector<8xf32>
    %113 = vector.shape_cast %112 : vector<8xf32> to vector<8x1xf32>
    %114 = vector.broadcast %113 : vector<8x1xf32> to vector<8x16xf32>
    %115 = arith.subf %111, %114 : vector<8x16xf32>
    %116 = math.exp %115 : vector<8x16xf32>
    %cst_49 = arith.constant dense<0.000000e+00> : vector<8xf32>
    %117 = vector.multi_reduction <add>, %116, %cst_49 [1] : vector<8x16xf32> to vector<8xf32>
    %118 = vector.shape_cast %117 : vector<8xf32> to vector<8x1xf32>
    %119 = vector.broadcast %118 : vector<8x1xf32> to vector<8x16xf32>
    %120 = arith.divf %116, %119 : vector<8x16xf32>
    %121 = arith.mulf %120, %105 : vector<8x16xf32>
    %122 = tpu.concatenate %121, %103 in 1 : vector<8x16xf32>, vector<8x32xf32> -> vector<8x48xf32>
    %cst_50 = arith.constant dense<0.000000e+00> : vector<8x128xf32>
    %123 = tpu.matmul %122, %4, %cst_50 {dimension_numbers = #tpu.dot_dimension_numbers<[1], [0], [0], [1], [0, 0, 1, 1], [], []>} : vector<8x48xf32>, vector<48x128xf32>, vector<8x128xf32> -> vector<8x128xf32>
    %124 = vector.broadcast %5 : vector<1x128xf32> to vector<8x128xf32>
    %125 = arith.addf %123, %124 : vector<8x128xf32>
    %126 = vector.extract_strided_slice %125 {offsets = [0, 0], sizes = [8, 96], strides = [1, 1]} : vector<8x128xf32> to vector<8x96xf32>
    %127 = arith.negf %126 : vector<8x96xf32>
    %128 = math.exp %127 : vector<8x96xf32>
    %cst_51 = arith.constant 1.000000e+00 : f32
    %129 = vector.broadcast %cst_51 : f32 to vector<8x96xf32>
    %130 = arith.addf %129, %128 : vector<8x96xf32>
    %131 = arith.divf %129, %130 : vector<8x96xf32>
    %132 = vector.extract_strided_slice %125 {offsets = [0, 96], sizes = [8, 32], strides = [1, 1]} : vector<8x128xf32> to vector<8x32xf32>
    %133 = math.tanh %132 : vector<8x32xf32>
    %134 = vector.extract_strided_slice %131 {offsets = [0, 0], sizes = [8, 32], strides = [1, 1]} : vector<8x96xf32> to vector<8x32xf32>
    %135 = vector.extract_strided_slice %131 {offsets = [0, 32], sizes = [8, 32], strides = [1, 1]} : vector<8x96xf32> to vector<8x32xf32>
    %136 = vector.extract_strided_slice %131 {offsets = [0, 64], sizes = [8, 32], strides = [1, 1]} : vector<8x96xf32> to vector<8x32xf32>
    %137 = arith.mulf %135, %101 : vector<8x32xf32>
    %138 = arith.mulf %134, %133 : vector<8x32xf32>
    %139 = arith.addf %137, %138 : vector<8x32xf32>
    %140 = math.tanh %139 : vector<8x32xf32>
    %141 = arith.mulf %136, %140 : vector<8x32xf32>
    %c3_52 = arith.constant 3 : index
    %c0_53 = arith.constant 0 : index
    %c0_54 = arith.constant 0 : index
    %142 = vector.load %arg1[%c3_52, %c0_53, %c0_54] : memref<8x8x16xf32, #tpu.memory_space<vmem>>, vector<1x8x16xf32>
    %143 = vector.shape_cast %142 : vector<1x8x16xf32> to vector<8x16xf32>
    %144 = vector.extract_strided_slice %25 {offsets = [24, 0], sizes = [8, 16], strides = [1, 1]} : vector<64x16xf32> to vector<8x16xf32>
    %145 = tpu.concatenate %141, %139 in 1 : vector<8x32xf32>, vector<8x32xf32> -> vector<8x64xf32>
    %cst_55 = arith.constant dense<0.000000e+00> : vector<8x16xf32>
    %146 = tpu.matmul %145, %2, %cst_55 {dimension_numbers = #tpu.dot_dimension_numbers<[1], [0], [0], [1], [0, 0, 1, 1], [], []>} : vector<8x64xf32>, vector<64x16xf32>, vector<8x16xf32> -> vector<8x16xf32>
    %147 = arith.addf %144, %146 : vector<8x16xf32>
    %148 = math.tanh %147 : vector<8x16xf32>
    %cst_56 = arith.constant dense<0.000000e+00> : vector<8x16xf32>
    %149 = tpu.matmul %148, %3, %cst_56 {dimension_numbers = #tpu.dot_dimension_numbers<[1], [0], [0], [1], [0, 0, 1, 1], [], []>} : vector<8x16xf32>, vector<16x16xf32>, vector<8x16xf32> -> vector<8x16xf32>
    %cst_57 = arith.constant dense<0xFF800000> : vector<8xf32>
    %150 = vector.multi_reduction <maximumf>, %149, %cst_57 [1] : vector<8x16xf32> to vector<8xf32>
    %151 = vector.shape_cast %150 : vector<8xf32> to vector<8x1xf32>
    %152 = vector.broadcast %151 : vector<8x1xf32> to vector<8x16xf32>
    %153 = arith.subf %149, %152 : vector<8x16xf32>
    %154 = math.exp %153 : vector<8x16xf32>
    %cst_58 = arith.constant dense<0.000000e+00> : vector<8xf32>
    %155 = vector.multi_reduction <add>, %154, %cst_58 [1] : vector<8x16xf32> to vector<8xf32>
    %156 = vector.shape_cast %155 : vector<8xf32> to vector<8x1xf32>
    %157 = vector.broadcast %156 : vector<8x1xf32> to vector<8x16xf32>
    %158 = arith.divf %154, %157 : vector<8x16xf32>
    %159 = arith.mulf %158, %143 : vector<8x16xf32>
    %160 = tpu.concatenate %159, %141 in 1 : vector<8x16xf32>, vector<8x32xf32> -> vector<8x48xf32>
    %cst_59 = arith.constant dense<0.000000e+00> : vector<8x128xf32>
    %161 = tpu.matmul %160, %4, %cst_59 {dimension_numbers = #tpu.dot_dimension_numbers<[1], [0], [0], [1], [0, 0, 1, 1], [], []>} : vector<8x48xf32>, vector<48x128xf32>, vector<8x128xf32> -> vector<8x128xf32>
    %162 = vector.broadcast %5 : vector<1x128xf32> to vector<8x128xf32>
    %163 = arith.addf %161, %162 : vector<8x128xf32>
    %164 = vector.extract_strided_slice %163 {offsets = [0, 0], sizes = [8, 96], strides = [1, 1]} : vector<8x128xf32> to vector<8x96xf32>
    %165 = arith.negf %164 : vector<8x96xf32>
    %166 = math.exp %165 : vector<8x96xf32>
    %cst_60 = arith.constant 1.000000e+00 : f32
    %167 = vector.broadcast %cst_60 : f32 to vector<8x96xf32>
    %168 = arith.addf %167, %166 : vector<8x96xf32>
    %169 = arith.divf %167, %168 : vector<8x96xf32>
    %170 = vector.extract_strided_slice %163 {offsets = [0, 96], sizes = [8, 32], strides = [1, 1]} : vector<8x128xf32> to vector<8x32xf32>
    %171 = math.tanh %170 : vector<8x32xf32>
    %172 = vector.extract_strided_slice %169 {offsets = [0, 0], sizes = [8, 32], strides = [1, 1]} : vector<8x96xf32> to vector<8x32xf32>
    %173 = vector.extract_strided_slice %169 {offsets = [0, 32], sizes = [8, 32], strides = [1, 1]} : vector<8x96xf32> to vector<8x32xf32>
    %174 = vector.extract_strided_slice %169 {offsets = [0, 64], sizes = [8, 32], strides = [1, 1]} : vector<8x96xf32> to vector<8x32xf32>
    %175 = arith.mulf %173, %139 : vector<8x32xf32>
    %176 = arith.mulf %172, %171 : vector<8x32xf32>
    %177 = arith.addf %175, %176 : vector<8x32xf32>
    %178 = math.tanh %177 : vector<8x32xf32>
    %179 = arith.mulf %174, %178 : vector<8x32xf32>
    %c4_61 = arith.constant 4 : index
    %c0_62 = arith.constant 0 : index
    %c0_63 = arith.constant 0 : index
    %180 = vector.load %arg1[%c4_61, %c0_62, %c0_63] : memref<8x8x16xf32, #tpu.memory_space<vmem>>, vector<1x8x16xf32>
    %181 = vector.shape_cast %180 : vector<1x8x16xf32> to vector<8x16xf32>
    %182 = vector.extract_strided_slice %25 {offsets = [32, 0], sizes = [8, 16], strides = [1, 1]} : vector<64x16xf32> to vector<8x16xf32>
    %183 = tpu.concatenate %179, %177 in 1 : vector<8x32xf32>, vector<8x32xf32> -> vector<8x64xf32>
    %cst_64 = arith.constant dense<0.000000e+00> : vector<8x16xf32>
    %184 = tpu.matmul %183, %2, %cst_64 {dimension_numbers = #tpu.dot_dimension_numbers<[1], [0], [0], [1], [0, 0, 1, 1], [], []>} : vector<8x64xf32>, vector<64x16xf32>, vector<8x16xf32> -> vector<8x16xf32>
    %185 = arith.addf %182, %184 : vector<8x16xf32>
    %186 = math.tanh %185 : vector<8x16xf32>
    %cst_65 = arith.constant dense<0.000000e+00> : vector<8x16xf32>
    %187 = tpu.matmul %186, %3, %cst_65 {dimension_numbers = #tpu.dot_dimension_numbers<[1], [0], [0], [1], [0, 0, 1, 1], [], []>} : vector<8x16xf32>, vector<16x16xf32>, vector<8x16xf32> -> vector<8x16xf32>
    %cst_66 = arith.constant dense<0xFF800000> : vector<8xf32>
    %188 = vector.multi_reduction <maximumf>, %187, %cst_66 [1] : vector<8x16xf32> to vector<8xf32>
    %189 = vector.shape_cast %188 : vector<8xf32> to vector<8x1xf32>
    %190 = vector.broadcast %189 : vector<8x1xf32> to vector<8x16xf32>
    %191 = arith.subf %187, %190 : vector<8x16xf32>
    %192 = math.exp %191 : vector<8x16xf32>
    %cst_67 = arith.constant dense<0.000000e+00> : vector<8xf32>
    %193 = vector.multi_reduction <add>, %192, %cst_67 [1] : vector<8x16xf32> to vector<8xf32>
    %194 = vector.shape_cast %193 : vector<8xf32> to vector<8x1xf32>
    %195 = vector.broadcast %194 : vector<8x1xf32> to vector<8x16xf32>
    %196 = arith.divf %192, %195 : vector<8x16xf32>
    %197 = arith.mulf %196, %181 : vector<8x16xf32>
    %198 = tpu.concatenate %197, %179 in 1 : vector<8x16xf32>, vector<8x32xf32> -> vector<8x48xf32>
    %cst_68 = arith.constant dense<0.000000e+00> : vector<8x128xf32>
    %199 = tpu.matmul %198, %4, %cst_68 {dimension_numbers = #tpu.dot_dimension_numbers<[1], [0], [0], [1], [0, 0, 1, 1], [], []>} : vector<8x48xf32>, vector<48x128xf32>, vector<8x128xf32> -> vector<8x128xf32>
    %200 = vector.broadcast %5 : vector<1x128xf32> to vector<8x128xf32>
    %201 = arith.addf %199, %200 : vector<8x128xf32>
    %202 = vector.extract_strided_slice %201 {offsets = [0, 0], sizes = [8, 96], strides = [1, 1]} : vector<8x128xf32> to vector<8x96xf32>
    %203 = arith.negf %202 : vector<8x96xf32>
    %204 = math.exp %203 : vector<8x96xf32>
    %cst_69 = arith.constant 1.000000e+00 : f32
    %205 = vector.broadcast %cst_69 : f32 to vector<8x96xf32>
    %206 = arith.addf %205, %204 : vector<8x96xf32>
    %207 = arith.divf %205, %206 : vector<8x96xf32>
    %208 = vector.extract_strided_slice %201 {offsets = [0, 96], sizes = [8, 32], strides = [1, 1]} : vector<8x128xf32> to vector<8x32xf32>
    %209 = math.tanh %208 : vector<8x32xf32>
    %210 = vector.extract_strided_slice %207 {offsets = [0, 0], sizes = [8, 32], strides = [1, 1]} : vector<8x96xf32> to vector<8x32xf32>
    %211 = vector.extract_strided_slice %207 {offsets = [0, 32], sizes = [8, 32], strides = [1, 1]} : vector<8x96xf32> to vector<8x32xf32>
    %212 = vector.extract_strided_slice %207 {offsets = [0, 64], sizes = [8, 32], strides = [1, 1]} : vector<8x96xf32> to vector<8x32xf32>
    %213 = arith.mulf %211, %177 : vector<8x32xf32>
    %214 = arith.mulf %210, %209 : vector<8x32xf32>
    %215 = arith.addf %213, %214 : vector<8x32xf32>
    %216 = math.tanh %215 : vector<8x32xf32>
    %217 = arith.mulf %212, %216 : vector<8x32xf32>
    %c5_70 = arith.constant 5 : index
    %c0_71 = arith.constant 0 : index
    %c0_72 = arith.constant 0 : index
    %218 = vector.load %arg1[%c5_70, %c0_71, %c0_72] : memref<8x8x16xf32, #tpu.memory_space<vmem>>, vector<1x8x16xf32>
    %219 = vector.shape_cast %218 : vector<1x8x16xf32> to vector<8x16xf32>
    %220 = vector.extract_strided_slice %25 {offsets = [40, 0], sizes = [8, 16], strides = [1, 1]} : vector<64x16xf32> to vector<8x16xf32>
    %221 = tpu.concatenate %217, %215 in 1 : vector<8x32xf32>, vector<8x32xf32> -> vector<8x64xf32>
    %cst_73 = arith.constant dense<0.000000e+00> : vector<8x16xf32>
    %222 = tpu.matmul %221, %2, %cst_73 {dimension_numbers = #tpu.dot_dimension_numbers<[1], [0], [0], [1], [0, 0, 1, 1], [], []>} : vector<8x64xf32>, vector<64x16xf32>, vector<8x16xf32> -> vector<8x16xf32>
    %223 = arith.addf %220, %222 : vector<8x16xf32>
    %224 = math.tanh %223 : vector<8x16xf32>
    %cst_74 = arith.constant dense<0.000000e+00> : vector<8x16xf32>
    %225 = tpu.matmul %224, %3, %cst_74 {dimension_numbers = #tpu.dot_dimension_numbers<[1], [0], [0], [1], [0, 0, 1, 1], [], []>} : vector<8x16xf32>, vector<16x16xf32>, vector<8x16xf32> -> vector<8x16xf32>
    %cst_75 = arith.constant dense<0xFF800000> : vector<8xf32>
    %226 = vector.multi_reduction <maximumf>, %225, %cst_75 [1] : vector<8x16xf32> to vector<8xf32>
    %227 = vector.shape_cast %226 : vector<8xf32> to vector<8x1xf32>
    %228 = vector.broadcast %227 : vector<8x1xf32> to vector<8x16xf32>
    %229 = arith.subf %225, %228 : vector<8x16xf32>
    %230 = math.exp %229 : vector<8x16xf32>
    %cst_76 = arith.constant dense<0.000000e+00> : vector<8xf32>
    %231 = vector.multi_reduction <add>, %230, %cst_76 [1] : vector<8x16xf32> to vector<8xf32>
    %232 = vector.shape_cast %231 : vector<8xf32> to vector<8x1xf32>
    %233 = vector.broadcast %232 : vector<8x1xf32> to vector<8x16xf32>
    %234 = arith.divf %230, %233 : vector<8x16xf32>
    %235 = arith.mulf %234, %219 : vector<8x16xf32>
    %236 = tpu.concatenate %235, %217 in 1 : vector<8x16xf32>, vector<8x32xf32> -> vector<8x48xf32>
    %cst_77 = arith.constant dense<0.000000e+00> : vector<8x128xf32>
    %237 = tpu.matmul %236, %4, %cst_77 {dimension_numbers = #tpu.dot_dimension_numbers<[1], [0], [0], [1], [0, 0, 1, 1], [], []>} : vector<8x48xf32>, vector<48x128xf32>, vector<8x128xf32> -> vector<8x128xf32>
    %238 = vector.broadcast %5 : vector<1x128xf32> to vector<8x128xf32>
    %239 = arith.addf %237, %238 : vector<8x128xf32>
    %240 = vector.extract_strided_slice %239 {offsets = [0, 0], sizes = [8, 96], strides = [1, 1]} : vector<8x128xf32> to vector<8x96xf32>
    %241 = arith.negf %240 : vector<8x96xf32>
    %242 = math.exp %241 : vector<8x96xf32>
    %cst_78 = arith.constant 1.000000e+00 : f32
    %243 = vector.broadcast %cst_78 : f32 to vector<8x96xf32>
    %244 = arith.addf %243, %242 : vector<8x96xf32>
    %245 = arith.divf %243, %244 : vector<8x96xf32>
    %246 = vector.extract_strided_slice %239 {offsets = [0, 96], sizes = [8, 32], strides = [1, 1]} : vector<8x128xf32> to vector<8x32xf32>
    %247 = math.tanh %246 : vector<8x32xf32>
    %248 = vector.extract_strided_slice %245 {offsets = [0, 0], sizes = [8, 32], strides = [1, 1]} : vector<8x96xf32> to vector<8x32xf32>
    %249 = vector.extract_strided_slice %245 {offsets = [0, 32], sizes = [8, 32], strides = [1, 1]} : vector<8x96xf32> to vector<8x32xf32>
    %250 = vector.extract_strided_slice %245 {offsets = [0, 64], sizes = [8, 32], strides = [1, 1]} : vector<8x96xf32> to vector<8x32xf32>
    %251 = arith.mulf %249, %215 : vector<8x32xf32>
    %252 = arith.mulf %248, %247 : vector<8x32xf32>
    %253 = arith.addf %251, %252 : vector<8x32xf32>
    %254 = math.tanh %253 : vector<8x32xf32>
    %255 = arith.mulf %250, %254 : vector<8x32xf32>
    %c6_79 = arith.constant 6 : index
    %c0_80 = arith.constant 0 : index
    %c0_81 = arith.constant 0 : index
    %256 = vector.load %arg1[%c6_79, %c0_80, %c0_81] : memref<8x8x16xf32, #tpu.memory_space<vmem>>, vector<1x8x16xf32>
    %257 = vector.shape_cast %256 : vector<1x8x16xf32> to vector<8x16xf32>
    %258 = vector.extract_strided_slice %25 {offsets = [48, 0], sizes = [8, 16], strides = [1, 1]} : vector<64x16xf32> to vector<8x16xf32>
    %259 = tpu.concatenate %255, %253 in 1 : vector<8x32xf32>, vector<8x32xf32> -> vector<8x64xf32>
    %cst_82 = arith.constant dense<0.000000e+00> : vector<8x16xf32>
    %260 = tpu.matmul %259, %2, %cst_82 {dimension_numbers = #tpu.dot_dimension_numbers<[1], [0], [0], [1], [0, 0, 1, 1], [], []>} : vector<8x64xf32>, vector<64x16xf32>, vector<8x16xf32> -> vector<8x16xf32>
    %261 = arith.addf %258, %260 : vector<8x16xf32>
    %262 = math.tanh %261 : vector<8x16xf32>
    %cst_83 = arith.constant dense<0.000000e+00> : vector<8x16xf32>
    %263 = tpu.matmul %262, %3, %cst_83 {dimension_numbers = #tpu.dot_dimension_numbers<[1], [0], [0], [1], [0, 0, 1, 1], [], []>} : vector<8x16xf32>, vector<16x16xf32>, vector<8x16xf32> -> vector<8x16xf32>
    %cst_84 = arith.constant dense<0xFF800000> : vector<8xf32>
    %264 = vector.multi_reduction <maximumf>, %263, %cst_84 [1] : vector<8x16xf32> to vector<8xf32>
    %265 = vector.shape_cast %264 : vector<8xf32> to vector<8x1xf32>
    %266 = vector.broadcast %265 : vector<8x1xf32> to vector<8x16xf32>
    %267 = arith.subf %263, %266 : vector<8x16xf32>
    %268 = math.exp %267 : vector<8x16xf32>
    %cst_85 = arith.constant dense<0.000000e+00> : vector<8xf32>
    %269 = vector.multi_reduction <add>, %268, %cst_85 [1] : vector<8x16xf32> to vector<8xf32>
    %270 = vector.shape_cast %269 : vector<8xf32> to vector<8x1xf32>
    %271 = vector.broadcast %270 : vector<8x1xf32> to vector<8x16xf32>
    %272 = arith.divf %268, %271 : vector<8x16xf32>
    %273 = arith.mulf %272, %257 : vector<8x16xf32>
    %274 = tpu.concatenate %273, %255 in 1 : vector<8x16xf32>, vector<8x32xf32> -> vector<8x48xf32>
    %cst_86 = arith.constant dense<0.000000e+00> : vector<8x128xf32>
    %275 = tpu.matmul %274, %4, %cst_86 {dimension_numbers = #tpu.dot_dimension_numbers<[1], [0], [0], [1], [0, 0, 1, 1], [], []>} : vector<8x48xf32>, vector<48x128xf32>, vector<8x128xf32> -> vector<8x128xf32>
    %276 = vector.broadcast %5 : vector<1x128xf32> to vector<8x128xf32>
    %277 = arith.addf %275, %276 : vector<8x128xf32>
    %278 = vector.extract_strided_slice %277 {offsets = [0, 0], sizes = [8, 96], strides = [1, 1]} : vector<8x128xf32> to vector<8x96xf32>
    %279 = arith.negf %278 : vector<8x96xf32>
    %280 = math.exp %279 : vector<8x96xf32>
    %cst_87 = arith.constant 1.000000e+00 : f32
    %281 = vector.broadcast %cst_87 : f32 to vector<8x96xf32>
    %282 = arith.addf %281, %280 : vector<8x96xf32>
    %283 = arith.divf %281, %282 : vector<8x96xf32>
    %284 = vector.extract_strided_slice %277 {offsets = [0, 96], sizes = [8, 32], strides = [1, 1]} : vector<8x128xf32> to vector<8x32xf32>
    %285 = math.tanh %284 : vector<8x32xf32>
    %286 = vector.extract_strided_slice %283 {offsets = [0, 0], sizes = [8, 32], strides = [1, 1]} : vector<8x96xf32> to vector<8x32xf32>
    %287 = vector.extract_strided_slice %283 {offsets = [0, 32], sizes = [8, 32], strides = [1, 1]} : vector<8x96xf32> to vector<8x32xf32>
    %288 = vector.extract_strided_slice %283 {offsets = [0, 64], sizes = [8, 32], strides = [1, 1]} : vector<8x96xf32> to vector<8x32xf32>
    %289 = arith.mulf %287, %253 : vector<8x32xf32>
    %290 = arith.mulf %286, %285 : vector<8x32xf32>
    %291 = arith.addf %289, %290 : vector<8x32xf32>
    %292 = math.tanh %291 : vector<8x32xf32>
    %293 = arith.mulf %288, %292 : vector<8x32xf32>
    %c7_88 = arith.constant 7 : index
    %c0_89 = arith.constant 0 : index
    %c0_90 = arith.constant 0 : index
    %294 = vector.load %arg1[%c7_88, %c0_89, %c0_90] : memref<8x8x16xf32, #tpu.memory_space<vmem>>, vector<1x8x16xf32>
    %295 = vector.shape_cast %294 : vector<1x8x16xf32> to vector<8x16xf32>
    %296 = vector.extract_strided_slice %25 {offsets = [56, 0], sizes = [8, 16], strides = [1, 1]} : vector<64x16xf32> to vector<8x16xf32>
    %297 = tpu.concatenate %293, %291 in 1 : vector<8x32xf32>, vector<8x32xf32> -> vector<8x64xf32>
    %cst_91 = arith.constant dense<0.000000e+00> : vector<8x16xf32>
    %298 = tpu.matmul %297, %2, %cst_91 {dimension_numbers = #tpu.dot_dimension_numbers<[1], [0], [0], [1], [0, 0, 1, 1], [], []>} : vector<8x64xf32>, vector<64x16xf32>, vector<8x16xf32> -> vector<8x16xf32>
    %299 = arith.addf %296, %298 : vector<8x16xf32>
    %300 = math.tanh %299 : vector<8x16xf32>
    %cst_92 = arith.constant dense<0.000000e+00> : vector<8x16xf32>
    %301 = tpu.matmul %300, %3, %cst_92 {dimension_numbers = #tpu.dot_dimension_numbers<[1], [0], [0], [1], [0, 0, 1, 1], [], []>} : vector<8x16xf32>, vector<16x16xf32>, vector<8x16xf32> -> vector<8x16xf32>
    %cst_93 = arith.constant dense<0xFF800000> : vector<8xf32>
    %302 = vector.multi_reduction <maximumf>, %301, %cst_93 [1] : vector<8x16xf32> to vector<8xf32>
    %303 = vector.shape_cast %302 : vector<8xf32> to vector<8x1xf32>
    %304 = vector.broadcast %303 : vector<8x1xf32> to vector<8x16xf32>
    %305 = arith.subf %301, %304 : vector<8x16xf32>
    %306 = math.exp %305 : vector<8x16xf32>
    %cst_94 = arith.constant dense<0.000000e+00> : vector<8xf32>
    %307 = vector.multi_reduction <add>, %306, %cst_94 [1] : vector<8x16xf32> to vector<8xf32>
    %308 = vector.shape_cast %307 : vector<8xf32> to vector<8x1xf32>
    %309 = vector.broadcast %308 : vector<8x1xf32> to vector<8x16xf32>
    %310 = arith.divf %306, %309 : vector<8x16xf32>
    %311 = arith.mulf %310, %295 : vector<8x16xf32>
    %312 = tpu.concatenate %311, %293 in 1 : vector<8x16xf32>, vector<8x32xf32> -> vector<8x48xf32>
    %cst_95 = arith.constant dense<0.000000e+00> : vector<8x128xf32>
    %313 = tpu.matmul %312, %4, %cst_95 {dimension_numbers = #tpu.dot_dimension_numbers<[1], [0], [0], [1], [0, 0, 1, 1], [], []>} : vector<8x48xf32>, vector<48x128xf32>, vector<8x128xf32> -> vector<8x128xf32>
    %314 = vector.broadcast %5 : vector<1x128xf32> to vector<8x128xf32>
    %315 = arith.addf %313, %314 : vector<8x128xf32>
    %316 = vector.extract_strided_slice %315 {offsets = [0, 0], sizes = [8, 96], strides = [1, 1]} : vector<8x128xf32> to vector<8x96xf32>
    %317 = arith.negf %316 : vector<8x96xf32>
    %318 = math.exp %317 : vector<8x96xf32>
    %cst_96 = arith.constant 1.000000e+00 : f32
    %319 = vector.broadcast %cst_96 : f32 to vector<8x96xf32>
    %320 = arith.addf %319, %318 : vector<8x96xf32>
    %321 = arith.divf %319, %320 : vector<8x96xf32>
    %322 = vector.extract_strided_slice %315 {offsets = [0, 96], sizes = [8, 32], strides = [1, 1]} : vector<8x128xf32> to vector<8x32xf32>
    %323 = math.tanh %322 : vector<8x32xf32>
    %324 = vector.extract_strided_slice %321 {offsets = [0, 0], sizes = [8, 32], strides = [1, 1]} : vector<8x96xf32> to vector<8x32xf32>
    %325 = vector.extract_strided_slice %321 {offsets = [0, 32], sizes = [8, 32], strides = [1, 1]} : vector<8x96xf32> to vector<8x32xf32>
    %326 = vector.extract_strided_slice %321 {offsets = [0, 64], sizes = [8, 32], strides = [1, 1]} : vector<8x96xf32> to vector<8x32xf32>
    %327 = arith.mulf %325, %291 : vector<8x32xf32>
    %328 = arith.mulf %324, %323 : vector<8x32xf32>
    %329 = arith.addf %327, %328 : vector<8x32xf32>
    %330 = math.tanh %329 : vector<8x32xf32>
    %331 = arith.mulf %326, %330 : vector<8x32xf32>
    %332 = tpu.concatenate %44, %82, %120, %158, %196, %234, %272, %310 in 1 : vector<8x16xf32>, vector<8x16xf32>, vector<8x16xf32>, vector<8x16xf32>, vector<8x16xf32>, vector<8x16xf32>, vector<8x16xf32>, vector<8x16xf32> -> vector<8x128xf32>
    %c0_97 = arith.constant 0 : index
    %c0_98 = arith.constant 0 : index
    %333 = vector.load %arg5[%c0_97, %c0_98] : memref<8x128xf32, #tpu.memory_space<vmem>>, vector<8x128xf32>
    tpu.vector_store %arg5[%c0_97, %c0_98], %332 {strides = array<i32>} : memref<8x128xf32, #tpu.memory_space<vmem>>, vector<8x128xf32>,
    %c160 = arith.constant 160 : index
    %c0_99 = arith.constant 0 : index
    %334 = vector.load %arg3[%c160, %c0_99] : memref<304x128xf32, #tpu.memory_space<vmem>>, vector<32x8xf32>
    %c192 = arith.constant 192 : index
    %c0_100 = arith.constant 0 : index
    %335 = vector.load %arg3[%c192, %c0_100] : memref<304x128xf32, #tpu.memory_space<vmem>>, vector<1x8xf32>
    %c200 = arith.constant 200 : index
    %c0_101 = arith.constant 0 : index
    %336 = vector.load %arg3[%c200, %c0_101] : memref<304x128xf32, #tpu.memory_space<vmem>>, vector<8x8xf32>
    %c208 = arith.constant 208 : index
    %c0_102 = arith.constant 0 : index
    %337 = vector.load %arg3[%c208, %c0_102] : memref<304x128xf32, #tpu.memory_space<vmem>>, vector<32x128xf32>
    %c240 = arith.constant 240 : index
    %c0_103 = arith.constant 0 : index
    %338 = vector.load %arg3[%c240, %c0_103] : memref<304x128xf32, #tpu.memory_space<vmem>>, vector<32x128xf32>
    %c272 = arith.constant 272 : index
    %c0_104 = arith.constant 0 : index
    %339 = vector.load %arg3[%c272, %c0_104] : memref<304x128xf32, #tpu.memory_space<vmem>>, vector<1x128xf32>
    %c280 = arith.constant 280 : index
    %c0_105 = arith.constant 0 : index
    %340 = vector.load %arg3[%c280, %c0_105] : memref<304x128xf32, #tpu.memory_space<vmem>>, vector<1x128xf32>
    %c288 = arith.constant 288 : index
    %c0_106 = arith.constant 0 : index
    %341 = vector.load %arg3[%c288, %c0_106] : memref<304x128xf32, #tpu.memory_space<vmem>>, vector<1x32xf32>
    %c296 = arith.constant 296 : index
    %c0_107 = arith.constant 0 : index
    %342 = vector.load %arg3[%c296, %c0_107] : memref<304x128xf32, #tpu.memory_space<vmem>>, vector<1x1xf32>
    %343 = tpu.concatenate %65, %103, %141, %179, %217, %255, %293, %331 in 0 : vector<8x32xf32>, vector<8x32xf32>, vector<8x32xf32>, vector<8x32xf32>, vector<8x32xf32>, vector<8x32xf32>, vector<8x32xf32>, vector<8x32xf32> -> vector<64x32xf32>
    %cst_108 = arith.constant dense<0.000000e+00> : vector<64x8xf32>
    %344 = tpu.matmul %343, %334, %cst_108 {dimension_numbers = #tpu.dot_dimension_numbers<[1], [0], [0], [1], [0, 0, 1, 1], [], []>} : vector<64x32xf32>, vector<32x8xf32>, vector<64x8xf32> -> vector<64x8xf32>
    %345 = vector.broadcast %335 : vector<1x8xf32> to vector<64x8xf32>
    %346 = arith.addf %344, %345 : vector<64x8xf32>
    %347 = math.tanh %346 : vector<64x8xf32>
    %cst_109 = arith.constant dense<0.000000e+00> : vector<64x8xf32>
    %348 = tpu.matmul %347, %336, %cst_109 {dimension_numbers = #tpu.dot_dimension_numbers<[1], [0], [0], [1], [0, 0, 1, 1], [], []>} : vector<64x8xf32>, vector<8x8xf32>, vector<64x8xf32> -> vector<64x8xf32>
    %cst_110 = arith.constant dense<0xFF800000> : vector<64xf32>
    %349 = vector.multi_reduction <maximumf>, %348, %cst_110 [1] : vector<64x8xf32> to vector<64xf32>
    %350 = vector.shape_cast %349 : vector<64xf32> to vector<64x1xf32>
    %351 = vector.broadcast %350 : vector<64x1xf32> to vector<64x8xf32>
    %352 = arith.subf %348, %351 : vector<64x8xf32>
    %353 = math.exp %352 : vector<64x8xf32>
    %cst_111 = arith.constant dense<0.000000e+00> : vector<64xf32>
    %354 = vector.multi_reduction <add>, %353, %cst_111 [1] : vector<64x8xf32> to vector<64xf32>
    %355 = vector.shape_cast %354 : vector<64xf32> to vector<64x1xf32>
    %356 = vector.broadcast %355 : vector<64x1xf32> to vector<64x8xf32>
    %357 = arith.divf %353, %356 : vector<64x8xf32>
    %358 = vector.extract_strided_slice %357 {offsets = [0, 0], sizes = [8, 8], strides = [1, 1]} : vector<64x8xf32> to vector<8x8xf32>
    %359 = vector.extract_strided_slice %358 {offsets = [0, 0], sizes = [8, 1], strides = [1, 1]} : vector<8x8xf32> to vector<8x1xf32>
    %360 = vector.broadcast %359 : vector<8x1xf32> to vector<8x32xf32>
    %361 = arith.mulf %360, %65 : vector<8x32xf32>
    %362 = vector.extract_strided_slice %358 {offsets = [0, 1], sizes = [8, 1], strides = [1, 1]} : vector<8x8xf32> to vector<8x1xf32>
    %363 = vector.broadcast %362 : vector<8x1xf32> to vector<8x32xf32>
    %364 = arith.mulf %363, %103 : vector<8x32xf32>
    %365 = arith.addf %361, %364 : vector<8x32xf32>
    %366 = vector.extract_strided_slice %358 {offsets = [0, 2], sizes = [8, 1], strides = [1, 1]} : vector<8x8xf32> to vector<8x1xf32>
    %367 = vector.broadcast %366 : vector<8x1xf32> to vector<8x32xf32>
    %368 = arith.mulf %367, %141 : vector<8x32xf32>
    %369 = arith.addf %365, %368 : vector<8x32xf32>
    %370 = vector.extract_strided_slice %358 {offsets = [0, 3], sizes = [8, 1], strides = [1, 1]} : vector<8x8xf32> to vector<8x1xf32>
    %371 = vector.broadcast %370 : vector<8x1xf32> to vector<8x32xf32>
    %372 = arith.mulf %371, %179 : vector<8x32xf32>
    %373 = arith.addf %369, %372 : vector<8x32xf32>
    %374 = vector.extract_strided_slice %358 {offsets = [0, 4], sizes = [8, 1], strides = [1, 1]} : vector<8x8xf32> to vector<8x1xf32>
    %375 = vector.broadcast %374 : vector<8x1xf32> to vector<8x32xf32>
    %376 = arith.mulf %375, %217 : vector<8x32xf32>
    %377 = arith.addf %373, %376 : vector<8x32xf32>
    %378 = vector.extract_strided_slice %358 {offsets = [0, 5], sizes = [8, 1], strides = [1, 1]} : vector<8x8xf32> to vector<8x1xf32>
    %379 = vector.broadcast %378 : vector<8x1xf32> to vector<8x32xf32>
    %380 = arith.mulf %379, %255 : vector<8x32xf32>
    %381 = arith.addf %377, %380 : vector<8x32xf32>
    %382 = vector.extract_strided_slice %358 {offsets = [0, 6], sizes = [8, 1], strides = [1, 1]} : vector<8x8xf32> to vector<8x1xf32>
    %383 = vector.broadcast %382 : vector<8x1xf32> to vector<8x32xf32>
    %384 = arith.mulf %383, %293 : vector<8x32xf32>
    %385 = arith.addf %381, %384 : vector<8x32xf32>
    %386 = vector.extract_strided_slice %358 {offsets = [0, 7], sizes = [8, 1], strides = [1, 1]} : vector<8x8xf32> to vector<8x1xf32>
    %387 = vector.broadcast %386 : vector<8x1xf32> to vector<8x32xf32>
    %388 = arith.mulf %387, %331 : vector<8x32xf32>
    %389 = arith.addf %385, %388 : vector<8x32xf32>
    %390 = vector.extract_strided_slice %357 {offsets = [8, 0], sizes = [8, 8], strides = [1, 1]} : vector<64x8xf32> to vector<8x8xf32>
    %391 = vector.extract_strided_slice %390 {offsets = [0, 0], sizes = [8, 1], strides = [1, 1]} : vector<8x8xf32> to vector<8x1xf32>
    %392 = vector.broadcast %391 : vector<8x1xf32> to vector<8x32xf32>
    %393 = arith.mulf %392, %65 : vector<8x32xf32>
    %394 = vector.extract_strided_slice %390 {offsets = [0, 1], sizes = [8, 1], strides = [1, 1]} : vector<8x8xf32> to vector<8x1xf32>
    %395 = vector.broadcast %394 : vector<8x1xf32> to vector<8x32xf32>
    %396 = arith.mulf %395, %103 : vector<8x32xf32>
    %397 = arith.addf %393, %396 : vector<8x32xf32>
    %398 = vector.extract_strided_slice %390 {offsets = [0, 2], sizes = [8, 1], strides = [1, 1]} : vector<8x8xf32> to vector<8x1xf32>
    %399 = vector.broadcast %398 : vector<8x1xf32> to vector<8x32xf32>
    %400 = arith.mulf %399, %141 : vector<8x32xf32>
    %401 = arith.addf %397, %400 : vector<8x32xf32>
    %402 = vector.extract_strided_slice %390 {offsets = [0, 3], sizes = [8, 1], strides = [1, 1]} : vector<8x8xf32> to vector<8x1xf32>
    %403 = vector.broadcast %402 : vector<8x1xf32> to vector<8x32xf32>
    %404 = arith.mulf %403, %179 : vector<8x32xf32>
    %405 = arith.addf %401, %404 : vector<8x32xf32>
    %406 = vector.extract_strided_slice %390 {offsets = [0, 4], sizes = [8, 1], strides = [1, 1]} : vector<8x8xf32> to vector<8x1xf32>
    %407 = vector.broadcast %406 : vector<8x1xf32> to vector<8x32xf32>
    %408 = arith.mulf %407, %217 : vector<8x32xf32>
    %409 = arith.addf %405, %408 : vector<8x32xf32>
    %410 = vector.extract_strided_slice %390 {offsets = [0, 5], sizes = [8, 1], strides = [1, 1]} : vector<8x8xf32> to vector<8x1xf32>
    %411 = vector.broadcast %410 : vector<8x1xf32> to vector<8x32xf32>
    %412 = arith.mulf %411, %255 : vector<8x32xf32>
    %413 = arith.addf %409, %412 : vector<8x32xf32>
    %414 = vector.extract_strided_slice %390 {offsets = [0, 6], sizes = [8, 1], strides = [1, 1]} : vector<8x8xf32> to vector<8x1xf32>
    %415 = vector.broadcast %414 : vector<8x1xf32> to vector<8x32xf32>
    %416 = arith.mulf %415, %293 : vector<8x32xf32>
    %417 = arith.addf %413, %416 : vector<8x32xf32>
    %418 = vector.extract_strided_slice %390 {offsets = [0, 7], sizes = [8, 1], strides = [1, 1]} : vector<8x8xf32> to vector<8x1xf32>
    %419 = vector.broadcast %418 : vector<8x1xf32> to vector<8x32xf32>
    %420 = arith.mulf %419, %331 : vector<8x32xf32>
    %421 = arith.addf %417, %420 : vector<8x32xf32>
    %422 = vector.extract_strided_slice %357 {offsets = [16, 0], sizes = [8, 8], strides = [1, 1]} : vector<64x8xf32> to vector<8x8xf32>
    %423 = vector.extract_strided_slice %422 {offsets = [0, 0], sizes = [8, 1], strides = [1, 1]} : vector<8x8xf32> to vector<8x1xf32>
    %424 = vector.broadcast %423 : vector<8x1xf32> to vector<8x32xf32>
    %425 = arith.mulf %424, %65 : vector<8x32xf32>
    %426 = vector.extract_strided_slice %422 {offsets = [0, 1], sizes = [8, 1], strides = [1, 1]} : vector<8x8xf32> to vector<8x1xf32>
    %427 = vector.broadcast %426 : vector<8x1xf32> to vector<8x32xf32>
    %428 = arith.mulf %427, %103 : vector<8x32xf32>
    %429 = arith.addf %425, %428 : vector<8x32xf32>
    %430 = vector.extract_strided_slice %422 {offsets = [0, 2], sizes = [8, 1], strides = [1, 1]} : vector<8x8xf32> to vector<8x1xf32>
    %431 = vector.broadcast %430 : vector<8x1xf32> to vector<8x32xf32>
    %432 = arith.mulf %431, %141 : vector<8x32xf32>
    %433 = arith.addf %429, %432 : vector<8x32xf32>
    %434 = vector.extract_strided_slice %422 {offsets = [0, 3], sizes = [8, 1], strides = [1, 1]} : vector<8x8xf32> to vector<8x1xf32>
    %435 = vector.broadcast %434 : vector<8x1xf32> to vector<8x32xf32>
    %436 = arith.mulf %435, %179 : vector<8x32xf32>
    %437 = arith.addf %433, %436 : vector<8x32xf32>
    %438 = vector.extract_strided_slice %422 {offsets = [0, 4], sizes = [8, 1], strides = [1, 1]} : vector<8x8xf32> to vector<8x1xf32>
    %439 = vector.broadcast %438 : vector<8x1xf32> to vector<8x32xf32>
    %440 = arith.mulf %439, %217 : vector<8x32xf32>
    %441 = arith.addf %437, %440 : vector<8x32xf32>
    %442 = vector.extract_strided_slice %422 {offsets = [0, 5], sizes = [8, 1], strides = [1, 1]} : vector<8x8xf32> to vector<8x1xf32>
    %443 = vector.broadcast %442 : vector<8x1xf32> to vector<8x32xf32>
    %444 = arith.mulf %443, %255 : vector<8x32xf32>
    %445 = arith.addf %441, %444 : vector<8x32xf32>
    %446 = vector.extract_strided_slice %422 {offsets = [0, 6], sizes = [8, 1], strides = [1, 1]} : vector<8x8xf32> to vector<8x1xf32>
    %447 = vector.broadcast %446 : vector<8x1xf32> to vector<8x32xf32>
    %448 = arith.mulf %447, %293 : vector<8x32xf32>
    %449 = arith.addf %445, %448 : vector<8x32xf32>
    %450 = vector.extract_strided_slice %422 {offsets = [0, 7], sizes = [8, 1], strides = [1, 1]} : vector<8x8xf32> to vector<8x1xf32>
    %451 = vector.broadcast %450 : vector<8x1xf32> to vector<8x32xf32>
    %452 = arith.mulf %451, %331 : vector<8x32xf32>
    %453 = arith.addf %449, %452 : vector<8x32xf32>
    %454 = vector.extract_strided_slice %357 {offsets = [24, 0], sizes = [8, 8], strides = [1, 1]} : vector<64x8xf32> to vector<8x8xf32>
    %455 = vector.extract_strided_slice %454 {offsets = [0, 0], sizes = [8, 1], strides = [1, 1]} : vector<8x8xf32> to vector<8x1xf32>
    %456 = vector.broadcast %455 : vector<8x1xf32> to vector<8x32xf32>
    %457 = arith.mulf %456, %65 : vector<8x32xf32>
    %458 = vector.extract_strided_slice %454 {offsets = [0, 1], sizes = [8, 1], strides = [1, 1]} : vector<8x8xf32> to vector<8x1xf32>
    %459 = vector.broadcast %458 : vector<8x1xf32> to vector<8x32xf32>
    %460 = arith.mulf %459, %103 : vector<8x32xf32>
    %461 = arith.addf %457, %460 : vector<8x32xf32>
    %462 = vector.extract_strided_slice %454 {offsets = [0, 2], sizes = [8, 1], strides = [1, 1]} : vector<8x8xf32> to vector<8x1xf32>
    %463 = vector.broadcast %462 : vector<8x1xf32> to vector<8x32xf32>
    %464 = arith.mulf %463, %141 : vector<8x32xf32>
    %465 = arith.addf %461, %464 : vector<8x32xf32>
    %466 = vector.extract_strided_slice %454 {offsets = [0, 3], sizes = [8, 1], strides = [1, 1]} : vector<8x8xf32> to vector<8x1xf32>
    %467 = vector.broadcast %466 : vector<8x1xf32> to vector<8x32xf32>
    %468 = arith.mulf %467, %179 : vector<8x32xf32>
    %469 = arith.addf %465, %468 : vector<8x32xf32>
    %470 = vector.extract_strided_slice %454 {offsets = [0, 4], sizes = [8, 1], strides = [1, 1]} : vector<8x8xf32> to vector<8x1xf32>
    %471 = vector.broadcast %470 : vector<8x1xf32> to vector<8x32xf32>
    %472 = arith.mulf %471, %217 : vector<8x32xf32>
    %473 = arith.addf %469, %472 : vector<8x32xf32>
    %474 = vector.extract_strided_slice %454 {offsets = [0, 5], sizes = [8, 1], strides = [1, 1]} : vector<8x8xf32> to vector<8x1xf32>
    %475 = vector.broadcast %474 : vector<8x1xf32> to vector<8x32xf32>
    %476 = arith.mulf %475, %255 : vector<8x32xf32>
    %477 = arith.addf %473, %476 : vector<8x32xf32>
    %478 = vector.extract_strided_slice %454 {offsets = [0, 6], sizes = [8, 1], strides = [1, 1]} : vector<8x8xf32> to vector<8x1xf32>
    %479 = vector.broadcast %478 : vector<8x1xf32> to vector<8x32xf32>
    %480 = arith.mulf %479, %293 : vector<8x32xf32>
    %481 = arith.addf %477, %480 : vector<8x32xf32>
    %482 = vector.extract_strided_slice %454 {offsets = [0, 7], sizes = [8, 1], strides = [1, 1]} : vector<8x8xf32> to vector<8x1xf32>
    %483 = vector.broadcast %482 : vector<8x1xf32> to vector<8x32xf32>
    %484 = arith.mulf %483, %331 : vector<8x32xf32>
    %485 = arith.addf %481, %484 : vector<8x32xf32>
    %486 = vector.extract_strided_slice %357 {offsets = [32, 0], sizes = [8, 8], strides = [1, 1]} : vector<64x8xf32> to vector<8x8xf32>
    %487 = vector.extract_strided_slice %486 {offsets = [0, 0], sizes = [8, 1], strides = [1, 1]} : vector<8x8xf32> to vector<8x1xf32>
    %488 = vector.broadcast %487 : vector<8x1xf32> to vector<8x32xf32>
    %489 = arith.mulf %488, %65 : vector<8x32xf32>
    %490 = vector.extract_strided_slice %486 {offsets = [0, 1], sizes = [8, 1], strides = [1, 1]} : vector<8x8xf32> to vector<8x1xf32>
    %491 = vector.broadcast %490 : vector<8x1xf32> to vector<8x32xf32>
    %492 = arith.mulf %491, %103 : vector<8x32xf32>
    %493 = arith.addf %489, %492 : vector<8x32xf32>
    %494 = vector.extract_strided_slice %486 {offsets = [0, 2], sizes = [8, 1], strides = [1, 1]} : vector<8x8xf32> to vector<8x1xf32>
    %495 = vector.broadcast %494 : vector<8x1xf32> to vector<8x32xf32>
    %496 = arith.mulf %495, %141 : vector<8x32xf32>
    %497 = arith.addf %493, %496 : vector<8x32xf32>
    %498 = vector.extract_strided_slice %486 {offsets = [0, 3], sizes = [8, 1], strides = [1, 1]} : vector<8x8xf32> to vector<8x1xf32>
    %499 = vector.broadcast %498 : vector<8x1xf32> to vector<8x32xf32>
    %500 = arith.mulf %499, %179 : vector<8x32xf32>
    %501 = arith.addf %497, %500 : vector<8x32xf32>
    %502 = vector.extract_strided_slice %486 {offsets = [0, 4], sizes = [8, 1], strides = [1, 1]} : vector<8x8xf32> to vector<8x1xf32>
    %503 = vector.broadcast %502 : vector<8x1xf32> to vector<8x32xf32>
    %504 = arith.mulf %503, %217 : vector<8x32xf32>
    %505 = arith.addf %501, %504 : vector<8x32xf32>
    %506 = vector.extract_strided_slice %486 {offsets = [0, 5], sizes = [8, 1], strides = [1, 1]} : vector<8x8xf32> to vector<8x1xf32>
    %507 = vector.broadcast %506 : vector<8x1xf32> to vector<8x32xf32>
    %508 = arith.mulf %507, %255 : vector<8x32xf32>
    %509 = arith.addf %505, %508 : vector<8x32xf32>
    %510 = vector.extract_strided_slice %486 {offsets = [0, 6], sizes = [8, 1], strides = [1, 1]} : vector<8x8xf32> to vector<8x1xf32>
    %511 = vector.broadcast %510 : vector<8x1xf32> to vector<8x32xf32>
    %512 = arith.mulf %511, %293 : vector<8x32xf32>
    %513 = arith.addf %509, %512 : vector<8x32xf32>
    %514 = vector.extract_strided_slice %486 {offsets = [0, 7], sizes = [8, 1], strides = [1, 1]} : vector<8x8xf32> to vector<8x1xf32>
    %515 = vector.broadcast %514 : vector<8x1xf32> to vector<8x32xf32>
    %516 = arith.mulf %515, %331 : vector<8x32xf32>
    %517 = arith.addf %513, %516 : vector<8x32xf32>
    %518 = vector.extract_strided_slice %357 {offsets = [40, 0], sizes = [8, 8], strides = [1, 1]} : vector<64x8xf32> to vector<8x8xf32>
    %519 = vector.extract_strided_slice %518 {offsets = [0, 0], sizes = [8, 1], strides = [1, 1]} : vector<8x8xf32> to vector<8x1xf32>
    %520 = vector.broadcast %519 : vector<8x1xf32> to vector<8x32xf32>
    %521 = arith.mulf %520, %65 : vector<8x32xf32>
    %522 = vector.extract_strided_slice %518 {offsets = [0, 1], sizes = [8, 1], strides = [1, 1]} : vector<8x8xf32> to vector<8x1xf32>
    %523 = vector.broadcast %522 : vector<8x1xf32> to vector<8x32xf32>
    %524 = arith.mulf %523, %103 : vector<8x32xf32>
    %525 = arith.addf %521, %524 : vector<8x32xf32>
    %526 = vector.extract_strided_slice %518 {offsets = [0, 2], sizes = [8, 1], strides = [1, 1]} : vector<8x8xf32> to vector<8x1xf32>
    %527 = vector.broadcast %526 : vector<8x1xf32> to vector<8x32xf32>
    %528 = arith.mulf %527, %141 : vector<8x32xf32>
    %529 = arith.addf %525, %528 : vector<8x32xf32>
    %530 = vector.extract_strided_slice %518 {offsets = [0, 3], sizes = [8, 1], strides = [1, 1]} : vector<8x8xf32> to vector<8x1xf32>
    %531 = vector.broadcast %530 : vector<8x1xf32> to vector<8x32xf32>
    %532 = arith.mulf %531, %179 : vector<8x32xf32>
    %533 = arith.addf %529, %532 : vector<8x32xf32>
    %534 = vector.extract_strided_slice %518 {offsets = [0, 4], sizes = [8, 1], strides = [1, 1]} : vector<8x8xf32> to vector<8x1xf32>
    %535 = vector.broadcast %534 : vector<8x1xf32> to vector<8x32xf32>
    %536 = arith.mulf %535, %217 : vector<8x32xf32>
    %537 = arith.addf %533, %536 : vector<8x32xf32>
    %538 = vector.extract_strided_slice %518 {offsets = [0, 5], sizes = [8, 1], strides = [1, 1]} : vector<8x8xf32> to vector<8x1xf32>
    %539 = vector.broadcast %538 : vector<8x1xf32> to vector<8x32xf32>
    %540 = arith.mulf %539, %255 : vector<8x32xf32>
    %541 = arith.addf %537, %540 : vector<8x32xf32>
    %542 = vector.extract_strided_slice %518 {offsets = [0, 6], sizes = [8, 1], strides = [1, 1]} : vector<8x8xf32> to vector<8x1xf32>
    %543 = vector.broadcast %542 : vector<8x1xf32> to vector<8x32xf32>
    %544 = arith.mulf %543, %293 : vector<8x32xf32>
    %545 = arith.addf %541, %544 : vector<8x32xf32>
    %546 = vector.extract_strided_slice %518 {offsets = [0, 7], sizes = [8, 1], strides = [1, 1]} : vector<8x8xf32> to vector<8x1xf32>
    %547 = vector.broadcast %546 : vector<8x1xf32> to vector<8x32xf32>
    %548 = arith.mulf %547, %331 : vector<8x32xf32>
    %549 = arith.addf %545, %548 : vector<8x32xf32>
    %550 = vector.extract_strided_slice %357 {offsets = [48, 0], sizes = [8, 8], strides = [1, 1]} : vector<64x8xf32> to vector<8x8xf32>
    %551 = vector.extract_strided_slice %550 {offsets = [0, 0], sizes = [8, 1], strides = [1, 1]} : vector<8x8xf32> to vector<8x1xf32>
    %552 = vector.broadcast %551 : vector<8x1xf32> to vector<8x32xf32>
    %553 = arith.mulf %552, %65 : vector<8x32xf32>
    %554 = vector.extract_strided_slice %550 {offsets = [0, 1], sizes = [8, 1], strides = [1, 1]} : vector<8x8xf32> to vector<8x1xf32>
    %555 = vector.broadcast %554 : vector<8x1xf32> to vector<8x32xf32>
    %556 = arith.mulf %555, %103 : vector<8x32xf32>
    %557 = arith.addf %553, %556 : vector<8x32xf32>
    %558 = vector.extract_strided_slice %550 {offsets = [0, 2], sizes = [8, 1], strides = [1, 1]} : vector<8x8xf32> to vector<8x1xf32>
    %559 = vector.broadcast %558 : vector<8x1xf32> to vector<8x32xf32>
    %560 = arith.mulf %559, %141 : vector<8x32xf32>
    %561 = arith.addf %557, %560 : vector<8x32xf32>
    %562 = vector.extract_strided_slice %550 {offsets = [0, 3], sizes = [8, 1], strides = [1, 1]} : vector<8x8xf32> to vector<8x1xf32>
    %563 = vector.broadcast %562 : vector<8x1xf32> to vector<8x32xf32>
    %564 = arith.mulf %563, %179 : vector<8x32xf32>
    %565 = arith.addf %561, %564 : vector<8x32xf32>
    %566 = vector.extract_strided_slice %550 {offsets = [0, 4], sizes = [8, 1], strides = [1, 1]} : vector<8x8xf32> to vector<8x1xf32>
    %567 = vector.broadcast %566 : vector<8x1xf32> to vector<8x32xf32>
    %568 = arith.mulf %567, %217 : vector<8x32xf32>
    %569 = arith.addf %565, %568 : vector<8x32xf32>
    %570 = vector.extract_strided_slice %550 {offsets = [0, 5], sizes = [8, 1], strides = [1, 1]} : vector<8x8xf32> to vector<8x1xf32>
    %571 = vector.broadcast %570 : vector<8x1xf32> to vector<8x32xf32>
    %572 = arith.mulf %571, %255 : vector<8x32xf32>
    %573 = arith.addf %569, %572 : vector<8x32xf32>
    %574 = vector.extract_strided_slice %550 {offsets = [0, 6], sizes = [8, 1], strides = [1, 1]} : vector<8x8xf32> to vector<8x1xf32>
    %575 = vector.broadcast %574 : vector<8x1xf32> to vector<8x32xf32>
    %576 = arith.mulf %575, %293 : vector<8x32xf32>
    %577 = arith.addf %573, %576 : vector<8x32xf32>
    %578 = vector.extract_strided_slice %550 {offsets = [0, 7], sizes = [8, 1], strides = [1, 1]} : vector<8x8xf32> to vector<8x1xf32>
    %579 = vector.broadcast %578 : vector<8x1xf32> to vector<8x32xf32>
    %580 = arith.mulf %579, %331 : vector<8x32xf32>
    %581 = arith.addf %577, %580 : vector<8x32xf32>
    %582 = vector.extract_strided_slice %357 {offsets = [56, 0], sizes = [8, 8], strides = [1, 1]} : vector<64x8xf32> to vector<8x8xf32>
    %583 = vector.extract_strided_slice %582 {offsets = [0, 0], sizes = [8, 1], strides = [1, 1]} : vector<8x8xf32> to vector<8x1xf32>
    %584 = vector.broadcast %583 : vector<8x1xf32> to vector<8x32xf32>
    %585 = arith.mulf %584, %65 : vector<8x32xf32>
    %586 = vector.extract_strided_slice %582 {offsets = [0, 1], sizes = [8, 1], strides = [1, 1]} : vector<8x8xf32> to vector<8x1xf32>
    %587 = vector.broadcast %586 : vector<8x1xf32> to vector<8x32xf32>
    %588 = arith.mulf %587, %103 : vector<8x32xf32>
    %589 = arith.addf %585, %588 : vector<8x32xf32>
    %590 = vector.extract_strided_slice %582 {offsets = [0, 2], sizes = [8, 1], strides = [1, 1]} : vector<8x8xf32> to vector<8x1xf32>
    %591 = vector.broadcast %590 : vector<8x1xf32> to vector<8x32xf32>
    %592 = arith.mulf %591, %141 : vector<8x32xf32>
    %593 = arith.addf %589, %592 : vector<8x32xf32>
    %594 = vector.extract_strided_slice %582 {offsets = [0, 3], sizes = [8, 1], strides = [1, 1]} : vector<8x8xf32> to vector<8x1xf32>
    %595 = vector.broadcast %594 : vector<8x1xf32> to vector<8x32xf32>
    %596 = arith.mulf %595, %179 : vector<8x32xf32>
    %597 = arith.addf %593, %596 : vector<8x32xf32>
    %598 = vector.extract_strided_slice %582 {offsets = [0, 4], sizes = [8, 1], strides = [1, 1]} : vector<8x8xf32> to vector<8x1xf32>
    %599 = vector.broadcast %598 : vector<8x1xf32> to vector<8x32xf32>
    %600 = arith.mulf %599, %217 : vector<8x32xf32>
    %601 = arith.addf %597, %600 : vector<8x32xf32>
    %602 = vector.extract_strided_slice %582 {offsets = [0, 5], sizes = [8, 1], strides = [1, 1]} : vector<8x8xf32> to vector<8x1xf32>
    %603 = vector.broadcast %602 : vector<8x1xf32> to vector<8x32xf32>
    %604 = arith.mulf %603, %255 : vector<8x32xf32>
    %605 = arith.addf %601, %604 : vector<8x32xf32>
    %606 = vector.extract_strided_slice %582 {offsets = [0, 6], sizes = [8, 1], strides = [1, 1]} : vector<8x8xf32> to vector<8x1xf32>
    %607 = vector.broadcast %606 : vector<8x1xf32> to vector<8x32xf32>
    %608 = arith.mulf %607, %293 : vector<8x32xf32>
    %609 = arith.addf %605, %608 : vector<8x32xf32>
    %610 = vector.extract_strided_slice %582 {offsets = [0, 7], sizes = [8, 1], strides = [1, 1]} : vector<8x8xf32> to vector<8x1xf32>
    %611 = vector.broadcast %610 : vector<8x1xf32> to vector<8x32xf32>
    %612 = arith.mulf %611, %331 : vector<8x32xf32>
    %613 = arith.addf %609, %612 : vector<8x32xf32>
    %614 = tpu.concatenate %358, %390, %422, %454, %486, %518, %550, %582 in 1 : vector<8x8xf32>, vector<8x8xf32>, vector<8x8xf32>, vector<8x8xf32>, vector<8x8xf32>, vector<8x8xf32>, vector<8x8xf32>, vector<8x8xf32> -> vector<8x64xf32>
    %cst_112 = arith.constant 0.000000e+00 : f32
    %615 = vector.broadcast %cst_112 : f32 to vector<8x64xf32>
    %616 = tpu.concatenate %614, %615 in 1 : vector<8x64xf32>, vector<8x64xf32> -> vector<8x128xf32>
    %c0_113 = arith.constant 0 : index
    %c0_114 = arith.constant 0 : index
    %617 = vector.load %arg6[%c0_113, %c0_114] : memref<8x128xf32, #tpu.memory_space<vmem>>, vector<8x128xf32>
    tpu.vector_store %arg6[%c0_113, %c0_114], %616 {strides = array<i32>} : memref<8x128xf32, #tpu.memory_space<vmem>>, vector<8x128xf32>,
    %618 = tpu.concatenate %389, %421, %453, %485, %517, %549, %581, %613 in 0 : vector<8x32xf32>, vector<8x32xf32>, vector<8x32xf32>, vector<8x32xf32>, vector<8x32xf32>, vector<8x32xf32>, vector<8x32xf32>, vector<8x32xf32> -> vector<64x32xf32>
    %cst_115 = arith.constant dense<0.000000e+00> : vector<64x128xf32>
    %619 = tpu.matmul %618, %337, %cst_115 {dimension_numbers = #tpu.dot_dimension_numbers<[1], [0], [0], [1], [0, 0, 1, 1], [], []>} : vector<64x32xf32>, vector<32x128xf32>, vector<64x128xf32> -> vector<64x128xf32>
    %620 = vector.broadcast %340 : vector<1x128xf32> to vector<64x128xf32>
    %621 = arith.addf %619, %620 : vector<64x128xf32>
    %cst_116 = arith.constant 0.000000e+00 : f32
    %622 = vector.broadcast %cst_116 : f32 to vector<8x32xf32>
    %cst_117 = arith.constant 0.000000e+00 : f32
    %623 = vector.broadcast %cst_117 : f32 to vector<8x32xf32>
    %c0_118 = arith.constant 0 : index
    %c0_119 = arith.constant 0 : index
    %624 = vector.load %arg2[%c0_118, %c0_119] : memref<8x1xf32, #tpu.memory_space<vmem>>, vector<8x1xf32>
    %625 = vector.extract_strided_slice %621 {offsets = [0, 0], sizes = [8, 128], strides = [1, 1]} : vector<64x128xf32> to vector<8x128xf32>
    %cst_120 = arith.constant dense<0.000000e+00> : vector<8x128xf32>
    %626 = tpu.matmul %622, %338, %cst_120 {dimension_numbers = #tpu.dot_dimension_numbers<[1], [0], [0], [1], [0, 0, 1, 1], [], []>} : vector<8x32xf32>, vector<32x128xf32>, vector<8x128xf32> -> vector<8x128xf32>
    %627 = arith.addf %625, %626 : vector<8x128xf32>
    %628 = vector.broadcast %624 : vector<8x1xf32> to vector<8x128xf32>
    %629 = vector.broadcast %339 : vector<1x128xf32> to vector<8x128xf32>
    %630 = arith.mulf %628, %629 : vector<8x128xf32>
    %631 = arith.addf %627, %630 : vector<8x128xf32>
    %632 = vector.extract_strided_slice %631 {offsets = [0, 0], sizes = [8, 96], strides = [1, 1]} : vector<8x128xf32> to vector<8x96xf32>
    %633 = arith.negf %632 : vector<8x96xf32>
    %634 = math.exp %633 : vector<8x96xf32>
    %cst_121 = arith.constant 1.000000e+00 : f32
    %635 = vector.broadcast %cst_121 : f32 to vector<8x96xf32>
    %636 = arith.addf %635, %634 : vector<8x96xf32>
    %637 = arith.divf %635, %636 : vector<8x96xf32>
    %638 = vector.extract_strided_slice %631 {offsets = [0, 96], sizes = [8, 32], strides = [1, 1]} : vector<8x128xf32> to vector<8x32xf32>
    %639 = math.tanh %638 : vector<8x32xf32>
    %640 = vector.extract_strided_slice %637 {offsets = [0, 0], sizes = [8, 32], strides = [1, 1]} : vector<8x96xf32> to vector<8x32xf32>
    %641 = vector.extract_strided_slice %637 {offsets = [0, 32], sizes = [8, 32], strides = [1, 1]} : vector<8x96xf32> to vector<8x32xf32>
    %642 = vector.extract_strided_slice %637 {offsets = [0, 64], sizes = [8, 32], strides = [1, 1]} : vector<8x96xf32> to vector<8x32xf32>
    %643 = arith.mulf %641, %623 : vector<8x32xf32>
    %644 = arith.mulf %640, %639 : vector<8x32xf32>
    %645 = arith.addf %643, %644 : vector<8x32xf32>
    %646 = math.tanh %645 : vector<8x32xf32>
    %647 = arith.mulf %642, %646 : vector<8x32xf32>
    %648 = vector.broadcast %341 : vector<1x32xf32> to vector<8x32xf32>
    %649 = arith.mulf %647, %648 : vector<8x32xf32>
    %cst_122 = arith.constant dense<0.000000e+00> : vector<8xf32>
    %650 = vector.multi_reduction <add>, %649, %cst_122 [1] : vector<8x32xf32> to vector<8xf32>
    %651 = vector.shape_cast %650 : vector<8xf32> to vector<8x1xf32>
    %652 = vector.broadcast %342 : vector<1x1xf32> to vector<8x1xf32>
    %653 = arith.addf %651, %652 : vector<8x1xf32>
    %654 = vector.extract_strided_slice %621 {offsets = [8, 0], sizes = [8, 128], strides = [1, 1]} : vector<64x128xf32> to vector<8x128xf32>
    %cst_123 = arith.constant dense<0.000000e+00> : vector<8x128xf32>
    %655 = tpu.matmul %647, %338, %cst_123 {dimension_numbers = #tpu.dot_dimension_numbers<[1], [0], [0], [1], [0, 0, 1, 1], [], []>} : vector<8x32xf32>, vector<32x128xf32>, vector<8x128xf32> -> vector<8x128xf32>
    %656 = arith.addf %654, %655 : vector<8x128xf32>
    %657 = vector.broadcast %653 : vector<8x1xf32> to vector<8x128xf32>
    %658 = vector.broadcast %339 : vector<1x128xf32> to vector<8x128xf32>
    %659 = arith.mulf %657, %658 : vector<8x128xf32>
    %660 = arith.addf %656, %659 : vector<8x128xf32>
    %661 = vector.extract_strided_slice %660 {offsets = [0, 0], sizes = [8, 96], strides = [1, 1]} : vector<8x128xf32> to vector<8x96xf32>
    %662 = arith.negf %661 : vector<8x96xf32>
    %663 = math.exp %662 : vector<8x96xf32>
    %cst_124 = arith.constant 1.000000e+00 : f32
    %664 = vector.broadcast %cst_124 : f32 to vector<8x96xf32>
    %665 = arith.addf %664, %663 : vector<8x96xf32>
    %666 = arith.divf %664, %665 : vector<8x96xf32>
    %667 = vector.extract_strided_slice %660 {offsets = [0, 96], sizes = [8, 32], strides = [1, 1]} : vector<8x128xf32> to vector<8x32xf32>
    %668 = math.tanh %667 : vector<8x32xf32>
    %669 = vector.extract_strided_slice %666 {offsets = [0, 0], sizes = [8, 32], strides = [1, 1]} : vector<8x96xf32> to vector<8x32xf32>
    %670 = vector.extract_strided_slice %666 {offsets = [0, 32], sizes = [8, 32], strides = [1, 1]} : vector<8x96xf32> to vector<8x32xf32>
    %671 = vector.extract_strided_slice %666 {offsets = [0, 64], sizes = [8, 32], strides = [1, 1]} : vector<8x96xf32> to vector<8x32xf32>
    %672 = arith.mulf %670, %645 : vector<8x32xf32>
    %673 = arith.mulf %669, %668 : vector<8x32xf32>
    %674 = arith.addf %672, %673 : vector<8x32xf32>
    %675 = math.tanh %674 : vector<8x32xf32>
    %676 = arith.mulf %671, %675 : vector<8x32xf32>
    %677 = vector.broadcast %341 : vector<1x32xf32> to vector<8x32xf32>
    %678 = arith.mulf %676, %677 : vector<8x32xf32>
    %cst_125 = arith.constant dense<0.000000e+00> : vector<8xf32>
    %679 = vector.multi_reduction <add>, %678, %cst_125 [1] : vector<8x32xf32> to vector<8xf32>
    %680 = vector.shape_cast %679 : vector<8xf32> to vector<8x1xf32>
    %681 = vector.broadcast %342 : vector<1x1xf32> to vector<8x1xf32>
    %682 = arith.addf %680, %681 : vector<8x1xf32>
    %683 = vector.extract_strided_slice %621 {offsets = [16, 0], sizes = [8, 128], strides = [1, 1]} : vector<64x128xf32> to vector<8x128xf32>
    %cst_126 = arith.constant dense<0.000000e+00> : vector<8x128xf32>
    %684 = tpu.matmul %676, %338, %cst_126 {dimension_numbers = #tpu.dot_dimension_numbers<[1], [0], [0], [1], [0, 0, 1, 1], [], []>} : vector<8x32xf32>, vector<32x128xf32>, vector<8x128xf32> -> vector<8x128xf32>
    %685 = arith.addf %683, %684 : vector<8x128xf32>
    %686 = vector.broadcast %682 : vector<8x1xf32> to vector<8x128xf32>
    %687 = vector.broadcast %339 : vector<1x128xf32> to vector<8x128xf32>
    %688 = arith.mulf %686, %687 : vector<8x128xf32>
    %689 = arith.addf %685, %688 : vector<8x128xf32>
    %690 = vector.extract_strided_slice %689 {offsets = [0, 0], sizes = [8, 96], strides = [1, 1]} : vector<8x128xf32> to vector<8x96xf32>
    %691 = arith.negf %690 : vector<8x96xf32>
    %692 = math.exp %691 : vector<8x96xf32>
    %cst_127 = arith.constant 1.000000e+00 : f32
    %693 = vector.broadcast %cst_127 : f32 to vector<8x96xf32>
    %694 = arith.addf %693, %692 : vector<8x96xf32>
    %695 = arith.divf %693, %694 : vector<8x96xf32>
    %696 = vector.extract_strided_slice %689 {offsets = [0, 96], sizes = [8, 32], strides = [1, 1]} : vector<8x128xf32> to vector<8x32xf32>
    %697 = math.tanh %696 : vector<8x32xf32>
    %698 = vector.extract_strided_slice %695 {offsets = [0, 0], sizes = [8, 32], strides = [1, 1]} : vector<8x96xf32> to vector<8x32xf32>
    %699 = vector.extract_strided_slice %695 {offsets = [0, 32], sizes = [8, 32], strides = [1, 1]} : vector<8x96xf32> to vector<8x32xf32>
    %700 = vector.extract_strided_slice %695 {offsets = [0, 64], sizes = [8, 32], strides = [1, 1]} : vector<8x96xf32> to vector<8x32xf32>
    %701 = arith.mulf %699, %674 : vector<8x32xf32>
    %702 = arith.mulf %698, %697 : vector<8x32xf32>
    %703 = arith.addf %701, %702 : vector<8x32xf32>
    %704 = math.tanh %703 : vector<8x32xf32>
    %705 = arith.mulf %700, %704 : vector<8x32xf32>
    %706 = vector.broadcast %341 : vector<1x32xf32> to vector<8x32xf32>
    %707 = arith.mulf %705, %706 : vector<8x32xf32>
    %cst_128 = arith.constant dense<0.000000e+00> : vector<8xf32>
    %708 = vector.multi_reduction <add>, %707, %cst_128 [1] : vector<8x32xf32> to vector<8xf32>
    %709 = vector.shape_cast %708 : vector<8xf32> to vector<8x1xf32>
    %710 = vector.broadcast %342 : vector<1x1xf32> to vector<8x1xf32>
    %711 = arith.addf %709, %710 : vector<8x1xf32>
    %712 = vector.extract_strided_slice %621 {offsets = [24, 0], sizes = [8, 128], strides = [1, 1]} : vector<64x128xf32> to vector<8x128xf32>
    %cst_129 = arith.constant dense<0.000000e+00> : vector<8x128xf32>
    %713 = tpu.matmul %705, %338, %cst_129 {dimension_numbers = #tpu.dot_dimension_numbers<[1], [0], [0], [1], [0, 0, 1, 1], [], []>} : vector<8x32xf32>, vector<32x128xf32>, vector<8x128xf32> -> vector<8x128xf32>
    %714 = arith.addf %712, %713 : vector<8x128xf32>
    %715 = vector.broadcast %711 : vector<8x1xf32> to vector<8x128xf32>
    %716 = vector.broadcast %339 : vector<1x128xf32> to vector<8x128xf32>
    %717 = arith.mulf %715, %716 : vector<8x128xf32>
    %718 = arith.addf %714, %717 : vector<8x128xf32>
    %719 = vector.extract_strided_slice %718 {offsets = [0, 0], sizes = [8, 96], strides = [1, 1]} : vector<8x128xf32> to vector<8x96xf32>
    %720 = arith.negf %719 : vector<8x96xf32>
    %721 = math.exp %720 : vector<8x96xf32>
    %cst_130 = arith.constant 1.000000e+00 : f32
    %722 = vector.broadcast %cst_130 : f32 to vector<8x96xf32>
    %723 = arith.addf %722, %721 : vector<8x96xf32>
    %724 = arith.divf %722, %723 : vector<8x96xf32>
    %725 = vector.extract_strided_slice %718 {offsets = [0, 96], sizes = [8, 32], strides = [1, 1]} : vector<8x128xf32> to vector<8x32xf32>
    %726 = math.tanh %725 : vector<8x32xf32>
    %727 = vector.extract_strided_slice %724 {offsets = [0, 0], sizes = [8, 32], strides = [1, 1]} : vector<8x96xf32> to vector<8x32xf32>
    %728 = vector.extract_strided_slice %724 {offsets = [0, 32], sizes = [8, 32], strides = [1, 1]} : vector<8x96xf32> to vector<8x32xf32>
    %729 = vector.extract_strided_slice %724 {offsets = [0, 64], sizes = [8, 32], strides = [1, 1]} : vector<8x96xf32> to vector<8x32xf32>
    %730 = arith.mulf %728, %703 : vector<8x32xf32>
    %731 = arith.mulf %727, %726 : vector<8x32xf32>
    %732 = arith.addf %730, %731 : vector<8x32xf32>
    %733 = math.tanh %732 : vector<8x32xf32>
    %734 = arith.mulf %729, %733 : vector<8x32xf32>
    %735 = vector.broadcast %341 : vector<1x32xf32> to vector<8x32xf32>
    %736 = arith.mulf %734, %735 : vector<8x32xf32>
    %cst_131 = arith.constant dense<0.000000e+00> : vector<8xf32>
    %737 = vector.multi_reduction <add>, %736, %cst_131 [1] : vector<8x32xf32> to vector<8xf32>
    %738 = vector.shape_cast %737 : vector<8xf32> to vector<8x1xf32>
    %739 = vector.broadcast %342 : vector<1x1xf32> to vector<8x1xf32>
    %740 = arith.addf %738, %739 : vector<8x1xf32>
    %741 = vector.extract_strided_slice %621 {offsets = [32, 0], sizes = [8, 128], strides = [1, 1]} : vector<64x128xf32> to vector<8x128xf32>
    %cst_132 = arith.constant dense<0.000000e+00> : vector<8x128xf32>
    %742 = tpu.matmul %734, %338, %cst_132 {dimension_numbers = #tpu.dot_dimension_numbers<[1], [0], [0], [1], [0, 0, 1, 1], [], []>} : vector<8x32xf32>, vector<32x128xf32>, vector<8x128xf32> -> vector<8x128xf32>
    %743 = arith.addf %741, %742 : vector<8x128xf32>
    %744 = vector.broadcast %740 : vector<8x1xf32> to vector<8x128xf32>
    %745 = vector.broadcast %339 : vector<1x128xf32> to vector<8x128xf32>
    %746 = arith.mulf %744, %745 : vector<8x128xf32>
    %747 = arith.addf %743, %746 : vector<8x128xf32>
    %748 = vector.extract_strided_slice %747 {offsets = [0, 0], sizes = [8, 96], strides = [1, 1]} : vector<8x128xf32> to vector<8x96xf32>
    %749 = arith.negf %748 : vector<8x96xf32>
    %750 = math.exp %749 : vector<8x96xf32>
    %cst_133 = arith.constant 1.000000e+00 : f32
    %751 = vector.broadcast %cst_133 : f32 to vector<8x96xf32>
    %752 = arith.addf %751, %750 : vector<8x96xf32>
    %753 = arith.divf %751, %752 : vector<8x96xf32>
    %754 = vector.extract_strided_slice %747 {offsets = [0, 96], sizes = [8, 32], strides = [1, 1]} : vector<8x128xf32> to vector<8x32xf32>
    %755 = math.tanh %754 : vector<8x32xf32>
    %756 = vector.extract_strided_slice %753 {offsets = [0, 0], sizes = [8, 32], strides = [1, 1]} : vector<8x96xf32> to vector<8x32xf32>
    %757 = vector.extract_strided_slice %753 {offsets = [0, 32], sizes = [8, 32], strides = [1, 1]} : vector<8x96xf32> to vector<8x32xf32>
    %758 = vector.extract_strided_slice %753 {offsets = [0, 64], sizes = [8, 32], strides = [1, 1]} : vector<8x96xf32> to vector<8x32xf32>
    %759 = arith.mulf %757, %732 : vector<8x32xf32>
    %760 = arith.mulf %756, %755 : vector<8x32xf32>
    %761 = arith.addf %759, %760 : vector<8x32xf32>
    %762 = math.tanh %761 : vector<8x32xf32>
    %763 = arith.mulf %758, %762 : vector<8x32xf32>
    %764 = vector.broadcast %341 : vector<1x32xf32> to vector<8x32xf32>
    %765 = arith.mulf %763, %764 : vector<8x32xf32>
    %cst_134 = arith.constant dense<0.000000e+00> : vector<8xf32>
    %766 = vector.multi_reduction <add>, %765, %cst_134 [1] : vector<8x32xf32> to vector<8xf32>
    %767 = vector.shape_cast %766 : vector<8xf32> to vector<8x1xf32>
    %768 = vector.broadcast %342 : vector<1x1xf32> to vector<8x1xf32>
    %769 = arith.addf %767, %768 : vector<8x1xf32>
    %770 = vector.extract_strided_slice %621 {offsets = [40, 0], sizes = [8, 128], strides = [1, 1]} : vector<64x128xf32> to vector<8x128xf32>
    %cst_135 = arith.constant dense<0.000000e+00> : vector<8x128xf32>
    %771 = tpu.matmul %763, %338, %cst_135 {dimension_numbers = #tpu.dot_dimension_numbers<[1], [0], [0], [1], [0, 0, 1, 1], [], []>} : vector<8x32xf32>, vector<32x128xf32>, vector<8x128xf32> -> vector<8x128xf32>
    %772 = arith.addf %770, %771 : vector<8x128xf32>
    %773 = vector.broadcast %769 : vector<8x1xf32> to vector<8x128xf32>
    %774 = vector.broadcast %339 : vector<1x128xf32> to vector<8x128xf32>
    %775 = arith.mulf %773, %774 : vector<8x128xf32>
    %776 = arith.addf %772, %775 : vector<8x128xf32>
    %777 = vector.extract_strided_slice %776 {offsets = [0, 0], sizes = [8, 96], strides = [1, 1]} : vector<8x128xf32> to vector<8x96xf32>
    %778 = arith.negf %777 : vector<8x96xf32>
    %779 = math.exp %778 : vector<8x96xf32>
    %cst_136 = arith.constant 1.000000e+00 : f32
    %780 = vector.broadcast %cst_136 : f32 to vector<8x96xf32>
    %781 = arith.addf %780, %779 : vector<8x96xf32>
    %782 = arith.divf %780, %781 : vector<8x96xf32>
    %783 = vector.extract_strided_slice %776 {offsets = [0, 96], sizes = [8, 32], strides = [1, 1]} : vector<8x128xf32> to vector<8x32xf32>
    %784 = math.tanh %783 : vector<8x32xf32>
    %785 = vector.extract_strided_slice %782 {offsets = [0, 0], sizes = [8, 32], strides = [1, 1]} : vector<8x96xf32> to vector<8x32xf32>
    %786 = vector.extract_strided_slice %782 {offsets = [0, 32], sizes = [8, 32], strides = [1, 1]} : vector<8x96xf32> to vector<8x32xf32>
    %787 = vector.extract_strided_slice %782 {offsets = [0, 64], sizes = [8, 32], strides = [1, 1]} : vector<8x96xf32> to vector<8x32xf32>
    %788 = arith.mulf %786, %761 : vector<8x32xf32>
    %789 = arith.mulf %785, %784 : vector<8x32xf32>
    %790 = arith.addf %788, %789 : vector<8x32xf32>
    %791 = math.tanh %790 : vector<8x32xf32>
    %792 = arith.mulf %787, %791 : vector<8x32xf32>
    %793 = vector.broadcast %341 : vector<1x32xf32> to vector<8x32xf32>
    %794 = arith.mulf %792, %793 : vector<8x32xf32>
    %cst_137 = arith.constant dense<0.000000e+00> : vector<8xf32>
    %795 = vector.multi_reduction <add>, %794, %cst_137 [1] : vector<8x32xf32> to vector<8xf32>
    %796 = vector.shape_cast %795 : vector<8xf32> to vector<8x1xf32>
    %797 = vector.broadcast %342 : vector<1x1xf32> to vector<8x1xf32>
    %798 = arith.addf %796, %797 : vector<8x1xf32>
    %799 = vector.extract_strided_slice %621 {offsets = [48, 0], sizes = [8, 128], strides = [1, 1]} : vector<64x128xf32> to vector<8x128xf32>
    %cst_138 = arith.constant dense<0.000000e+00> : vector<8x128xf32>
    %800 = tpu.matmul %792, %338, %cst_138 {dimension_numbers = #tpu.dot_dimension_numbers<[1], [0], [0], [1], [0, 0, 1, 1], [], []>} : vector<8x32xf32>, vector<32x128xf32>, vector<8x128xf32> -> vector<8x128xf32>
    %801 = arith.addf %799, %800 : vector<8x128xf32>
    %802 = vector.broadcast %798 : vector<8x1xf32> to vector<8x128xf32>
    %803 = vector.broadcast %339 : vector<1x128xf32> to vector<8x128xf32>
    %804 = arith.mulf %802, %803 : vector<8x128xf32>
    %805 = arith.addf %801, %804 : vector<8x128xf32>
    %806 = vector.extract_strided_slice %805 {offsets = [0, 0], sizes = [8, 96], strides = [1, 1]} : vector<8x128xf32> to vector<8x96xf32>
    %807 = arith.negf %806 : vector<8x96xf32>
    %808 = math.exp %807 : vector<8x96xf32>
    %cst_139 = arith.constant 1.000000e+00 : f32
    %809 = vector.broadcast %cst_139 : f32 to vector<8x96xf32>
    %810 = arith.addf %809, %808 : vector<8x96xf32>
    %811 = arith.divf %809, %810 : vector<8x96xf32>
    %812 = vector.extract_strided_slice %805 {offsets = [0, 96], sizes = [8, 32], strides = [1, 1]} : vector<8x128xf32> to vector<8x32xf32>
    %813 = math.tanh %812 : vector<8x32xf32>
    %814 = vector.extract_strided_slice %811 {offsets = [0, 0], sizes = [8, 32], strides = [1, 1]} : vector<8x96xf32> to vector<8x32xf32>
    %815 = vector.extract_strided_slice %811 {offsets = [0, 32], sizes = [8, 32], strides = [1, 1]} : vector<8x96xf32> to vector<8x32xf32>
    %816 = vector.extract_strided_slice %811 {offsets = [0, 64], sizes = [8, 32], strides = [1, 1]} : vector<8x96xf32> to vector<8x32xf32>
    %817 = arith.mulf %815, %790 : vector<8x32xf32>
    %818 = arith.mulf %814, %813 : vector<8x32xf32>
    %819 = arith.addf %817, %818 : vector<8x32xf32>
    %820 = math.tanh %819 : vector<8x32xf32>
    %821 = arith.mulf %816, %820 : vector<8x32xf32>
    %822 = vector.broadcast %341 : vector<1x32xf32> to vector<8x32xf32>
    %823 = arith.mulf %821, %822 : vector<8x32xf32>
    %cst_140 = arith.constant dense<0.000000e+00> : vector<8xf32>
    %824 = vector.multi_reduction <add>, %823, %cst_140 [1] : vector<8x32xf32> to vector<8xf32>
    %825 = vector.shape_cast %824 : vector<8xf32> to vector<8x1xf32>
    %826 = vector.broadcast %342 : vector<1x1xf32> to vector<8x1xf32>
    %827 = arith.addf %825, %826 : vector<8x1xf32>
    %828 = vector.extract_strided_slice %621 {offsets = [56, 0], sizes = [8, 128], strides = [1, 1]} : vector<64x128xf32> to vector<8x128xf32>
    %cst_141 = arith.constant dense<0.000000e+00> : vector<8x128xf32>
    %829 = tpu.matmul %821, %338, %cst_141 {dimension_numbers = #tpu.dot_dimension_numbers<[1], [0], [0], [1], [0, 0, 1, 1], [], []>} : vector<8x32xf32>, vector<32x128xf32>, vector<8x128xf32> -> vector<8x128xf32>
    %830 = arith.addf %828, %829 : vector<8x128xf32>
    %831 = vector.broadcast %827 : vector<8x1xf32> to vector<8x128xf32>
    %832 = vector.broadcast %339 : vector<1x128xf32> to vector<8x128xf32>
    %833 = arith.mulf %831, %832 : vector<8x128xf32>
    %834 = arith.addf %830, %833 : vector<8x128xf32>
    %835 = vector.extract_strided_slice %834 {offsets = [0, 0], sizes = [8, 96], strides = [1, 1]} : vector<8x128xf32> to vector<8x96xf32>
    %836 = arith.negf %835 : vector<8x96xf32>
    %837 = math.exp %836 : vector<8x96xf32>
    %cst_142 = arith.constant 1.000000e+00 : f32
    %838 = vector.broadcast %cst_142 : f32 to vector<8x96xf32>
    %839 = arith.addf %838, %837 : vector<8x96xf32>
    %840 = arith.divf %838, %839 : vector<8x96xf32>
    %841 = vector.extract_strided_slice %834 {offsets = [0, 96], sizes = [8, 32], strides = [1, 1]} : vector<8x128xf32> to vector<8x32xf32>
    %842 = math.tanh %841 : vector<8x32xf32>
    %843 = vector.extract_strided_slice %840 {offsets = [0, 0], sizes = [8, 32], strides = [1, 1]} : vector<8x96xf32> to vector<8x32xf32>
    %844 = vector.extract_strided_slice %840 {offsets = [0, 32], sizes = [8, 32], strides = [1, 1]} : vector<8x96xf32> to vector<8x32xf32>
    %845 = vector.extract_strided_slice %840 {offsets = [0, 64], sizes = [8, 32], strides = [1, 1]} : vector<8x96xf32> to vector<8x32xf32>
    %846 = arith.mulf %844, %819 : vector<8x32xf32>
    %847 = arith.mulf %843, %842 : vector<8x32xf32>
    %848 = arith.addf %846, %847 : vector<8x32xf32>
    %849 = math.tanh %848 : vector<8x32xf32>
    %850 = arith.mulf %845, %849 : vector<8x32xf32>
    %851 = vector.broadcast %341 : vector<1x32xf32> to vector<8x32xf32>
    %852 = arith.mulf %850, %851 : vector<8x32xf32>
    %cst_143 = arith.constant dense<0.000000e+00> : vector<8xf32>
    %853 = vector.multi_reduction <add>, %852, %cst_143 [1] : vector<8x32xf32> to vector<8xf32>
    %854 = vector.shape_cast %853 : vector<8xf32> to vector<8x1xf32>
    %855 = vector.broadcast %342 : vector<1x1xf32> to vector<8x1xf32>
    %856 = arith.addf %854, %855 : vector<8x1xf32>
    %c0_144 = arith.constant 0 : index
    %c0_145 = arith.constant 0 : index
    %857 = vector.load %arg4[%c0_144, %c0_145] : memref<8x1xf32, #tpu.memory_space<vmem>>, vector<8x1xf32>
    tpu.vector_store %arg4[%c0_144, %c0_145], %856 {strides = array<i32>} : memref<8x1xf32, #tpu.memory_space<vmem>>, vector<8x1xf32>,
    return
  }
  func.func @transform_0(%arg0: i32) -> (i32, i32, i32) {
    %c0_i32 = arith.constant 0 : i32
    %c0_i32_0 = arith.constant 0 : i32
    %c0_i32_1 = arith.constant 0 : i32
    return %c0_i32, %arg0, %c0_i32_0 : i32, i32, i32
  }
  func.func @transform_1(%arg0: i32) -> (i32, i32) {
    %c0_i32 = arith.constant 0 : i32
    %c0_i32_0 = arith.constant 0 : i32
    return %arg0, %c0_i32 : i32, i32
  }
  func.func @transform_2(%arg0: i32) -> (i32, i32) {
    %c0_i32 = arith.constant 0 : i32
    %c0_i32_0 = arith.constant 0 : i32
    %c0_i32_1 = arith.constant 0 : i32
    return %c0_i32, %c0_i32_0 : i32, i32
  }
  func.func @transform_3(%arg0: i32) -> (i32, i32) {
    %c0_i32 = arith.constant 0 : i32
    %c0_i32_0 = arith.constant 0 : i32
    return %arg0, %c0_i32 : i32, i32
  }
  func.func @transform_4(%arg0: i32) -> (i32, i32) {
    %c0_i32 = arith.constant 0 : i32
    %c0_i32_0 = arith.constant 0 : i32
    return %arg0, %c0_i32 : i32, i32
  }
  func.func @transform_5(%arg0: i32) -> (i32, i32) {
    %c0_i32 = arith.constant 0 : i32
    %c0_i32_0 = arith.constant 0 : i32
    return %arg0, %c0_i32 : i32, i32
  }
}

</mosaic_0001>

<llo_original>
// kernel: tpu_custom_call.1
$region0: #{tpu_custom_call.1}
  #allocation0 [shape = 'u32[]', space=smem, size = 0x4, offset = 0x4, fixed_abs, tag = 'smem constant byte address 0x4 - core index']
  #allocation1 [shape = 'u32[72,128]{1,0:T(1,128)}', space=vmem, size = 0x9000, scoped, tag = 'internal scratch']
  %s0 = inlined_call_operand.hbm [shape: f32[8,8,16], index: 0, kind: input, shape index: {}]
  %s1 = inlined_call_operand.vmem [shape: f32[8,1], index: 1, kind: input, shape index: {}]
  %s2 = inlined_call_operand.hbm [shape: f32[304,128], index: 2, kind: input, shape index: {}]
  %s3 = inlined_call_operand.vmem [shape: f32[8,1], index: 3, kind: output, shape index: {0}]
  %s4 = inlined_call_operand.hbm [shape: f32[8,128], index: 4, kind: output, shape index: {1}]
  %s5 = inlined_call_operand.hbm [shape: f32[8,128], index: 5, kind: output, shape index: {2}]
  %6 = xla_tuple %s3, %s4, %s5
  %s7 = sld [smem:[#allocation0]]
  $region46: #{tpu_custom_call.1} parent=0
    _
  %s9 = ssub.s32 1, %s7
  %s10 = scalar_select 0, %s9, %s7
  $region1: #{tpu_custom_call.1} parent=0
    #allocation2 [shape = 'u8[32768]{0}', space=vmem, size = 0x8000, scoped, tag = 'input window, operand 0, single buffered']
    #allocation3 [shape = 's32[1]{0}', space=sflag, size = 0x4, scoped, tag = 'scoped memory for tpu_custom_call.1']
    #allocation4 [shape = 's32[1]{0}', space=sflag, size = 0x4, scoped, tag = 'scoped memory for tpu_custom_call.1']
    #allocation5 [shape = 'u8[155648]{0}', space=vmem, size = 0x26000, scoped, tag = 'input window, operand 2, single buffered']
    #allocation6 [shape = 's32[1]{0}', space=sflag, size = 0x4, scoped, tag = 'scoped memory for tpu_custom_call.1']
    #allocation7 [shape = 'u8[4096]{0}', space=vmem, size = 0x1000, scoped, tag = 'output window, operand 1, single buffered']
    #allocation8 [shape = 'u8[4096]{0}', space=vmem, size = 0x1000, scoped, tag = 'output window, operand 2, single buffered']
    #allocation9 [shape = 's32[1]{0}', space=sflag, size = 0x4, scoped, tag = 'scoped memory for tpu_custom_call.1']
    %11 = vsyncpa [#allocation3], 0
    %12 = vsyncpa [#allocation6], 0
    %13 = vsyncpa [#allocation4], 0
    %14 = vsyncpa [#allocation9], 0
    // Predicated region
    $region2: #{tpu_custom_call.1} parent=1 // pred_check
      _
    $region3: #{tpu_custom_call.1} parent=1 // pred_check_branch
      %16 = sbr.rel (0) target = $region5
    $region4: #{tpu_custom_call.1} parent=1 // pred_region
      %18 = vsyncadd [#allocation3], 0
      %s19 = sshll.u32 %s0, 4
      %s20 = int_to_ptr.hbm [resolvable:$true] %s19
      %s21 = sshll.u32 [#allocation2], 4
      %s22 = int_to_ptr.vmem [resolvable:$true] %s21
      %27 = dma.hbm_to_vmem [thread:$0]  %s20, 1024, %s22, [#allocation3], 128, 128, 8
    $region5: #{tpu_custom_call.1} parent=1 // pred_fallthru
      _
    // Predicated region
    $region6: #{tpu_custom_call.1} parent=1 // pred_check
      _
    $region7: #{tpu_custom_call.1} parent=1 // pred_check_branch
      %29 = sbr.rel (0) target = $region9
    $region8: #{tpu_custom_call.1} parent=1 // pred_region
      _
    $region9: #{tpu_custom_call.1} parent=1 // pred_fallthru
      _
    // Predicated region
    $region10: #{tpu_custom_call.1} parent=1 // pred_check
      _
    $region11: #{tpu_custom_call.1} parent=1 // pred_check_branch
      %31 = sbr.rel (0) target = $region13
    $region12: #{tpu_custom_call.1} parent=1 // pred_region
      %33 = vsyncadd [#allocation6], 0
      %s34 = sshll.u32 %s2, 4
      %s35 = int_to_ptr.hbm [resolvable:$true] %s34
      %s36 = sshll.u32 [#allocation5], 4
      %s37 = int_to_ptr.vmem [resolvable:$true] %s36
      %42 = dma.hbm_to_vmem [thread:$0]  %s35, 4864, %s37, [#allocation6], 128, 128, 8
    $region13: #{tpu_custom_call.1} parent=1 // pred_fallthru
      _
    // Predicated region
    $region14: #{tpu_custom_call.1} parent=1 // pred_check
      _
    $region15: #{tpu_custom_call.1} parent=1 // pred_check_branch
      %44 = sbr.rel (0) target = $region17
    $region16: #{tpu_custom_call.1} parent=1 // pred_region
      %46 = dma.done [#allocation3], 1024
    $region17: #{tpu_custom_call.1} parent=1 // pred_fallthru
      _
    // Predicated region
    $region18: #{tpu_custom_call.1} parent=1 // pred_check
      _
    $region19: #{tpu_custom_call.1} parent=1 // pred_check_branch
      %48 = sbr.rel (0) target = $region21
    $region20: #{tpu_custom_call.1} parent=1 // pred_region
      %50 = dma.done [#allocation6], 4864
    $region21: #{tpu_custom_call.1} parent=1 // pred_fallthru
      _
    %v51 = vld [vmem:[#allocation5] sm:$0xff]
    %v52 = vld [vmem:[#allocation5 + $0x8] sm:$0xff]
    %v53 = vld [vmem:[#allocation5 + $0x10] sm:$0x1]
    %v54 = vld [vmem:[#allocation5 + $0x18] sm:$0xff]
    %v55 = vld [vmem:[#allocation5 + $0x20] sm:$0xff]
    %v56 = vld [vmem:[#allocation5 + $0x28] sm:$0xff]
    %v57 = vld [vmem:[#allocation5 + $0x30] sm:$0xff]
    %v58 = vld [vmem:[#allocation5 + $0x38] sm:$0xff]
    %v59 = vld [vmem:[#allocation5 + $0x40] sm:$0xff]
    %v60 = vld [vmem:[#allocation5 + $0x48] sm:$0xff]
    %v61 = vld [vmem:[#allocation5 + $0x50] sm:$0xff]
    %v62 = vld [vmem:[#allocation5 + $0x58] sm:$0xff]
    %v63 = vld [vmem:[#allocation5 + $0x60] sm:$0xff]
    %v64 = vld [vmem:[#allocation5 + $0x68] sm:$0xff]
    %v65 = vld [vmem:[#allocation5 + $0x70] sm:$0xff]
    %v66 = vld [vmem:[#allocation5 + $0x78] sm:$0xff]
    %v67 = vld [vmem:[#allocation5 + $0x80] sm:$0xff]
    %v68 = vld [vmem:[#allocation5 + $0x88] sm:$0xff]
    %v69 = vld [vmem:[#allocation5 + $0x90] sm:$0xff]
    %v70 = vld [vmem:[#allocation5 + $0x98] sm:$0x1]
    %v71 = vld [vmem:[#allocation2] sm:$0xff]
    %s72 = scalar_lea.vmem [#allocation2], 8
    %v73 = vld [vmem:[%s72] sm:$0xff]
    %s74 = scalar_lea.vmem [#allocation2], 16
    %v75 = vld [vmem:[%s74] sm:$0xff]
    %s76 = scalar_lea.vmem [#allocation2], 24
    %v77 = vld [vmem:[%s76] sm:$0xff]
    %s78 = scalar_lea.vmem [#allocation2], 32
    %v79 = vld [vmem:[%s78] sm:$0xff]
    %s80 = scalar_lea.vmem [#allocation2], 40
    %v81 = vld [vmem:[%s80] sm:$0xff]
    %s82 = scalar_lea.vmem [#allocation2], 48
    %v83 = vld [vmem:[%s82] sm:$0xff]
    %s84 = scalar_lea.vmem [#allocation2], 56
    %v85 = vld [vmem:[%s84] sm:$0xff]
    %v86 = vperm.slane %v53, 0
    %vm87 = vcmask 130048
    %v89 = vsel %vm87, %v71, 0
    %v92 = vsel %vm87, %v73, 0
    %v95 = vsel %vm87, %v75, 0
    %v98 = vsel %vm87, %v77, 0
    %v101 = vsel %vm87, %v79, 0
    %v104 = vsel %vm87, %v81, 0
    %v107 = vsel %vm87, %v83, 0
    %v110 = vsel %vm87, %v85, 0
    %112 = vmatpush.msra.mxu0 0.0
    %113 = vmatpush.msra.mxu0 0.0
    %114 = vmatpush.msra.mxu0 0.0
    %115 = vmatpush.msra.mxu0 0.0
    %116 = vmatpush.msra.mxu0 0.0
    %117 = vmatpush.msra.mxu0 0.0
    %118 = vmatpush.msra.mxu0 0.0
    %119 = vmatpush.msra.mxu0 0.0
    %120 = vmatpush.msra.mxu0 0.0
    %121 = vmatpush.msra.mxu0 0.0
    %122 = vmatpush.msra.mxu0 0.0
    %123 = vmatpush.msra.mxu0 0.0
    %124 = vmatpush.msra.mxu0 0.0
    %125 = vmatpush.msra.mxu0 0.0
    %126 = vmatpush.msra.mxu0 %v52
    %127 = vmatpush.msra.mxu0 %v51
    %128 = vmatmul.f32.gmra.mxu0 %v89
    %v129 = vpop.f32.mrf.mxu0
    %v130 = vadd.f32 %v86, %v129
    %131 = vmatmul.f32.gmra.mxu0 %v92
    %v132 = vpop.f32.mrf.mxu0
    %v133 = vadd.f32 %v86, %v132
    %134 = vmatmul.f32.gmra.mxu0 %v95
    %v135 = vpop.f32.mrf.mxu0
    %v136 = vadd.f32 %v86, %v135
    %137 = vmatmul.f32.gmra.mxu0 %v98
    %v138 = vpop.f32.mrf.mxu0
    %v139 = vadd.f32 %v86, %v138
    %140 = vmatmul.f32.gmra.mxu0 %v101
    %v141 = vpop.f32.mrf.mxu0
    %v142 = vadd.f32 %v86, %v141
    %143 = vmatmul.f32.gmra.mxu0 %v104
    %v144 = vpop.f32.mrf.mxu0
    %v145 = vadd.f32 %v86, %v144
    %146 = vmatmul.f32.gmra.mxu0 %v107
    %v147 = vpop.f32.mrf.mxu0
    %v148 = vadd.f32 %v86, %v147
    %149 = vmatmul.f32.gmra.mxu0 %v110
    %v150 = vpop.f32.mrf.mxu0
    %v151 = vadd.f32 %v86, %v150
    %152 = vdwg.mxu0
    %vm153 = vcmask 523264
    %v155 = vsel %vm153, 0.0, 0
    %157 = vmatpush.msra.mxu0 0.0
    %158 = vmatpush.msra.mxu0 0.0
    %159 = vmatpush.msra.mxu0 0.0
    %160 = vmatpush.msra.mxu0 0.0
    %161 = vmatpush.msra.mxu0 0.0
    %162 = vmatpush.msra.mxu0 0.0
    %163 = vmatpush.msra.mxu0 0.0
    %164 = vmatpush.msra.mxu0 0.0
    %165 = vmatpush.msra.mxu0 %v61
    %166 = vmatpush.msra.mxu0 %v60
    %167 = vmatpush.msra.mxu0 %v59
    %168 = vmatpush.msra.mxu0 %v58
    %169 = vmatpush.msra.mxu0 %v57
    %170 = vmatpush.msra.mxu0 %v56
    %171 = vmatpush.msra.mxu0 %v55
    %172 = vmatpush.msra.mxu0 %v54
    %173 = vmatmul.f32.gmra.mxu0 %v155
    %v174 = vpop.f32.mrf.mxu0
    %v175 = vadd.f32 0.0, %v174
    %176 = vdwg.mxu0
    %v177 = vadd.f32 %v130, %v175
    %v178 = vtanh.pop %v177
    %v180 = vsel %vm87, %v178, 0
    %182 = vmatpush.msra.mxu0 0.0
    %183 = vmatpush.msra.mxu0 0.0
    %184 = vmatpush.msra.mxu0 0.0
    %185 = vmatpush.msra.mxu0 0.0
    %186 = vmatpush.msra.mxu0 0.0
    %187 = vmatpush.msra.mxu0 0.0
    %188 = vmatpush.msra.mxu0 0.0
    %189 = vmatpush.msra.mxu0 0.0
    %190 = vmatpush.msra.mxu0 0.0
    %191 = vmatpush.msra.mxu0 0.0
    %192 = vmatpush.msra.mxu0 0.0
    %193 = vmatpush.msra.mxu0 0.0
    %194 = vmatpush.msra.mxu0 0.0
    %195 = vmatpush.msra.mxu0 0.0
    %196 = vmatpush.msra.mxu0 %v63
    %197 = vmatpush.msra.mxu0 %v62
    %198 = vmatmul.f32.gmra.mxu0 %v180
    %v199 = vpop.f32.mrf.mxu0
    %v200 = vadd.f32 0.0, %v199
    %201 = vdwg.mxu0
    %v202 = vsel %vm87, %v200, -inf
    %203 = vmax.xlane.f32.xlu0 %v202
    %v204 = vpop.xlane.xlu0 %203
    %v205 = vsub.f32 %v200, %v204
    %v206 = vmul.f32 %v205, 1.442695
    %v207 = vpow.pop %v206
    %v208 = vsel %vm87, %v207, 0.0
    %209 = vadd.xlane.f32.xlu0 %v208
    %v210 = vpop.xlane.xlu0 %209
    %v211 = vrcp.pop %v210
    %v212 = vmul.f32 %v210, %v211
    %v213 = vsub.f32 1.0, %v212
    %v214 = vmul.f32 %v211, %v213
    %v215 = vadd.f32 %v211, %v214
    %vm216 = vweird.f32 %v210
    %vm217 = vweird.f32 %v211
    %vm218 = vmor %vm216, %vm217
    %v219 = vsel %vm218, %v211, %v215
    %v220 = vand.u32 2147483647, %v210
    %vm221 = vcmp.eq.f32.partialorder %v220, 8.507059e+37
    %v222 = vand.u32 %v210, 2147483648
    %v223 = vor.u32 1.1754944e-38, %v222
    %v224 = vsel %vm221, %v223, %v219
    %v225 = vmul.f32 %v207, %v224
    %v226 = vmul.f32 %v225, %v71
    %v227 = vsel %vm87, %v226, 0.0
    %v228 = vperm.slane %v70, 0
    %vm229 = vcmask 392192
    %v231 = vsel %vm229, %v227, 0
    %233 = vmatpush.msra.mxu0 0.0
    %234 = vmatpush.msra.mxu0 0.0
    %235 = vmatpush.msra.mxu0 0.0
    %236 = vmatpush.msra.mxu0 0.0
    %237 = vmatpush.msra.mxu0 0.0
    %238 = vmatpush.msra.mxu0 0.0
    %239 = vmatpush.msra.mxu0 0.0
    %240 = vmatpush.msra.mxu0 0.0
    %241 = vmatpush.msra.mxu0 0.0
    %242 = vmatpush.msra.mxu0 0.0
    %243 = vmatpush.msra.mxu0 %v69
    %244 = vmatpush.msra.mxu0 %v68
    %245 = vmatpush.msra.mxu0 %v67
    %246 = vmatpush.msra.mxu0 %v66
    %247 = vmatpush.msra.mxu0 %v65
    %248 = vmatpush.msra.mxu0 %v64
    %249 = vmatmul.f32.gmra.mxu0 %v231
    %v250 = vpop.f32.mrf.mxu0
    %v251 = vadd.f32 %v228, %v250
    %252 = vdwg.mxu0
    %v253 = vxor.u32 %v251, 2147483648
    %v254 = vmul.f32 %v253, 1.442695
    %v255 = vpow.pop %v254
    %v256 = vadd.f32 %v255, 1.0
    %v257 = vrcp.pop %v256
    %v258 = vmul.f32 %v256, %v257
    %v259 = vsub.f32 1.0, %v258
    %v260 = vmul.f32 %v257, %v259
    %v261 = vadd.f32 %v257, %v260
    %vm262 = vweird.f32 %v256
    %vm263 = vweird.f32 %v257
    %vm264 = vmor %vm262, %vm263
    %v265 = vsel %vm264, %v257, %v261
    %v266 = vand.u32 2147483647, %v256
    %vm267 = vcmp.eq.f32.partialorder %v266, 8.507059e+37
    %v268 = vand.u32 %v256, 2147483648
    %v269 = vor.u32 1.1754944e-38, %v268
    %v270 = vsel %vm267, %v269, %v265
    %v271 = vmul.f32 1.0, %v270
    %v272 = vtanh.pop %v251
    %v273 = vmul.f32 %v271, 0.0
    %275 = vrot.lane.b32.xlu0 %v272, 32
    %v276 = vpop.permute.xlu0 %275
    %v278 = vmul.f32 %v271, %v276
    %280 = vrot.lane.b32.xlu0 %v278, 32
    %v281 = vpop.permute.xlu0 %280
    %v283 = vadd.f32 %v273, %v281
    %v284 = vtanh.pop %v283
    %286 = vrot.lane.b32.xlu0 %v284, 32
    %v287 = vpop.permute.xlu0 %286
    %v289 = vmul.f32 %v271, %v287
    %291 = vrot.lane.b32.xlu0 %v289, 64
    %v292 = vpop.permute.xlu0 %291
    %vm294 = vcmask 261120
    %v295 = vsel %vm294, %v292, %v283
    %v297 = vsel %vm153, %v295, 0
    %299 = vmatpush.msra.mxu0 0.0
    %300 = vmatpush.msra.mxu0 0.0
    %301 = vmatpush.msra.mxu0 0.0
    %302 = vmatpush.msra.mxu0 0.0
    %303 = vmatpush.msra.mxu0 0.0
    %304 = vmatpush.msra.mxu0 0.0
    %305 = vmatpush.msra.mxu0 0.0
    %306 = vmatpush.msra.mxu0 0.0
    %307 = vmatpush.msra.mxu0 %v61
    %308 = vmatpush.msra.mxu0 %v60
    %309 = vmatpush.msra.mxu0 %v59
    %310 = vmatpush.msra.mxu0 %v58
    %311 = vmatpush.msra.mxu0 %v57
    %312 = vmatpush.msra.mxu0 %v56
    %313 = vmatpush.msra.mxu0 %v55
    %314 = vmatpush.msra.mxu0 %v54
    %315 = vmatmul.f32.gmra.mxu0 %v297
    %v316 = vpop.f32.mrf.mxu0
    %v317 = vadd.f32 0.0, %v316
    %318 = vdwg.mxu0
    %v319 = vadd.f32 %v133, %v317
    %v320 = vtanh.pop %v319
    %v322 = vsel %vm87, %v320, 0
    %324 = vmatpush.msra.mxu0 0.0
    %325 = vmatpush.msra.mxu0 0.0
    %326 = vmatpush.msra.mxu0 0.0
    %327 = vmatpush.msra.mxu0 0.0
    %328 = vmatpush.msra.mxu0 0.0
    %329 = vmatpush.msra.mxu0 0.0
    %330 = vmatpush.msra.mxu0 0.0
    %331 = vmatpush.msra.mxu0 0.0
    %332 = vmatpush.msra.mxu0 0.0
    %333 = vmatpush.msra.mxu0 0.0
    %334 = vmatpush.msra.mxu0 0.0
    %335 = vmatpush.msra.mxu0 0.0
    %336 = vmatpush.msra.mxu0 0.0
    %337 = vmatpush.msra.mxu0 0.0
    %338 = vmatpush.msra.mxu0 %v63
    %339 = vmatpush.msra.mxu0 %v62
    %340 = vmatmul.f32.gmra.mxu0 %v322
    %v341 = vpop.f32.mrf.mxu0
    %v342 = vadd.f32 0.0, %v341
    %343 = vdwg.mxu0
    %v344 = vsel %vm87, %v342, -inf
    %345 = vmax.xlane.f32.xlu0 %v344
    %v346 = vpop.xlane.xlu0 %345
    %v347 = vsub.f32 %v342, %v346
    %v348 = vmul.f32 %v347, 1.442695
    %v349 = vpow.pop %v348
    %v350 = vsel %vm87, %v349, 0.0
    %351 = vadd.xlane.f32.xlu0 %v350
    %v352 = vpop.xlane.xlu0 %351
    %v353 = vrcp.pop %v352
    %v354 = vmul.f32 %v352, %v353
    %v355 = vsub.f32 1.0, %v354
    %v356 = vmul.f32 %v353, %v355
    %v357 = vadd.f32 %v353, %v356
    %vm358 = vweird.f32 %v352
    %vm359 = vweird.f32 %v353
    %vm360 = vmor %vm358, %vm359
    %v361 = vsel %vm360, %v353, %v357
    %v362 = vand.u32 2147483647, %v352
    %vm363 = vcmp.eq.f32.partialorder %v362, 8.507059e+37
    %v364 = vand.u32 %v352, 2147483648
    %v365 = vor.u32 1.1754944e-38, %v364
    %v366 = vsel %vm363, %v365, %v361
    %v367 = vmul.f32 %v349, %v366
    %v368 = vmul.f32 %v367, %v73
    %369 = vrot.lane.b32.xlu0 %v289, 80
    %v370 = vpop.permute.xlu0 %369
    %v372 = vsel %vm87, %v368, %v370
    %v374 = vsel %vm229, %v372, 0
    %376 = vmatpush.msra.mxu0 0.0
    %377 = vmatpush.msra.mxu0 0.0
    %378 = vmatpush.msra.mxu0 0.0
    %379 = vmatpush.msra.mxu0 0.0
    %380 = vmatpush.msra.mxu0 0.0
    %381 = vmatpush.msra.mxu0 0.0
    %382 = vmatpush.msra.mxu0 0.0
    %383 = vmatpush.msra.mxu0 0.0
    %384 = vmatpush.msra.mxu0 0.0
    %385 = vmatpush.msra.mxu0 0.0
    %386 = vmatpush.msra.mxu0 %v69
    %387 = vmatpush.msra.mxu0 %v68
    %388 = vmatpush.msra.mxu0 %v67
    %389 = vmatpush.msra.mxu0 %v66
    %390 = vmatpush.msra.mxu0 %v65
    %391 = vmatpush.msra.mxu0 %v64
    %392 = vmatmul.f32.gmra.mxu0 %v374
    %v393 = vpop.f32.mrf.mxu0
    %v394 = vadd.f32 %v228, %v393
    %395 = vdwg.mxu0
    %v396 = vxor.u32 %v394, 2147483648
    %v397 = vmul.f32 %v396, 1.442695
    %v398 = vpow.pop %v397
    %v399 = vadd.f32 %v398, 1.0
    %v400 = vrcp.pop %v399
    %v401 = vmul.f32 %v399, %v400
    %v402 = vsub.f32 1.0, %v401
    %v403 = vmul.f32 %v400, %v402
    %v404 = vadd.f32 %v400, %v403
    %vm405 = vweird.f32 %v399
    %vm406 = vweird.f32 %v400
    %vm407 = vmor %vm405, %vm406
    %v408 = vsel %vm407, %v400, %v404
    %v409 = vand.u32 2147483647, %v399
    %vm410 = vcmp.eq.f32.partialorder %v409, 8.507059e+37
    %v411 = vand.u32 %v399, 2147483648
    %v412 = vor.u32 1.1754944e-38, %v411
    %v413 = vsel %vm410, %v412, %v408
    %v414 = vmul.f32 1.0, %v413
    %v415 = vtanh.pop %v394
    %v416 = vmul.f32 %v414, %v283
    %418 = vrot.lane.b32.xlu0 %v415, 32
    %v419 = vpop.permute.xlu0 %418
    %v421 = vmul.f32 %v414, %v419
    %423 = vrot.lane.b32.xlu0 %v421, 32
    %v424 = vpop.permute.xlu0 %423
    %v426 = vadd.f32 %v416, %v424
    %v427 = vtanh.pop %v426
    %429 = vrot.lane.b32.xlu0 %v427, 32
    %v430 = vpop.permute.xlu0 %429
    %v432 = vmul.f32 %v414, %v430
    %434 = vrot.lane.b32.xlu0 %v432, 64
    %v435 = vpop.permute.xlu0 %434
    %v437 = vsel %vm294, %v435, %v426
    %v439 = vsel %vm153, %v437, 0
    %441 = vmatpush.msra.mxu0 0.0
    %442 = vmatpush.msra.mxu0 0.0
    %443 = vmatpush.msra.mxu0 0.0
    %444 = vmatpush.msra.mxu0 0.0
    %445 = vmatpush.msra.mxu0 0.0
    %446 = vmatpush.msra.mxu0 0.0
    %447 = vmatpush.msra.mxu0 0.0
    %448 = vmatpush.msra.mxu0 0.0
    %449 = vmatpush.msra.mxu0 %v61
    %450 = vmatpush.msra.mxu0 %v60
    %451 = vmatpush.msra.mxu0 %v59
    %452 = vmatpush.msra.mxu0 %v58
    %453 = vmatpush.msra.mxu0 %v57
    %454 = vmatpush.msra.mxu0 %v56
    %455 = vmatpush.msra.mxu0 %v55
    %456 = vmatpush.msra.mxu0 %v54
    %457 = vmatmul.f32.gmra.mxu0 %v439
    %v458 = vpop.f32.mrf.mxu0
    %v459 = vadd.f32 0.0, %v458
    %460 = vdwg.mxu0
    %v461 = vadd.f32 %v136, %v459
    %v462 = vtanh.pop %v461
    %v464 = vsel %vm87, %v462, 0
    %466 = vmatpush.msra.mxu0 0.0
    %467 = vmatpush.msra.mxu0 0.0
    %468 = vmatpush.msra.mxu0 0.0
    %469 = vmatpush.msra.mxu0 0.0
    %470 = vmatpush.msra.mxu0 0.0
    %471 = vmatpush.msra.mxu0 0.0
    %472 = vmatpush.msra.mxu0 0.0
    %473 = vmatpush.msra.mxu0 0.0
    %474 = vmatpush.msra.mxu0 0.0
    %475 = vmatpush.msra.mxu0 0.0
    %476 = vmatpush.msra.mxu0 0.0
    %477 = vmatpush.msra.mxu0 0.0
    %478 = vmatpush.msra.mxu0 0.0
    %479 = vmatpush.msra.mxu0 0.0
    %480 = vmatpush.msra.mxu0 %v63
    %481 = vmatpush.msra.mxu0 %v62
    %482 = vmatmul.f32.gmra.mxu0 %v464
    %v483 = vpop.f32.mrf.mxu0
    %v484 = vadd.f32 0.0, %v483
    %485 = vdwg.mxu0
    %v486 = vsel %vm87, %v484, -inf
    %487 = vmax.xlane.f32.xlu0 %v486
    %v488 = vpop.xlane.xlu0 %487
    %v489 = vsub.f32 %v484, %v488
    %v490 = vmul.f32 %v489, 1.442695
    %v491 = vpow.pop %v490
    %v492 = vsel %vm87, %v491, 0.0
    %493 = vadd.xlane.f32.xlu0 %v492
    %v494 = vpop.xlane.xlu0 %493
    %v495 = vrcp.pop %v494
    %v496 = vmul.f32 %v494, %v495
    %v497 = vsub.f32 1.0, %v496
    %v498 = vmul.f32 %v495, %v497
    %v499 = vadd.f32 %v495, %v498
    %vm500 = vweird.f32 %v494
    %vm501 = vweird.f32 %v495
    %vm502 = vmor %vm500, %vm501
    %v503 = vsel %vm502, %v495, %v499
    %v504 = vand.u32 2147483647, %v494
    %vm505 = vcmp.eq.f32.partialorder %v504, 8.507059e+37
    %v506 = vand.u32 %v494, 2147483648
    %v507 = vor.u32 1.1754944e-38, %v506
    %v508 = vsel %vm505, %v507, %v503
    %v509 = vmul.f32 %v491, %v508
    %v510 = vmul.f32 %v509, %v75
    %511 = vrot.lane.b32.xlu0 %v432, 80
    %v512 = vpop.permute.xlu0 %511
    %v514 = vsel %vm87, %v510, %v512
    %v516 = vsel %vm229, %v514, 0
    %518 = vmatpush.msra.mxu0 0.0
    %519 = vmatpush.msra.mxu0 0.0
    %520 = vmatpush.msra.mxu0 0.0
    %521 = vmatpush.msra.mxu0 0.0
    %522 = vmatpush.msra.mxu0 0.0
    %523 = vmatpush.msra.mxu0 0.0
    %524 = vmatpush.msra.mxu0 0.0
    %525 = vmatpush.msra.mxu0 0.0
    %526 = vmatpush.msra.mxu0 0.0
    %527 = vmatpush.msra.mxu0 0.0
    %528 = vmatpush.msra.mxu0 %v69
    %529 = vmatpush.msra.mxu0 %v68
    %530 = vmatpush.msra.mxu0 %v67
    %531 = vmatpush.msra.mxu0 %v66
    %532 = vmatpush.msra.mxu0 %v65
    %533 = vmatpush.msra.mxu0 %v64
    %534 = vmatmul.f32.gmra.mxu0 %v516
    %v535 = vpop.f32.mrf.mxu0
    %v536 = vadd.f32 %v228, %v535
    %537 = vdwg.mxu0
    %v538 = vxor.u32 %v536, 2147483648
    %v539 = vmul.f32 %v538, 1.442695
    %v540 = vpow.pop %v539
    %v541 = vadd.f32 %v540, 1.0
    %v542 = vrcp.pop %v541
    %v543 = vmul.f32 %v541, %v542
    %v544 = vsub.f32 1.0, %v543
    %v545 = vmul.f32 %v542, %v544
    %v546 = vadd.f32 %v542, %v545
    %vm547 = vweird.f32 %v541
    %vm548 = vweird.f32 %v542
    %vm549 = vmor %vm547, %vm548
    %v550 = vsel %vm549, %v542, %v546
    %v551 = vand.u32 2147483647, %v541
    %vm552 = vcmp.eq.f32.partialorder %v551, 8.507059e+37
    %v553 = vand.u32 %v541, 2147483648
    %v554 = vor.u32 1.1754944e-38, %v553
    %v555 = vsel %vm552, %v554, %v550
    %v556 = vmul.f32 1.0, %v555
    %v557 = vtanh.pop %v536
    %v558 = vmul.f32 %v556, %v426
    %560 = vrot.lane.b32.xlu0 %v557, 32
    %v561 = vpop.permute.xlu0 %560
    %v563 = vmul.f32 %v556, %v561
    %565 = vrot.lane.b32.xlu0 %v563, 32
    %v566 = vpop.permute.xlu0 %565
    %v568 = vadd.f32 %v558, %v566
    %v569 = vtanh.pop %v568
    %571 = vrot.lane.b32.xlu0 %v569, 32
    %v572 = vpop.permute.xlu0 %571
    %v574 = vmul.f32 %v556, %v572
    %576 = vrot.lane.b32.xlu0 %v574, 64
    %v577 = vpop.permute.xlu0 %576
    %v579 = vsel %vm294, %v577, %v568
    %v581 = vsel %vm153, %v579, 0
    %583 = vmatpush.msra.mxu0 0.0
    %584 = vmatpush.msra.mxu0 0.0
    %585 = vmatpush.msra.mxu0 0.0
    %586 = vmatpush.msra.mxu0 0.0
    %587 = vmatpush.msra.mxu0 0.0
    %588 = vmatpush.msra.mxu0 0.0
    %589 = vmatpush.msra.mxu0 0.0
    %590 = vmatpush.msra.mxu0 0.0
    %591 = vmatpush.msra.mxu0 %v61
    %592 = vmatpush.msra.mxu0 %v60
    %593 = vmatpush.msra.mxu0 %v59
    %594 = vmatpush.msra.mxu0 %v58
    %595 = vmatpush.msra.mxu0 %v57
    %596 = vmatpush.msra.mxu0 %v56
    %597 = vmatpush.msra.mxu0 %v55
    %598 = vmatpush.msra.mxu0 %v54
    %599 = vmatmul.f32.gmra.mxu0 %v581
    %v600 = vpop.f32.mrf.mxu0
    %v601 = vadd.f32 0.0, %v600
    %602 = vdwg.mxu0
    %v603 = vadd.f32 %v139, %v601
    %v604 = vtanh.pop %v603
    %v606 = vsel %vm87, %v604, 0
    %608 = vmatpush.msra.mxu0 0.0
    %609 = vmatpush.msra.mxu0 0.0
    %610 = vmatpush.msra.mxu0 0.0
    %611 = vmatpush.msra.mxu0 0.0
    %612 = vmatpush.msra.mxu0 0.0
    %613 = vmatpush.msra.mxu0 0.0
    %614 = vmatpush.msra.mxu0 0.0
    %615 = vmatpush.msra.mxu0 0.0
    %616 = vmatpush.msra.mxu0 0.0
    %617 = vmatpush.msra.mxu0 0.0
    %618 = vmatpush.msra.mxu0 0.0
    %619 = vmatpush.msra.mxu0 0.0
    %620 = vmatpush.msra.mxu0 0.0
    %621 = vmatpush.msra.mxu0 0.0
    %622 = vmatpush.msra.mxu0 %v63
    %623 = vmatpush.msra.mxu0 %v62
    %624 = vmatmul.f32.gmra.mxu0 %v606
    %v625 = vpop.f32.mrf.mxu0
    %v626 = vadd.f32 0.0, %v625
    %627 = vdwg.mxu0
    %v628 = vsel %vm87, %v626, -inf
    %629 = vmax.xlane.f32.xlu0 %v628
    %v630 = vpop.xlane.xlu0 %629
    %v631 = vsub.f32 %v626, %v630
    %v632 = vmul.f32 %v631, 1.442695
    %v633 = vpow.pop %v632
    %v634 = vsel %vm87, %v633, 0.0
    %635 = vadd.xlane.f32.xlu0 %v634
    %v636 = vpop.xlane.xlu0 %635
    %v637 = vrcp.pop %v636
    %v638 = vmul.f32 %v636, %v637
    %v639 = vsub.f32 1.0, %v638
    %v640 = vmul.f32 %v637, %v639
    %v641 = vadd.f32 %v637, %v640
    %vm642 = vweird.f32 %v636
    %vm643 = vweird.f32 %v637
    %vm644 = vmor %vm642, %vm643
    %v645 = vsel %vm644, %v637, %v641
    %v646 = vand.u32 2147483647, %v636
    %vm647 = vcmp.eq.f32.partialorder %v646, 8.507059e+37
    %v648 = vand.u32 %v636, 2147483648
    %v649 = vor.u32 1.1754944e-38, %v648
    %v650 = vsel %vm647, %v649, %v645
    %v651 = vmul.f32 %v633, %v650
    %v652 = vmul.f32 %v651, %v77
    %653 = vrot.lane.b32.xlu0 %v574, 80
    %v654 = vpop.permute.xlu0 %653
    %v656 = vsel %vm87, %v652, %v654
    %v658 = vsel %vm229, %v656, 0
    %660 = vmatpush.msra.mxu0 0.0
    %661 = vmatpush.msra.mxu0 0.0
    %662 = vmatpush.msra.mxu0 0.0
    %663 = vmatpush.msra.mxu0 0.0
    %664 = vmatpush.msra.mxu0 0.0
    %665 = vmatpush.msra.mxu0 0.0
    %666 = vmatpush.msra.mxu0 0.0
    %667 = vmatpush.msra.mxu0 0.0
    %668 = vmatpush.msra.mxu0 0.0
    %669 = vmatpush.msra.mxu0 0.0
    %670 = vmatpush.msra.mxu0 %v69
    %671 = vmatpush.msra.mxu0 %v68
    %672 = vmatpush.msra.mxu0 %v67
    %673 = vmatpush.msra.mxu0 %v66
    %674 = vmatpush.msra.mxu0 %v65
    %675 = vmatpush.msra.mxu0 %v64
    %676 = vmatmul.f32.gmra.mxu0 %v658
    %v677 = vpop.f32.mrf.mxu0
    %v678 = vadd.f32 %v228, %v677
    %679 = vdwg.mxu0
    %v680 = vxor.u32 %v678, 2147483648
    %v681 = vmul.f32 %v680, 1.442695
    %v682 = vpow.pop %v681
    %v683 = vadd.f32 %v682, 1.0
    %v684 = vrcp.pop %v683
    %v685 = vmul.f32 %v683, %v684
    %v686 = vsub.f32 1.0, %v685
    %v687 = vmul.f32 %v684, %v686
    %v688 = vadd.f32 %v684, %v687
    %vm689 = vweird.f32 %v683
    %vm690 = vweird.f32 %v684
    %vm691 = vmor %vm689, %vm690
    %v692 = vsel %vm691, %v684, %v688
    %v693 = vand.u32 2147483647, %v683
    %vm694 = vcmp.eq.f32.partialorder %v693, 8.507059e+37
    %v695 = vand.u32 %v683, 2147483648
    %v696 = vor.u32 1.1754944e-38, %v695
    %v697 = vsel %vm694, %v696, %v692
    %v698 = vmul.f32 1.0, %v697
    %v699 = vtanh.pop %v678
    %v700 = vmul.f32 %v698, %v568
    %702 = vrot.lane.b32.xlu0 %v699, 32
    %v703 = vpop.permute.xlu0 %702
    %v705 = vmul.f32 %v698, %v703
    %707 = vrot.lane.b32.xlu0 %v705, 32
    %v708 = vpop.permute.xlu0 %707
    %v710 = vadd.f32 %v700, %v708
    %v711 = vtanh.pop %v710
    %713 = vrot.lane.b32.xlu0 %v711, 32
    %v714 = vpop.permute.xlu0 %713
    %v716 = vmul.f32 %v698, %v714
    %718 = vrot.lane.b32.xlu0 %v716, 64
    %v719 = vpop.permute.xlu0 %718
    %v721 = vsel %vm294, %v719, %v710
    %v723 = vsel %vm153, %v721, 0
    %725 = vmatpush.msra.mxu0 0.0
    %726 = vmatpush.msra.mxu0 0.0
    %727 = vmatpush.msra.mxu0 0.0
    %728 = vmatpush.msra.mxu0 0.0
    %729 = vmatpush.msra.mxu0 0.0
    %730 = vmatpush.msra.mxu0 0.0
    %731 = vmatpush.msra.mxu0 0.0
    %732 = vmatpush.msra.mxu0 0.0
    %733 = vmatpush.msra.mxu0 %v61
    %734 = vmatpush.msra.mxu0 %v60
    %735 = vmatpush.msra.mxu0 %v59
    %736 = vmatpush.msra.mxu0 %v58
    %737 = vmatpush.msra.mxu0 %v57
    %738 = vmatpush.msra.mxu0 %v56
    %739 = vmatpush.msra.mxu0 %v55
    %740 = vmatpush.msra.mxu0 %v54
    %741 = vmatmul.f32.gmra.mxu0 %v723
    %v742 = vpop.f32.mrf.mxu0
    %v743 = vadd.f32 0.0, %v742
    %744 = vdwg.mxu0
    %v745 = vadd.f32 %v142, %v743
    %v746 = vtanh.pop %v745
    %v748 = vsel %vm87, %v746, 0
    %750 = vmatpush.msra.mxu0 0.0
    %751 = vmatpush.msra.mxu0 0.0
    %752 = vmatpush.msra.mxu0 0.0
    %753 = vmatpush.msra.mxu0 0.0
    %754 = vmatpush.msra.mxu0 0.0
    %755 = vmatpush.msra.mxu0 0.0
    %756 = vmatpush.msra.mxu0 0.0
    %757 = vmatpush.msra.mxu0 0.0
    %758 = vmatpush.msra.mxu0 0.0
    %759 = vmatpush.msra.mxu0 0.0
    %760 = vmatpush.msra.mxu0 0.0
    %761 = vmatpush.msra.mxu0 0.0
    %762 = vmatpush.msra.mxu0 0.0
    %763 = vmatpush.msra.mxu0 0.0
    %764 = vmatpush.msra.mxu0 %v63
    %765 = vmatpush.msra.mxu0 %v62
    %766 = vmatmul.f32.gmra.mxu0 %v748
    %v767 = vpop.f32.mrf.mxu0
    %v768 = vadd.f32 0.0, %v767
    %769 = vdwg.mxu0
    %v770 = vsel %vm87, %v768, -inf
    %771 = vmax.xlane.f32.xlu0 %v770
    %v772 = vpop.xlane.xlu0 %771
    %v773 = vsub.f32 %v768, %v772
    %v774 = vmul.f32 %v773, 1.442695
    %v775 = vpow.pop %v774
    %v776 = vsel %vm87, %v775, 0.0
    %777 = vadd.xlane.f32.xlu0 %v776
    %v778 = vpop.xlane.xlu0 %777
    %v779 = vrcp.pop %v778
    %v780 = vmul.f32 %v778, %v779
    %v781 = vsub.f32 1.0, %v780
    %v782 = vmul.f32 %v779, %v781
    %v783 = vadd.f32 %v779, %v782
    %vm784 = vweird.f32 %v778
    %vm785 = vweird.f32 %v779
    %vm786 = vmor %vm784, %vm785
    %v787 = vsel %vm786, %v779, %v783
    %v788 = vand.u32 2147483647, %v778
    %vm789 = vcmp.eq.f32.partialorder %v788, 8.507059e+37
    %v790 = vand.u32 %v778, 2147483648
    %v791 = vor.u32 1.1754944e-38, %v790
    %v792 = vsel %vm789, %v791, %v787
    %v793 = vmul.f32 %v775, %v792
    %v794 = vmul.f32 %v793, %v79
    %795 = vrot.lane.b32.xlu0 %v716, 80
    %v796 = vpop.permute.xlu0 %795
    %v798 = vsel %vm87, %v794, %v796
    %v800 = vsel %vm229, %v798, 0
    %802 = vmatpush.msra.mxu0 0.0
    %803 = vmatpush.msra.mxu0 0.0
    %804 = vmatpush.msra.mxu0 0.0
    %805 = vmatpush.msra.mxu0 0.0
    %806 = vmatpush.msra.mxu0 0.0
    %807 = vmatpush.msra.mxu0 0.0
    %808 = vmatpush.msra.mxu0 0.0
    %809 = vmatpush.msra.mxu0 0.0
    %810 = vmatpush.msra.mxu0 0.0
    %811 = vmatpush.msra.mxu0 0.0
    %812 = vmatpush.msra.mxu0 %v69
    %813 = vmatpush.msra.mxu0 %v68
    %814 = vmatpush.msra.mxu0 %v67
    %815 = vmatpush.msra.mxu0 %v66
    %816 = vmatpush.msra.mxu0 %v65
    %817 = vmatpush.msra.mxu0 %v64
    %818 = vmatmul.f32.gmra.mxu0 %v800
    %v819 = vpop.f32.mrf.mxu0
    %v820 = vadd.f32 %v228, %v819
    %821 = vdwg.mxu0
    %v822 = vxor.u32 %v820, 2147483648
    %v823 = vmul.f32 %v822, 1.442695
    %v824 = vpow.pop %v823
    %v825 = vadd.f32 %v824, 1.0
    %v826 = vrcp.pop %v825
    %v827 = vmul.f32 %v825, %v826
    %v828 = vsub.f32 1.0, %v827
    %v829 = vmul.f32 %v826, %v828
    %v830 = vadd.f32 %v826, %v829
    %vm831 = vweird.f32 %v825
    %vm832 = vweird.f32 %v826
    %vm833 = vmor %vm831, %vm832
    %v834 = vsel %vm833, %v826, %v830
    %v835 = vand.u32 2147483647, %v825
    %vm836 = vcmp.eq.f32.partialorder %v835, 8.507059e+37
    %v837 = vand.u32 %v825, 2147483648
    %v838 = vor.u32 1.1754944e-38, %v837
    %v839 = vsel %vm836, %v838, %v834
    %v840 = vmul.f32 1.0, %v839
    %v841 = vtanh.pop %v820
    %v842 = vmul.f32 %v840, %v710
    %844 = vrot.lane.b32.xlu0 %v841, 32
    %v845 = vpop.permute.xlu0 %844
    %v847 = vmul.f32 %v840, %v845
    %849 = vrot.lane.b32.xlu0 %v847, 32
    %v850 = vpop.permute.xlu0 %849
    %v852 = vadd.f32 %v842, %v850
    %v853 = vtanh.pop %v852
    %855 = vrot.lane.b32.xlu0 %v853, 32
    %v856 = vpop.permute.xlu0 %855
    %v858 = vmul.f32 %v840, %v856
    %860 = vrot.lane.b32.xlu0 %v858, 64
    %v861 = vpop.permute.xlu0 %860
    %v863 = vsel %vm294, %v861, %v852
    %v865 = vsel %vm153, %v863, 0
    %867 = vmatpush.msra.mxu0 0.0
    %868 = vmatpush.msra.mxu0 0.0
    %869 = vmatpush.msra.mxu0 0.0
    %870 = vmatpush.msra.mxu0 0.0
    %871 = vmatpush.msra.mxu0 0.0
    %872 = vmatpush.msra.mxu0 0.0
    %873 = vmatpush.msra.mxu0 0.0
    %874 = vmatpush.msra.mxu0 0.0
    %875 = vmatpush.msra.mxu0 %v61
    %876 = vmatpush.msra.mxu0 %v60
    %877 = vmatpush.msra.mxu0 %v59
    %878 = vmatpush.msra.mxu0 %v58
    %879 = vmatpush.msra.mxu0 %v57
    %880 = vmatpush.msra.mxu0 %v56
    %881 = vmatpush.msra.mxu0 %v55
    %882 = vmatpush.msra.mxu0 %v54
    %883 = vmatmul.f32.gmra.mxu0 %v865
    %v884 = vpop.f32.mrf.mxu0
    %v885 = vadd.f32 0.0, %v884
    %886 = vdwg.mxu0
    %v887 = vadd.f32 %v145, %v885
    %v888 = vtanh.pop %v887
    %v890 = vsel %vm87, %v888, 0
    %892 = vmatpush.msra.mxu0 0.0
    %893 = vmatpush.msra.mxu0 0.0
    %894 = vmatpush.msra.mxu0 0.0
    %895 = vmatpush.msra.mxu0 0.0
    %896 = vmatpush.msra.mxu0 0.0
    %897 = vmatpush.msra.mxu0 0.0
    %898 = vmatpush.msra.mxu0 0.0
    %899 = vmatpush.msra.mxu0 0.0
    %900 = vmatpush.msra.mxu0 0.0
    %901 = vmatpush.msra.mxu0 0.0
    %902 = vmatpush.msra.mxu0 0.0
    %903 = vmatpush.msra.mxu0 0.0
    %904 = vmatpush.msra.mxu0 0.0
    %905 = vmatpush.msra.mxu0 0.0
    %906 = vmatpush.msra.mxu0 %v63
    %907 = vmatpush.msra.mxu0 %v62
    %908 = vmatmul.f32.gmra.mxu0 %v890
    %v909 = vpop.f32.mrf.mxu0
    %v910 = vadd.f32 0.0, %v909
    %911 = vdwg.mxu0
    %v912 = vsel %vm87, %v910, -inf
    %913 = vmax.xlane.f32.xlu0 %v912
    %v914 = vpop.xlane.xlu0 %913
    %v915 = vsub.f32 %v910, %v914
    %v916 = vmul.f32 %v915, 1.442695
    %v917 = vpow.pop %v916
    %v918 = vsel %vm87, %v917, 0.0
    %919 = vadd.xlane.f32.xlu0 %v918
    %v920 = vpop.xlane.xlu0 %919
    %v921 = vrcp.pop %v920
    %v922 = vmul.f32 %v920, %v921
    %v923 = vsub.f32 1.0, %v922
    %v924 = vmul.f32 %v921, %v923
    %v925 = vadd.f32 %v921, %v924
    %vm926 = vweird.f32 %v920
    %vm927 = vweird.f32 %v921
    %vm928 = vmor %vm926, %vm927
    %v929 = vsel %vm928, %v921, %v925
    %v930 = vand.u32 2147483647, %v920
    %vm931 = vcmp.eq.f32.partialorder %v930, 8.507059e+37
    %v932 = vand.u32 %v920, 2147483648
    %v933 = vor.u32 1.1754944e-38, %v932
    %v934 = vsel %vm931, %v933, %v929
    %v935 = vmul.f32 %v917, %v934
    %v936 = vmul.f32 %v935, %v81
    %937 = vrot.lane.b32.xlu0 %v858, 80
    %v938 = vpop.permute.xlu0 %937
    %v940 = vsel %vm87, %v936, %v938
    %v942 = vsel %vm229, %v940, 0
    %944 = vmatpush.msra.mxu0 0.0
    %945 = vmatpush.msra.mxu0 0.0
    %946 = vmatpush.msra.mxu0 0.0
    %947 = vmatpush.msra.mxu0 0.0
    %948 = vmatpush.msra.mxu0 0.0
    %949 = vmatpush.msra.mxu0 0.0
    %950 = vmatpush.msra.mxu0 0.0
    %951 = vmatpush.msra.mxu0 0.0
    %952 = vmatpush.msra.mxu0 0.0
    %953 = vmatpush.msra.mxu0 0.0
    %954 = vmatpush.msra.mxu0 %v69
    %955 = vmatpush.msra.mxu0 %v68
    %956 = vmatpush.msra.mxu0 %v67
    %957 = vmatpush.msra.mxu0 %v66
    %958 = vmatpush.msra.mxu0 %v65
    %959 = vmatpush.msra.mxu0 %v64
    %960 = vmatmul.f32.gmra.mxu0 %v942
    %v961 = vpop.f32.mrf.mxu0
    %v962 = vadd.f32 %v228, %v961
    %963 = vdwg.mxu0
    %v964 = vxor.u32 %v962, 2147483648
    %v965 = vmul.f32 %v964, 1.442695
    %v966 = vpow.pop %v965
    %v967 = vadd.f32 %v966, 1.0
    %v968 = vrcp.pop %v967
    %v969 = vmul.f32 %v967, %v968
    %v970 = vsub.f32 1.0, %v969
    %v971 = vmul.f32 %v968, %v970
    %v972 = vadd.f32 %v968, %v971
    %vm973 = vweird.f32 %v967
    %vm974 = vweird.f32 %v968
    %vm975 = vmor %vm973, %vm974
    %v976 = vsel %vm975, %v968, %v972
    %v977 = vand.u32 2147483647, %v967
    %vm978 = vcmp.eq.f32.partialorder %v977, 8.507059e+37
    %v979 = vand.u32 %v967, 2147483648
    %v980 = vor.u32 1.1754944e-38, %v979
    %v981 = vsel %vm978, %v980, %v976
    %v982 = vmul.f32 1.0, %v981
    %v983 = vtanh.pop %v962
    %v984 = vmul.f32 %v982, %v852
    %986 = vrot.lane.b32.xlu0 %v983, 32
    %v987 = vpop.permute.xlu0 %986
    %v989 = vmul.f32 %v982, %v987
    %991 = vrot.lane.b32.xlu0 %v989, 32
    %v992 = vpop.permute.xlu0 %991
    %v994 = vadd.f32 %v984, %v992
    %v995 = vtanh.pop %v994
    %997 = vrot.lane.b32.xlu0 %v995, 32
    %v998 = vpop.permute.xlu0 %997
    %v1000 = vmul.f32 %v982, %v998
    %1002 = vrot.lane.b32.xlu0 %v1000, 64
    %v1003 = vpop.permute.xlu0 %1002
    %v1005 = vsel %vm294, %v1003, %v994
    %v1007 = vsel %vm153, %v1005, 0
    %1009 = vmatpush.msra.mxu0 0.0
    %1010 = vmatpush.msra.mxu0 0.0
    %1011 = vmatpush.msra.mxu0 0.0
    %1012 = vmatpush.msra.mxu0 0.0
    %1013 = vmatpush.msra.mxu0 0.0
    %1014 = vmatpush.msra.mxu0 0.0
    %1015 = vmatpush.msra.mxu0 0.0
    %1016 = vmatpush.msra.mxu0 0.0
    %1017 = vmatpush.msra.mxu0 %v61
    %1018 = vmatpush.msra.mxu0 %v60
    %1019 = vmatpush.msra.mxu0 %v59
    %1020 = vmatpush.msra.mxu0 %v58
    %1021 = vmatpush.msra.mxu0 %v57
    %1022 = vmatpush.msra.mxu0 %v56
    %1023 = vmatpush.msra.mxu0 %v55
    %1024 = vmatpush.msra.mxu0 %v54
    %1025 = vmatmul.f32.gmra.mxu0 %v1007
    %v1026 = vpop.f32.mrf.mxu0
    %v1027 = vadd.f32 0.0, %v1026
    %1028 = vdwg.mxu0
    %v1029 = vadd.f32 %v148, %v1027
    %v1030 = vtanh.pop %v1029
    %v1032 = vsel %vm87, %v1030, 0
    %1034 = vmatpush.msra.mxu0 0.0
    %1035 = vmatpush.msra.mxu0 0.0
    %1036 = vmatpush.msra.mxu0 0.0
    %1037 = vmatpush.msra.mxu0 0.0
    %1038 = vmatpush.msra.mxu0 0.0
    %1039 = vmatpush.msra.mxu0 0.0
    %1040 = vmatpush.msra.mxu0 0.0
    %1041 = vmatpush.msra.mxu0 0.0
    %1042 = vmatpush.msra.mxu0 0.0
    %1043 = vmatpush.msra.mxu0 0.0
    %1044 = vmatpush.msra.mxu0 0.0
    %1045 = vmatpush.msra.mxu0 0.0
    %1046 = vmatpush.msra.mxu0 0.0
    %1047 = vmatpush.msra.mxu0 0.0
    %1048 = vmatpush.msra.mxu0 %v63
    %1049 = vmatpush.msra.mxu0 %v62
    %1050 = vmatmul.f32.gmra.mxu0 %v1032
    %v1051 = vpop.f32.mrf.mxu0
    %v1052 = vadd.f32 0.0, %v1051
    %1053 = vdwg.mxu0
    %v1054 = vsel %vm87, %v1052, -inf
    %1055 = vmax.xlane.f32.xlu0 %v1054
    %v1056 = vpop.xlane.xlu0 %1055
    %v1057 = vsub.f32 %v1052, %v1056
    %v1058 = vmul.f32 %v1057, 1.442695
    %v1059 = vpow.pop %v1058
    %v1060 = vsel %vm87, %v1059, 0.0
    %1061 = vadd.xlane.f32.xlu0 %v1060
    %v1062 = vpop.xlane.xlu0 %1061
    %v1063 = vrcp.pop %v1062
    %v1064 = vmul.f32 %v1062, %v1063
    %v1065 = vsub.f32 1.0, %v1064
    %v1066 = vmul.f32 %v1063, %v1065
    %v1067 = vadd.f32 %v1063, %v1066
    %vm1068 = vweird.f32 %v1062
    %vm1069 = vweird.f32 %v1063
    %vm1070 = vmor %vm1068, %vm1069
    %v1071 = vsel %vm1070, %v1063, %v1067
    %v1072 = vand.u32 2147483647, %v1062
    %vm1073 = vcmp.eq.f32.partialorder %v1072, 8.507059e+37
    %v1074 = vand.u32 %v1062, 2147483648
    %v1075 = vor.u32 1.1754944e-38, %v1074
    %v1076 = vsel %vm1073, %v1075, %v1071
    %v1077 = vmul.f32 %v1059, %v1076
    %v1078 = vmul.f32 %v1077, %v83
    %1079 = vrot.lane.b32.xlu0 %v1000, 80
    %v1080 = vpop.permute.xlu0 %1079
    %v1082 = vsel %vm87, %v1078, %v1080
    %v1084 = vsel %vm229, %v1082, 0
    %1086 = vmatpush.msra.mxu0 0.0
    %1087 = vmatpush.msra.mxu0 0.0
    %1088 = vmatpush.msra.mxu0 0.0
    %1089 = vmatpush.msra.mxu0 0.0
    %1090 = vmatpush.msra.mxu0 0.0
    %1091 = vmatpush.msra.mxu0 0.0
    %1092 = vmatpush.msra.mxu0 0.0
    %1093 = vmatpush.msra.mxu0 0.0
    %1094 = vmatpush.msra.mxu0 0.0
    %1095 = vmatpush.msra.mxu0 0.0
    %1096 = vmatpush.msra.mxu0 %v69
    %1097 = vmatpush.msra.mxu0 %v68
    %1098 = vmatpush.msra.mxu0 %v67
    %1099 = vmatpush.msra.mxu0 %v66
    %1100 = vmatpush.msra.mxu0 %v65
    %1101 = vmatpush.msra.mxu0 %v64
    %1102 = vmatmul.f32.gmra.mxu0 %v1084
    %v1103 = vpop.f32.mrf.mxu0
    %v1104 = vadd.f32 %v228, %v1103
    %1105 = vdwg.mxu0
    %v1106 = vxor.u32 %v1104, 2147483648
    %v1107 = vmul.f32 %v1106, 1.442695
    %v1108 = vpow.pop %v1107
    %v1109 = vadd.f32 %v1108, 1.0
    %v1110 = vrcp.pop %v1109
    %v1111 = vmul.f32 %v1109, %v1110
    %v1112 = vsub.f32 1.0, %v1111
    %v1113 = vmul.f32 %v1110, %v1112
    %v1114 = vadd.f32 %v1110, %v1113
    %vm1115 = vweird.f32 %v1109
    %vm1116 = vweird.f32 %v1110
    %vm1117 = vmor %vm1115, %vm1116
    %v1118 = vsel %vm1117, %v1110, %v1114
    %v1119 = vand.u32 2147483647, %v1109
    %vm1120 = vcmp.eq.f32.partialorder %v1119, 8.507059e+37
    %v1121 = vand.u32 %v1109, 2147483648
    %v1122 = vor.u32 1.1754944e-38, %v1121
    %v1123 = vsel %vm1120, %v1122, %v1118
    %v1124 = vmul.f32 1.0, %v1123
    %v1125 = vtanh.pop %v1104
    %v1126 = vmul.f32 %v1124, %v994
    %1128 = vrot.lane.b32.xlu0 %v1125, 32
    %v1129 = vpop.permute.xlu0 %1128
    %v1131 = vmul.f32 %v1124, %v1129
    %1133 = vrot.lane.b32.xlu0 %v1131, 32
    %v1134 = vpop.permute.xlu0 %1133
    %v1136 = vadd.f32 %v1126, %v1134
    %v1137 = vtanh.pop %v1136
    %1139 = vrot.lane.b32.xlu0 %v1137, 32
    %v1140 = vpop.permute.xlu0 %1139
    %v1142 = vmul.f32 %v1124, %v1140
    %1144 = vrot.lane.b32.xlu0 %v1142, 64
    %v1145 = vpop.permute.xlu0 %1144
    %v1147 = vsel %vm294, %v1145, %v1136
    %v1149 = vsel %vm153, %v1147, 0
    %1151 = vmatpush.msra.mxu0 0.0
    %1152 = vmatpush.msra.mxu0 0.0
    %1153 = vmatpush.msra.mxu0 0.0
    %1154 = vmatpush.msra.mxu0 0.0
    %1155 = vmatpush.msra.mxu0 0.0
    %1156 = vmatpush.msra.mxu0 0.0
    %1157 = vmatpush.msra.mxu0 0.0
    %1158 = vmatpush.msra.mxu0 0.0
    %1159 = vmatpush.msra.mxu0 %v61
    %1160 = vmatpush.msra.mxu0 %v60
    %1161 = vmatpush.msra.mxu0 %v59
    %1162 = vmatpush.msra.mxu0 %v58
    %1163 = vmatpush.msra.mxu0 %v57
    %1164 = vmatpush.msra.mxu0 %v56
    %1165 = vmatpush.msra.mxu0 %v55
    %1166 = vmatpush.msra.mxu0 %v54
    %1167 = vmatmul.f32.gmra.mxu0 %v1149
    %v1168 = vpop.f32.mrf.mxu0
    %v1169 = vadd.f32 0.0, %v1168
    %1170 = vdwg.mxu0
    %v1171 = vadd.f32 %v151, %v1169
    %v1172 = vtanh.pop %v1171
    %v1174 = vsel %vm87, %v1172, 0
    %1176 = vmatpush.msra.mxu0 0.0
    %1177 = vmatpush.msra.mxu0 0.0
    %1178 = vmatpush.msra.mxu0 0.0
    %1179 = vmatpush.msra.mxu0 0.0
    %1180 = vmatpush.msra.mxu0 0.0
    %1181 = vmatpush.msra.mxu0 0.0
    %1182 = vmatpush.msra.mxu0 0.0
    %1183 = vmatpush.msra.mxu0 0.0
    %1184 = vmatpush.msra.mxu0 0.0
    %1185 = vmatpush.msra.mxu0 0.0
    %1186 = vmatpush.msra.mxu0 0.0
    %1187 = vmatpush.msra.mxu0 0.0
    %1188 = vmatpush.msra.mxu0 0.0
    %1189 = vmatpush.msra.mxu0 0.0
    %1190 = vmatpush.msra.mxu0 %v63
    %1191 = vmatpush.msra.mxu0 %v62
    %1192 = vmatmul.f32.gmra.mxu0 %v1174
    %v1193 = vpop.f32.mrf.mxu0
    %v1194 = vadd.f32 0.0, %v1193
    %1195 = vdwg.mxu0
    %v1196 = vsel %vm87, %v1194, -inf
    %1197 = vmax.xlane.f32.xlu0 %v1196
    %v1198 = vpop.xlane.xlu0 %1197
    %v1199 = vsub.f32 %v1194, %v1198
    %v1200 = vmul.f32 %v1199, 1.442695
    %v1201 = vpow.pop %v1200
    %v1202 = vsel %vm87, %v1201, 0.0
    %1203 = vadd.xlane.f32.xlu0 %v1202
    %v1204 = vpop.xlane.xlu0 %1203
    %v1205 = vrcp.pop %v1204
    %v1206 = vmul.f32 %v1204, %v1205
    %v1207 = vsub.f32 1.0, %v1206
    %v1208 = vmul.f32 %v1205, %v1207
    %v1209 = vadd.f32 %v1205, %v1208
    %vm1210 = vweird.f32 %v1204
    %vm1211 = vweird.f32 %v1205
    %vm1212 = vmor %vm1210, %vm1211
    %v1213 = vsel %vm1212, %v1205, %v1209
    %v1214 = vand.u32 2147483647, %v1204
    %vm1215 = vcmp.eq.f32.partialorder %v1214, 8.507059e+37
    %v1216 = vand.u32 %v1204, 2147483648
    %v1217 = vor.u32 1.1754944e-38, %v1216
    %v1218 = vsel %vm1215, %v1217, %v1213
    %v1219 = vmul.f32 %v1201, %v1218
    %v1220 = vmul.f32 %v1219, %v85
    %1221 = vrot.lane.b32.xlu0 %v1142, 80
    %v1222 = vpop.permute.xlu0 %1221
    %v1224 = vsel %vm87, %v1220, %v1222
    %v1226 = vsel %vm229, %v1224, 0
    %1228 = vmatpush.msra.mxu0 0.0
    %1229 = vmatpush.msra.mxu0 0.0
    %1230 = vmatpush.msra.mxu0 0.0
    %1231 = vmatpush.msra.mxu0 0.0
    %1232 = vmatpush.msra.mxu0 0.0
    %1233 = vmatpush.msra.mxu0 0.0
    %1234 = vmatpush.msra.mxu0 0.0
    %1235 = vmatpush.msra.mxu0 0.0
    %1236 = vmatpush.msra.mxu0 0.0
    %1237 = vmatpush.msra.mxu0 0.0
    %1238 = vmatpush.msra.mxu0 %v69
    %1239 = vmatpush.msra.mxu0 %v68
    %1240 = vmatpush.msra.mxu0 %v67
    %1241 = vmatpush.msra.mxu0 %v66
    %1242 = vmatpush.msra.mxu0 %v65
    %1243 = vmatpush.msra.mxu0 %v64
    %1244 = vmatmul.f32.gmra.mxu0 %v1226
    %v1245 = vpop.f32.mrf.mxu0
    %v1246 = vadd.f32 %v228, %v1245
    %1247 = vdwg.mxu0
    %v1248 = vxor.u32 %v1246, 2147483648
    %v1249 = vmul.f32 %v1248, 1.442695
    %v1250 = vpow.pop %v1249
    %v1251 = vadd.f32 %v1250, 1.0
    %v1252 = vrcp.pop %v1251
    %v1253 = vmul.f32 %v1251, %v1252
    %v1254 = vsub.f32 1.0, %v1253
    %v1255 = vmul.f32 %v1252, %v1254
    %v1256 = vadd.f32 %v1252, %v1255
    %vm1257 = vweird.f32 %v1251
    %vm1258 = vweird.f32 %v1252
    %vm1259 = vmor %vm1257, %vm1258
    %v1260 = vsel %vm1259, %v1252, %v1256
    %v1261 = vand.u32 2147483647, %v1251
    %vm1262 = vcmp.eq.f32.partialorder %v1261, 8.507059e+37
    %v1263 = vand.u32 %v1251, 2147483648
    %v1264 = vor.u32 1.1754944e-38, %v1263
    %v1265 = vsel %vm1262, %v1264, %v1260
    %v1266 = vmul.f32 1.0, %v1265
    %v1267 = vtanh.pop %v1246
    %v1268 = vmul.f32 %v1266, %v1136
    %1270 = vrot.lane.b32.xlu0 %v1267, 32
    %v1271 = vpop.permute.xlu0 %1270
    %v1273 = vmul.f32 %v1266, %v1271
    %1275 = vrot.lane.b32.xlu0 %v1273, 32
    %v1276 = vpop.permute.xlu0 %1275
    %v1278 = vadd.f32 %v1268, %v1276
    %v1279 = vtanh.pop %v1278
    %1281 = vrot.lane.b32.xlu0 %v1279, 32
    %v1282 = vpop.permute.xlu0 %1281
    %v1284 = vmul.f32 %v1266, %v1282
    %1286 = vrot.lane.b32.xlu0 %v367, 16
    %v1287 = vpop.permute.xlu0 %1286
    %1290 = vrot.lane.b32.xlu0 %v509, 32
    %v1291 = vpop.permute.xlu0 %1290
    %1294 = vrot.lane.b32.xlu0 %v651, 48
    %v1295 = vpop.permute.xlu0 %1294
    %1298 = vrot.lane.b32.xlu0 %v793, 64
    %v1299 = vpop.permute.xlu0 %1298
    %1302 = vrot.lane.b32.xlu0 %v935, 80
    %v1303 = vpop.permute.xlu0 %1302
    %1306 = vrot.lane.b32.xlu0 %v1077, 96
    %v1307 = vpop.permute.xlu0 %1306
    %1310 = vrot.lane.b32.xlu0 %v1219, 112
    %v1311 = vpop.permute.xlu0 %1310
    %v1313 = vsel %vm87, %v225, %v1287
    %v1314 = vsel %vm294, %v1313, %v1291
    %v1315 = vsel %vm229, %v1314, %v1295
    %v1316 = vsel %vm153, %v1315, %v1299
    %vm1317 = vcmask 654336
    %v1318 = vsel %vm1317, %v1316, %v1303
    %vm1319 = vcmask 785408
    %v1320 = vsel %vm1319, %v1318, %v1307
    %vm1321 = vcmask 916480
    %v1322 = vsel %vm1321, %v1320, %v1311
    %1323 = vst [vmem:[#allocation7] sm:$0xff] %v1322
    %v1324 = vld [vmem:[#allocation5 + $0xa0] sm:$0xff]
    %v1325 = vld [vmem:[#allocation5 + $0xa8] sm:$0xff]
    %v1326 = vld [vmem:[#allocation5 + $0xb0] sm:$0xff]
    %v1327 = vld [vmem:[#allocation5 + $0xb8] sm:$0xff]
    %v1328 = vld [vmem:[#allocation5 + $0xc0] sm:$0x1]
    %v1329 = vld [vmem:[#allocation5 + $0xc8] sm:$0xff]
    %v1330 = vld [vmem:[#allocation5 + $0xd0] sm:$0xff]
    %v1331 = vld [vmem:[#allocation5 + $0xd8] sm:$0xff]
    %v1332 = vld [vmem:[#allocation5 + $0xe0] sm:$0xff]
    %v1333 = vld [vmem:[#allocation5 + $0xe8] sm:$0xff]
    %v1334 = vld [vmem:[#allocation5 + $0xf0] sm:$0xff]
    %v1335 = vld [vmem:[#allocation5 + $0xf8] sm:$0xff]
    %v1336 = vld [vmem:[#allocation5 + $0x100] sm:$0xff]
    %v1337 = vld [vmem:[#allocation5 + $0x108] sm:$0xff]
    %v1338 = vld [vmem:[#allocation5 + $0x110] sm:$0x1]
    %v1339 = vld [vmem:[#allocation5 + $0x118] sm:$0x1]
    %v1340 = vld [vmem:[#allocation5 + $0x120] sm:$0x1]
    %v1341 = vld [vmem:[#allocation5 + $0x128] sm:$0x1]
    %v1342 = vperm.slane %v1328, 0
    %1344 = vrot.lane.b32.xlu0 %v1284, 64
    %v1345 = vpop.permute.xlu0 %1344
    %v1346 = vsel %vm294, %v292, 0
    %v1348 = vsel %vm294, %v435, 0
    %v1350 = vsel %vm294, %v577, 0
    %v1352 = vsel %vm294, %v719, 0
    %v1354 = vsel %vm294, %v861, 0
    %v1356 = vsel %vm294, %v1003, 0
    %v1358 = vsel %vm294, %v1145, 0
    %v1360 = vsel %vm294, %v1345, 0
    %1362 = vmatpush.msra.mxu0 0.0
    %1363 = vmatpush.msra.mxu0 0.0
    %1364 = vmatpush.msra.mxu0 0.0
    %1365 = vmatpush.msra.mxu0 0.0
    %1366 = vmatpush.msra.mxu0 0.0
    %1367 = vmatpush.msra.mxu0 0.0
    %1368 = vmatpush.msra.mxu0 0.0
    %1369 = vmatpush.msra.mxu0 0.0
    %1370 = vmatpush.msra.mxu0 0.0
    %1371 = vmatpush.msra.mxu0 0.0
    %1372 = vmatpush.msra.mxu0 0.0
    %1373 = vmatpush.msra.mxu0 0.0
    %1374 = vmatpush.msra.mxu0 %v1327
    %1375 = vmatpush.msra.mxu0 %v1326
    %1376 = vmatpush.msra.mxu0 %v1325
    %1377 = vmatpush.msra.mxu0 %v1324
    %1378 = vmatmul.f32.gmra.mxu0 %v1346
    %v1379 = vpop.f32.mrf.mxu0
    %v1380 = vadd.f32 %v1342, %v1379
    %1381 = vmatmul.f32.gmra.mxu0 %v1348
    %v1382 = vpop.f32.mrf.mxu0
    %v1383 = vadd.f32 %v1342, %v1382
    %1384 = vmatmul.f32.gmra.mxu0 %v1350
    %v1385 = vpop.f32.mrf.mxu0
    %v1386 = vadd.f32 %v1342, %v1385
    %1387 = vmatmul.f32.gmra.mxu0 %v1352
    %v1388 = vpop.f32.mrf.mxu0
    %v1389 = vadd.f32 %v1342, %v1388
    %1390 = vmatmul.f32.gmra.mxu0 %v1354
    %v1391 = vpop.f32.mrf.mxu0
    %v1392 = vadd.f32 %v1342, %v1391
    %1393 = vmatmul.f32.gmra.mxu0 %v1356
    %v1394 = vpop.f32.mrf.mxu0
    %v1395 = vadd.f32 %v1342, %v1394
    %1396 = vmatmul.f32.gmra.mxu0 %v1358
    %v1397 = vpop.f32.mrf.mxu0
    %v1398 = vadd.f32 %v1342, %v1397
    %1399 = vmatmul.f32.gmra.mxu0 %v1360
    %v1400 = vpop.f32.mrf.mxu0
    %v1401 = vadd.f32 %v1342, %v1400
    %1402 = vdwg.mxu0
    %v1403 = vtanh.pop %v1380
    %v1404 = vtanh.pop %v1383
    %v1405 = vtanh.pop %v1386
    %v1406 = vtanh.pop %v1389
    %v1407 = vtanh.pop %v1392
    %v1408 = vtanh.pop %v1395
    %v1409 = vtanh.pop %v1398
    %v1410 = vtanh.pop %v1401
    %vm1411 = vcmask 64512
    %v1413 = vsel %vm1411, %v1403, 0
    %v1416 = vsel %vm1411, %v1404, 0
    %v1419 = vsel %vm1411, %v1405, 0
    %v1422 = vsel %vm1411, %v1406, 0
    %v1425 = vsel %vm1411, %v1407, 0
    %v1428 = vsel %vm1411, %v1408, 0
    %v1431 = vsel %vm1411, %v1409, 0
    %v1434 = vsel %vm1411, %v1410, 0
    %1436 = vmatpush.msra.mxu0 0.0
    %1437 = vmatpush.msra.mxu0 0.0
    %1438 = vmatpush.msra.mxu0 0.0
    %1439 = vmatpush.msra.mxu0 0.0
    %1440 = vmatpush.msra.mxu0 0.0
    %1441 = vmatpush.msra.mxu0 0.0
    %1442 = vmatpush.msra.mxu0 0.0
    %1443 = vmatpush.msra.mxu0 0.0
    %1444 = vmatpush.msra.mxu0 0.0
    %1445 = vmatpush.msra.mxu0 0.0
    %1446 = vmatpush.msra.mxu0 0.0
    %1447 = vmatpush.msra.mxu0 0.0
    %1448 = vmatpush.msra.mxu0 0.0
    %1449 = vmatpush.msra.mxu0 0.0
    %1450 = vmatpush.msra.mxu0 0.0
    %1451 = vmatpush.msra.mxu0 %v1329
    %1452 = vmatmul.f32.gmra.mxu0 %v1413
    %v1453 = vpop.f32.mrf.mxu0
    %v1454 = vadd.f32 0.0, %v1453
    %1455 = vmatmul.f32.gmra.mxu0 %v1416
    %v1456 = vpop.f32.mrf.mxu0
    %v1457 = vadd.f32 0.0, %v1456
    %1458 = vmatmul.f32.gmra.mxu0 %v1419
    %v1459 = vpop.f32.mrf.mxu0
    %v1460 = vadd.f32 0.0, %v1459
    %1461 = vmatmul.f32.gmra.mxu0 %v1422
    %v1462 = vpop.f32.mrf.mxu0
    %v1463 = vadd.f32 0.0, %v1462
    %1464 = vmatmul.f32.gmra.mxu0 %v1425
    %v1465 = vpop.f32.mrf.mxu0
    %v1466 = vadd.f32 0.0, %v1465
    %1467 = vmatmul.f32.gmra.mxu0 %v1428
    %v1468 = vpop.f32.mrf.mxu0
    %v1469 = vadd.f32 0.0, %v1468
    %1470 = vmatmul.f32.gmra.mxu0 %v1431
    %v1471 = vpop.f32.mrf.mxu0
    %v1472 = vadd.f32 0.0, %v1471
    %1473 = vmatmul.f32.gmra.mxu0 %v1434
    %v1474 = vpop.f32.mrf.mxu0
    %v1475 = vadd.f32 0.0, %v1474
    %1476 = vdwg.mxu0
    %v1477 = vsel %vm1411, %v1454, -inf
    %1478 = vmax.xlane.f32.xlu0 %v1477
    %v1479 = vpop.xlane.xlu0 %1478
    %v1480 = vsel %vm1411, %v1457, -inf
    %1481 = vmax.xlane.f32.xlu0 %v1480
    %v1482 = vpop.xlane.xlu0 %1481
    %v1483 = vsel %vm1411, %v1460, -inf
    %1484 = vmax.xlane.f32.xlu0 %v1483
    %v1485 = vpop.xlane.xlu0 %1484
    %v1486 = vsel %vm1411, %v1463, -inf
    %1487 = vmax.xlane.f32.xlu0 %v1486
    %v1488 = vpop.xlane.xlu0 %1487
    %v1489 = vsel %vm1411, %v1466, -inf
    %1490 = vmax.xlane.f32.xlu0 %v1489
    %v1491 = vpop.xlane.xlu0 %1490
    %v1492 = vsel %vm1411, %v1469, -inf
    %1493 = vmax.xlane.f32.xlu0 %v1492
    %v1494 = vpop.xlane.xlu0 %1493
    %v1495 = vsel %vm1411, %v1472, -inf
    %1496 = vmax.xlane.f32.xlu0 %v1495
    %v1497 = vpop.xlane.xlu0 %1496
    %v1498 = vsel %vm1411, %v1475, -inf
    %1499 = vmax.xlane.f32.xlu0 %v1498
    %v1500 = vpop.xlane.xlu0 %1499
    %v1501 = vsub.f32 %v1454, %v1479
    %v1502 = vsub.f32 %v1457, %v1482
    %v1503 = vsub.f32 %v1460, %v1485
    %v1504 = vsub.f32 %v1463, %v1488
    %v1505 = vsub.f32 %v1466, %v1491
    %v1506 = vsub.f32 %v1469, %v1494
    %v1507 = vsub.f32 %v1472, %v1497
    %v1508 = vsub.f32 %v1475, %v1500
    %v1509 = vmul.f32 %v1501, 1.442695
    %v1510 = vpow.pop %v1509
    %v1511 = vmul.f32 %v1502, 1.442695
    %v1512 = vpow.pop %v1511
    %v1513 = vmul.f32 %v1503, 1.442695
    %v1514 = vpow.pop %v1513
    %v1515 = vmul.f32 %v1504, 1.442695
    %v1516 = vpow.pop %v1515
    %v1517 = vmul.f32 %v1505, 1.442695
    %v1518 = vpow.pop %v1517
    %v1519 = vmul.f32 %v1506, 1.442695
    %v1520 = vpow.pop %v1519
    %v1521 = vmul.f32 %v1507, 1.442695
    %v1522 = vpow.pop %v1521
    %v1523 = vmul.f32 %v1508, 1.442695
    %v1524 = vpow.pop %v1523
    %v1525 = vsel %vm1411, %v1510, 0.0
    %1526 = vadd.xlane.f32.xlu0 %v1525
    %v1527 = vpop.xlane.xlu0 %1526
    %v1528 = vsel %vm1411, %v1512, 0.0
    %1529 = vadd.xlane.f32.xlu0 %v1528
    %v1530 = vpop.xlane.xlu0 %1529
    %v1531 = vsel %vm1411, %v1514, 0.0
    %1532 = vadd.xlane.f32.xlu0 %v1531
    %v1533 = vpop.xlane.xlu0 %1532
    %v1534 = vsel %vm1411, %v1516, 0.0
    %1535 = vadd.xlane.f32.xlu0 %v1534
    %v1536 = vpop.xlane.xlu0 %1535
    %v1537 = vsel %vm1411, %v1518, 0.0
    %1538 = vadd.xlane.f32.xlu0 %v1537
    %v1539 = vpop.xlane.xlu0 %1538
    %v1540 = vsel %vm1411, %v1520, 0.0
    %1541 = vadd.xlane.f32.xlu0 %v1540
    %v1542 = vpop.xlane.xlu0 %1541
    %v1543 = vsel %vm1411, %v1522, 0.0
    %1544 = vadd.xlane.f32.xlu0 %v1543
    %v1545 = vpop.xlane.xlu0 %1544
    %v1546 = vsel %vm1411, %v1524, 0.0
    %1547 = vadd.xlane.f32.xlu0 %v1546
    %v1548 = vpop.xlane.xlu0 %1547
    %v1549 = vrcp.pop %v1527
    %v1550 = vmul.f32 %v1527, %v1549
    %v1551 = vsub.f32 1.0, %v1550
    %v1552 = vmul.f32 %v1549, %v1551
    %v1553 = vadd.f32 %v1549, %v1552
    %vm1554 = vweird.f32 %v1527
    %vm1555 = vweird.f32 %v1549
    %vm1556 = vmor %vm1554, %vm1555
    %v1557 = vsel %vm1556, %v1549, %v1553
    %v1558 = vand.u32 2147483647, %v1527
    %vm1559 = vcmp.eq.f32.partialorder %v1558, 8.507059e+37
    %v1560 = vand.u32 %v1527, 2147483648
    %v1561 = vor.u32 1.1754944e-38, %v1560
    %v1562 = vsel %vm1559, %v1561, %v1557
    %v1563 = vmul.f32 %v1510, %v1562
    %v1564 = vrcp.pop %v1530
    %v1565 = vmul.f32 %v1530, %v1564
    %v1566 = vsub.f32 1.0, %v1565
    %v1567 = vmul.f32 %v1564, %v1566
    %v1568 = vadd.f32 %v1564, %v1567
    %vm1569 = vweird.f32 %v1530
    %vm1570 = vweird.f32 %v1564
    %vm1571 = vmor %vm1569, %vm1570
    %v1572 = vsel %vm1571, %v1564, %v1568
    %v1573 = vand.u32 2147483647, %v1530
    %vm1574 = vcmp.eq.f32.partialorder %v1573, 8.507059e+37
    %v1575 = vand.u32 %v1530, 2147483648
    %v1576 = vor.u32 1.1754944e-38, %v1575
    %v1577 = vsel %vm1574, %v1576, %v1572
    %v1578 = vmul.f32 %v1512, %v1577
    %v1579 = vrcp.pop %v1533
    %v1580 = vmul.f32 %v1533, %v1579
    %v1581 = vsub.f32 1.0, %v1580
    %v1582 = vmul.f32 %v1579, %v1581
    %v1583 = vadd.f32 %v1579, %v1582
    %vm1584 = vweird.f32 %v1533
    %vm1585 = vweird.f32 %v1579
    %vm1586 = vmor %vm1584, %vm1585
    %v1587 = vsel %vm1586, %v1579, %v1583
    %v1588 = vand.u32 2147483647, %v1533
    %vm1589 = vcmp.eq.f32.partialorder %v1588, 8.507059e+37
    %v1590 = vand.u32 %v1533, 2147483648
    %v1591 = vor.u32 1.1754944e-38, %v1590
    %v1592 = vsel %vm1589, %v1591, %v1587
    %v1593 = vmul.f32 %v1514, %v1592
    %v1594 = vrcp.pop %v1536
    %v1595 = vmul.f32 %v1536, %v1594
    %v1596 = vsub.f32 1.0, %v1595
    %v1597 = vmul.f32 %v1594, %v1596
    %v1598 = vadd.f32 %v1594, %v1597
    %vm1599 = vweird.f32 %v1536
    %vm1600 = vweird.f32 %v1594
    %vm1601 = vmor %vm1599, %vm1600
    %v1602 = vsel %vm1601, %v1594, %v1598
    %v1603 = vand.u32 2147483647, %v1536
    %vm1604 = vcmp.eq.f32.partialorder %v1603, 8.507059e+37
    %v1605 = vand.u32 %v1536, 2147483648
    %v1606 = vor.u32 1.1754944e-38, %v1605
    %v1607 = vsel %vm1604, %v1606, %v1602
    %v1608 = vmul.f32 %v1516, %v1607
    %v1609 = vrcp.pop %v1539
    %v1610 = vmul.f32 %v1539, %v1609
    %v1611 = vsub.f32 1.0, %v1610
    %v1612 = vmul.f32 %v1609, %v1611
    %v1613 = vadd.f32 %v1609, %v1612
    %vm1614 = vweird.f32 %v1539
    %vm1615 = vweird.f32 %v1609
    %vm1616 = vmor %vm1614, %vm1615
    %v1617 = vsel %vm1616, %v1609, %v1613
    %v1618 = vand.u32 2147483647, %v1539
    %vm1619 = vcmp.eq.f32.partialorder %v1618, 8.507059e+37
    %v1620 = vand.u32 %v1539, 2147483648
    %v1621 = vor.u32 1.1754944e-38, %v1620
    %v1622 = vsel %vm1619, %v1621, %v1617
    %v1623 = vmul.f32 %v1518, %v1622
    %v1624 = vrcp.pop %v1542
    %v1625 = vmul.f32 %v1542, %v1624
    %v1626 = vsub.f32 1.0, %v1625
    %v1627 = vmul.f32 %v1624, %v1626
    %v1628 = vadd.f32 %v1624, %v1627
    %vm1629 = vweird.f32 %v1542
    %vm1630 = vweird.f32 %v1624
    %vm1631 = vmor %vm1629, %vm1630
    %v1632 = vsel %vm1631, %v1624, %v1628
    %v1633 = vand.u32 2147483647, %v1542
    %vm1634 = vcmp.eq.f32.partialorder %v1633, 8.507059e+37
    %v1635 = vand.u32 %v1542, 2147483648
    %v1636 = vor.u32 1.1754944e-38, %v1635
    %v1637 = vsel %vm1634, %v1636, %v1632
    %v1638 = vmul.f32 %v1520, %v1637
    %v1639 = vrcp.pop %v1545
    %v1640 = vmul.f32 %v1545, %v1639
    %v1641 = vsub.f32 1.0, %v1640
    %v1642 = vmul.f32 %v1639, %v1641
    %v1643 = vadd.f32 %v1639, %v1642
    %vm1644 = vweird.f32 %v1545
    %vm1645 = vweird.f32 %v1639
    %vm1646 = vmor %vm1644, %vm1645
    %v1647 = vsel %vm1646, %v1639, %v1643
    %v1648 = vand.u32 2147483647, %v1545
    %vm1649 = vcmp.eq.f32.partialorder %v1648, 8.507059e+37
    %v1650 = vand.u32 %v1545, 2147483648
    %v1651 = vor.u32 1.1754944e-38, %v1650
    %v1652 = vsel %vm1649, %v1651, %v1647
    %v1653 = vmul.f32 %v1522, %v1652
    %v1654 = vrcp.pop %v1548
    %v1655 = vmul.f32 %v1548, %v1654
    %v1656 = vsub.f32 1.0, %v1655
    %v1657 = vmul.f32 %v1654, %v1656
    %v1658 = vadd.f32 %v1654, %v1657
    %vm1659 = vweird.f32 %v1548
    %vm1660 = vweird.f32 %v1654
    %vm1661 = vmor %vm1659, %vm1660
    %v1662 = vsel %vm1661, %v1654, %v1658
    %v1663 = vand.u32 2147483647, %v1548
    %vm1664 = vcmp.eq.f32.partialorder %v1663, 8.507059e+37
    %v1665 = vand.u32 %v1548, 2147483648
    %v1666 = vor.u32 1.1754944e-38, %v1665
    %v1667 = vsel %vm1664, %v1666, %v1662
    %v1668 = vmul.f32 %v1524, %v1667
    %1670 = vset.pattern.permute.xlu0 0
    %1671 = vperm.xlu0 %1670, %v1563
    %v1672 = vpop.permute.xlu0 %1671
    %v1674 = vmul.f32 %v1672, %v289
    %1675 = vset.pattern.permute.xlu0 1
    %1676 = vperm.xlu0 %1675, %v1563
    %v1677 = vpop.permute.xlu0 %1676
    %v1679 = vmul.f32 %v1677, %v432
    %v1680 = vadd.f32 %v1674, %v1679
    %1681 = vset.pattern.permute.xlu0 2
    %1682 = vperm.xlu0 %1681, %v1563
    %v1683 = vpop.permute.xlu0 %1682
    %v1685 = vmul.f32 %v1683, %v574
    %v1686 = vadd.f32 %v1680, %v1685
    %1687 = vset.pattern.permute.xlu0 3
    %1688 = vperm.xlu0 %1687, %v1563
    %v1689 = vpop.permute.xlu0 %1688
    %v1691 = vmul.f32 %v1689, %v716
    %v1692 = vadd.f32 %v1686, %v1691
    %1693 = vset.pattern.permute.xlu0 4
    %1694 = vperm.xlu0 %1693, %v1563
    %v1695 = vpop.permute.xlu0 %1694
    %v1697 = vmul.f32 %v1695, %v858
    %v1698 = vadd.f32 %v1692, %v1697
    %1699 = vset.pattern.permute.xlu0 5
    %1700 = vperm.xlu0 %1699, %v1563
    %v1701 = vpop.permute.xlu0 %1700
    %v1703 = vmul.f32 %v1701, %v1000
    %v1704 = vadd.f32 %v1698, %v1703
    %1705 = vset.pattern.permute.xlu0 6
    %1706 = vperm.xlu0 %1705, %v1563
    %v1707 = vpop.permute.xlu0 %1706
    %v1709 = vmul.f32 %v1707, %v1142
    %v1710 = vadd.f32 %v1704, %v1709
    %1711 = vset.pattern.permute.xlu0 7
    %1712 = vperm.xlu0 %1711, %v1563
    %v1713 = vpop.permute.xlu0 %1712
    %v1715 = vmul.f32 %v1713, %v1284
    %v1716 = vadd.f32 %v1710, %v1715
    %1718 = vset.pattern.permute.xlu0 0
    %1719 = vperm.xlu0 %1718, %v1578
    %v1720 = vpop.permute.xlu0 %1719
    %v1722 = vmul.f32 %v1720, %v289
    %1723 = vset.pattern.permute.xlu0 1
    %1724 = vperm.xlu0 %1723, %v1578
    %v1725 = vpop.permute.xlu0 %1724
    %v1727 = vmul.f32 %v1725, %v432
    %v1728 = vadd.f32 %v1722, %v1727
    %1729 = vset.pattern.permute.xlu0 2
    %1730 = vperm.xlu0 %1729, %v1578
    %v1731 = vpop.permute.xlu0 %1730
    %v1733 = vmul.f32 %v1731, %v574
    %v1734 = vadd.f32 %v1728, %v1733
    %1735 = vset.pattern.permute.xlu0 3
    %1736 = vperm.xlu0 %1735, %v1578
    %v1737 = vpop.permute.xlu0 %1736
    %v1739 = vmul.f32 %v1737, %v716
    %v1740 = vadd.f32 %v1734, %v1739
    %1741 = vset.pattern.permute.xlu0 4
    %1742 = vperm.xlu0 %1741, %v1578
    %v1743 = vpop.permute.xlu0 %1742
    %v1745 = vmul.f32 %v1743, %v858
    %v1746 = vadd.f32 %v1740, %v1745
    %1747 = vset.pattern.permute.xlu0 5
    %1748 = vperm.xlu0 %1747, %v1578
    %v1749 = vpop.permute.xlu0 %1748
    %v1751 = vmul.f32 %v1749, %v1000
    %v1752 = vadd.f32 %v1746, %v1751
    %1753 = vset.pattern.permute.xlu0 6
    %1754 = vperm.xlu0 %1753, %v1578
    %v1755 = vpop.permute.xlu0 %1754
    %v1757 = vmul.f32 %v1755, %v1142
    %v1758 = vadd.f32 %v1752, %v1757
    %1759 = vset.pattern.permute.xlu0 7
    %1760 = vperm.xlu0 %1759, %v1578
    %v1761 = vpop.permute.xlu0 %1760
    %v1763 = vmul.f32 %v1761, %v1284
    %v1764 = vadd.f32 %v1758, %v1763
    %1766 = vset.pattern.permute.xlu0 0
    %1767 = vperm.xlu0 %1766, %v1593
    %v1768 = vpop.permute.xlu0 %1767
    %v1770 = vmul.f32 %v1768, %v289
    %1771 = vset.pattern.permute.xlu0 1
    %1772 = vperm.xlu0 %1771, %v1593
    %v1773 = vpop.permute.xlu0 %1772
    %v1775 = vmul.f32 %v1773, %v432
    %v1776 = vadd.f32 %v1770, %v1775
    %1777 = vset.pattern.permute.xlu0 2
    %1778 = vperm.xlu0 %1777, %v1593
    %v1779 = vpop.permute.xlu0 %1778
    %v1781 = vmul.f32 %v1779, %v574
    %v1782 = vadd.f32 %v1776, %v1781
    %1783 = vset.pattern.permute.xlu0 3
    %1784 = vperm.xlu0 %1783, %v1593
    %v1785 = vpop.permute.xlu0 %1784
    %v1787 = vmul.f32 %v1785, %v716
    %v1788 = vadd.f32 %v1782, %v1787
    %1789 = vset.pattern.permute.xlu0 4
    %1790 = vperm.xlu0 %1789, %v1593
    %v1791 = vpop.permute.xlu0 %1790
    %v1793 = vmul.f32 %v1791, %v858
    %v1794 = vadd.f32 %v1788, %v1793
    %1795 = vset.pattern.permute.xlu0 5
    %1796 = vperm.xlu0 %1795, %v1593
    %v1797 = vpop.permute.xlu0 %1796
    %v1799 = vmul.f32 %v1797, %v1000
    %v1800 = vadd.f32 %v1794, %v1799
    %1801 = vset.pattern.permute.xlu0 6
    %1802 = vperm.xlu0 %1801, %v1593
    %v1803 = vpop.permute.xlu0 %1802
    %v1805 = vmul.f32 %v1803, %v1142
    %v1806 = vadd.f32 %v1800, %v1805
    %1807 = vset.pattern.permute.xlu0 7
    %1808 = vperm.xlu0 %1807, %v1593
    %v1809 = vpop.permute.xlu0 %1808
    %v1811 = vmul.f32 %v1809, %v1284
    %v1812 = vadd.f32 %v1806, %v1811
    %1814 = vset.pattern.permute.xlu0 0
    %1815 = vperm.xlu0 %1814, %v1608
    %v1816 = vpop.permute.xlu0 %1815
    %v1818 = vmul.f32 %v1816, %v289
    %1819 = vset.pattern.permute.xlu0 1
    %1820 = vperm.xlu0 %1819, %v1608
    %v1821 = vpop.permute.xlu0 %1820
    %v1823 = vmul.f32 %v1821, %v432
    %v1824 = vadd.f32 %v1818, %v1823
    %1825 = vset.pattern.permute.xlu0 2
    %1826 = vperm.xlu0 %1825, %v1608
    %v1827 = vpop.permute.xlu0 %1826
    %v1829 = vmul.f32 %v1827, %v574
    %v1830 = vadd.f32 %v1824, %v1829
    %1831 = vset.pattern.permute.xlu0 3
    %1832 = vperm.xlu0 %1831, %v1608
    %v1833 = vpop.permute.xlu0 %1832
    %v1835 = vmul.f32 %v1833, %v716
    %v1836 = vadd.f32 %v1830, %v1835
    %1837 = vset.pattern.permute.xlu0 4
    %1838 = vperm.xlu0 %1837, %v1608
    %v1839 = vpop.permute.xlu0 %1838
    %v1841 = vmul.f32 %v1839, %v858
    %v1842 = vadd.f32 %v1836, %v1841
    %1843 = vset.pattern.permute.xlu0 5
    %1844 = vperm.xlu0 %1843, %v1608
    %v1845 = vpop.permute.xlu0 %1844
    %v1847 = vmul.f32 %v1845, %v1000
    %v1848 = vadd.f32 %v1842, %v1847
    %1849 = vset.pattern.permute.xlu0 6
    %1850 = vperm.xlu0 %1849, %v1608
    %v1851 = vpop.permute.xlu0 %1850
    %v1853 = vmul.f32 %v1851, %v1142
    %v1854 = vadd.f32 %v1848, %v1853
    %1855 = vset.pattern.permute.xlu0 7
    %1856 = vperm.xlu0 %1855, %v1608
    %v1857 = vpop.permute.xlu0 %1856
    %v1859 = vmul.f32 %v1857, %v1284
    %v1860 = vadd.f32 %v1854, %v1859
    %1862 = vset.pattern.permute.xlu0 0
    %1863 = vperm.xlu0 %1862, %v1623
    %v1864 = vpop.permute.xlu0 %1863
    %v1866 = vmul.f32 %v1864, %v289
    %1867 = vset.pattern.permute.xlu0 1
    %1868 = vperm.xlu0 %1867, %v1623
    %v1869 = vpop.permute.xlu0 %1868
    %v1871 = vmul.f32 %v1869, %v432
    %v1872 = vadd.f32 %v1866, %v1871
    %1873 = vset.pattern.permute.xlu0 2
    %1874 = vperm.xlu0 %1873, %v1623
    %v1875 = vpop.permute.xlu0 %1874
    %v1877 = vmul.f32 %v1875, %v574
    %v1878 = vadd.f32 %v1872, %v1877
    %1879 = vset.pattern.permute.xlu0 3
    %1880 = vperm.xlu0 %1879, %v1623
    %v1881 = vpop.permute.xlu0 %1880
    %v1883 = vmul.f32 %v1881, %v716
    %v1884 = vadd.f32 %v1878, %v1883
    %1885 = vset.pattern.permute.xlu0 4
    %1886 = vperm.xlu0 %1885, %v1623
    %v1887 = vpop.permute.xlu0 %1886
    %v1889 = vmul.f32 %v1887, %v858
    %v1890 = vadd.f32 %v1884, %v1889
    %1891 = vset.pattern.permute.xlu0 5
    %1892 = vperm.xlu0 %1891, %v1623
    %v1893 = vpop.permute.xlu0 %1892
    %v1895 = vmul.f32 %v1893, %v1000
    %v1896 = vadd.f32 %v1890, %v1895
    %1897 = vset.pattern.permute.xlu0 6
    %1898 = vperm.xlu0 %1897, %v1623
    %v1899 = vpop.permute.xlu0 %1898
    %v1901 = vmul.f32 %v1899, %v1142
    %v1902 = vadd.f32 %v1896, %v1901
    %1903 = vset.pattern.permute.xlu0 7
    %1904 = vperm.xlu0 %1903, %v1623
    %v1905 = vpop.permute.xlu0 %1904
    %v1907 = vmul.f32 %v1905, %v1284
    %v1908 = vadd.f32 %v1902, %v1907
    %1910 = vset.pattern.permute.xlu0 0
    %1911 = vperm.xlu0 %1910, %v1638
    %v1912 = vpop.permute.xlu0 %1911
    %v1914 = vmul.f32 %v1912, %v289
    %1915 = vset.pattern.permute.xlu0 1
    %1916 = vperm.xlu0 %1915, %v1638
    %v1917 = vpop.permute.xlu0 %1916
    %v1919 = vmul.f32 %v1917, %v432
    %v1920 = vadd.f32 %v1914, %v1919
    %1921 = vset.pattern.permute.xlu0 2
    %1922 = vperm.xlu0 %1921, %v1638
    %v1923 = vpop.permute.xlu0 %1922
    %v1925 = vmul.f32 %v1923, %v574
    %v1926 = vadd.f32 %v1920, %v1925
    %1927 = vset.pattern.permute.xlu0 3
    %1928 = vperm.xlu0 %1927, %v1638
    %v1929 = vpop.permute.xlu0 %1928
    %v1931 = vmul.f32 %v1929, %v716
    %v1932 = vadd.f32 %v1926, %v1931
    %1933 = vset.pattern.permute.xlu0 4
    %1934 = vperm.xlu0 %1933, %v1638
    %v1935 = vpop.permute.xlu0 %1934
    %v1937 = vmul.f32 %v1935, %v858
    %v1938 = vadd.f32 %v1932, %v1937
    %1939 = vset.pattern.permute.xlu0 5
    %1940 = vperm.xlu0 %1939, %v1638
    %v1941 = vpop.permute.xlu0 %1940
    %v1943 = vmul.f32 %v1941, %v1000
    %v1944 = vadd.f32 %v1938, %v1943
    %1945 = vset.pattern.permute.xlu0 6
    %1946 = vperm.xlu0 %1945, %v1638
    %v1947 = vpop.permute.xlu0 %1946
    %v1949 = vmul.f32 %v1947, %v1142
    %v1950 = vadd.f32 %v1944, %v1949
    %1951 = vset.pattern.permute.xlu0 7
    %1952 = vperm.xlu0 %1951, %v1638
    %v1953 = vpop.permute.xlu0 %1952
    %v1955 = vmul.f32 %v1953, %v1284
    %v1956 = vadd.f32 %v1950, %v1955
    %1958 = vset.pattern.permute.xlu0 0
    %1959 = vperm.xlu0 %1958, %v1653
    %v1960 = vpop.permute.xlu0 %1959
    %v1962 = vmul.f32 %v1960, %v289
    %1963 = vset.pattern.permute.xlu0 1
    %1964 = vperm.xlu0 %1963, %v1653
    %v1965 = vpop.permute.xlu0 %1964
    %v1967 = vmul.f32 %v1965, %v432
    %v1968 = vadd.f32 %v1962, %v1967
    %1969 = vset.pattern.permute.xlu0 2
    %1970 = vperm.xlu0 %1969, %v1653
    %v1971 = vpop.permute.xlu0 %1970
    %v1973 = vmul.f32 %v1971, %v574
    %v1974 = vadd.f32 %v1968, %v1973
    %1975 = vset.pattern.permute.xlu0 3
    %1976 = vperm.xlu0 %1975, %v1653
    %v1977 = vpop.permute.xlu0 %1976
    %v1979 = vmul.f32 %v1977, %v716
    %v1980 = vadd.f32 %v1974, %v1979
    %1981 = vset.pattern.permute.xlu0 4
    %1982 = vperm.xlu0 %1981, %v1653
    %v1983 = vpop.permute.xlu0 %1982
    %v1985 = vmul.f32 %v1983, %v858
    %v1986 = vadd.f32 %v1980, %v1985
    %1987 = vset.pattern.permute.xlu0 5
    %1988 = vperm.xlu0 %1987, %v1653
    %v1989 = vpop.permute.xlu0 %1988
    %v1991 = vmul.f32 %v1989, %v1000
    %v1992 = vadd.f32 %v1986, %v1991
    %1993 = vset.pattern.permute.xlu0 6
    %1994 = vperm.xlu0 %1993, %v1653
    %v1995 = vpop.permute.xlu0 %1994
    %v1997 = vmul.f32 %v1995, %v1142
    %v1998 = vadd.f32 %v1992, %v1997
    %1999 = vset.pattern.permute.xlu0 7
    %2000 = vperm.xlu0 %1999, %v1653
    %v2001 = vpop.permute.xlu0 %2000
    %v2003 = vmul.f32 %v2001, %v1284
    %v2004 = vadd.f32 %v1998, %v2003
    %2006 = vset.pattern.permute.xlu0 0
    %2007 = vperm.xlu0 %2006, %v1668
    %v2008 = vpop.permute.xlu0 %2007
    %v2010 = vmul.f32 %v2008, %v289
    %2011 = vset.pattern.permute.xlu0 1
    %2012 = vperm.xlu0 %2011, %v1668
    %v2013 = vpop.permute.xlu0 %2012
    %v2015 = vmul.f32 %v2013, %v432
    %v2016 = vadd.f32 %v2010, %v2015
    %2017 = vset.pattern.permute.xlu0 2
    %2018 = vperm.xlu0 %2017, %v1668
    %v2019 = vpop.permute.xlu0 %2018
    %v2021 = vmul.f32 %v2019, %v574
    %v2022 = vadd.f32 %v2016, %v2021
    %2023 = vset.pattern.permute.xlu0 3
    %2024 = vperm.xlu0 %2023, %v1668
    %v2025 = vpop.permute.xlu0 %2024
    %v2027 = vmul.f32 %v2025, %v716
    %v2028 = vadd.f32 %v2022, %v2027
    %2029 = vset.pattern.permute.xlu0 4
    %2030 = vperm.xlu0 %2029, %v1668
    %v2031 = vpop.permute.xlu0 %2030
    %v2033 = vmul.f32 %v2031, %v858
    %v2034 = vadd.f32 %v2028, %v2033
    %2035 = vset.pattern.permute.xlu0 5
    %2036 = vperm.xlu0 %2035, %v1668
    %v2037 = vpop.permute.xlu0 %2036
    %v2039 = vmul.f32 %v2037, %v1000
    %v2040 = vadd.f32 %v2034, %v2039
    %2041 = vset.pattern.permute.xlu0 6
    %2042 = vperm.xlu0 %2041, %v1668
    %v2043 = vpop.permute.xlu0 %2042
    %v2045 = vmul.f32 %v2043, %v1142
    %v2046 = vadd.f32 %v2040, %v2045
    %2047 = vset.pattern.permute.xlu0 7
    %2048 = vperm.xlu0 %2047, %v1668
    %v2049 = vpop.permute.xlu0 %2048
    %v2051 = vmul.f32 %v2049, %v1284
    %v2052 = vadd.f32 %v2046, %v2051
    %2053 = vrot.lane.b32.xlu0 %v1578, 8
    %v2054 = vpop.permute.xlu0 %2053
    %2056 = vrot.lane.b32.xlu0 %v1593, 16
    %v2057 = vpop.permute.xlu0 %2056
    %2059 = vrot.lane.b32.xlu0 %v1608, 24
    %v2060 = vpop.permute.xlu0 %2059
    %2062 = vrot.lane.b32.xlu0 %v1623, 32
    %v2063 = vpop.permute.xlu0 %2062
    %2065 = vrot.lane.b32.xlu0 %v1638, 40
    %v2066 = vpop.permute.xlu0 %2065
    %2068 = vrot.lane.b32.xlu0 %v1653, 48
    %v2069 = vpop.permute.xlu0 %2068
    %2071 = vrot.lane.b32.xlu0 %v1668, 56
    %v2072 = vpop.permute.xlu0 %2071
    %v2074 = vsel %vm1411, %v1563, %v2054
    %v2075 = vsel %vm87, %v2074, %v2057
    %vm2076 = vcmask 195584
    %v2077 = vsel %vm2076, %v2075, %v2060
    %v2078 = vsel %vm294, %v2077, %v2063
    %vm2079 = vcmask 326656
    %v2080 = vsel %vm2079, %v2078, %v2066
    %v2081 = vsel %vm229, %v2080, %v2069
    %vm2082 = vcmask 457728
    %v2083 = vsel %vm2082, %v2081, %v2072
    %v2084 = vsel %vm153, %v2083, 0.0
    %2085 = vst [vmem:[#allocation8] sm:$0xff] %v2084
    %v2086 = vperm.slane %v1339, 0
    %2095 = vrot.lane.b32.xlu0 %v1716, 64
    %v2096 = vpop.permute.xlu0 %2095
    %2097 = vrot.lane.b32.xlu0 %v1764, 64
    %v2098 = vpop.permute.xlu0 %2097
    %2099 = vrot.lane.b32.xlu0 %v1812, 64
    %v2100 = vpop.permute.xlu0 %2099
    %2101 = vrot.lane.b32.xlu0 %v1860, 64
    %v2102 = vpop.permute.xlu0 %2101
    %2103 = vrot.lane.b32.xlu0 %v1908, 64
    %v2104 = vpop.permute.xlu0 %2103
    %2105 = vrot.lane.b32.xlu0 %v1956, 64
    %v2106 = vpop.permute.xlu0 %2105
    %2107 = vrot.lane.b32.xlu0 %v2004, 64
    %v2108 = vpop.permute.xlu0 %2107
    %2109 = vrot.lane.b32.xlu0 %v2052, 64
    %v2110 = vpop.permute.xlu0 %2109
    %v2111 = vsel %vm294, %v2096, 0
    %v2113 = vsel %vm294, %v2098, 0
    %v2115 = vsel %vm294, %v2100, 0
    %v2117 = vsel %vm294, %v2102, 0
    %v2119 = vsel %vm294, %v2104, 0
    %v2121 = vsel %vm294, %v2106, 0
    %v2123 = vsel %vm294, %v2108, 0
    %v2125 = vsel %vm294, %v2110, 0
    %2127 = vmatpush.msra.mxu0 0.0
    %2128 = vmatpush.msra.mxu0 0.0
    %2129 = vmatpush.msra.mxu0 0.0
    %2130 = vmatpush.msra.mxu0 0.0
    %2131 = vmatpush.msra.mxu0 0.0
    %2132 = vmatpush.msra.mxu0 0.0
    %2133 = vmatpush.msra.mxu0 0.0
    %2134 = vmatpush.msra.mxu0 0.0
    %2135 = vmatpush.msra.mxu0 0.0
    %2136 = vmatpush.msra.mxu0 0.0
    %2137 = vmatpush.msra.mxu0 0.0
    %2138 = vmatpush.msra.mxu0 0.0
    %2139 = vmatpush.msra.mxu0 %v1333
    %2140 = vmatpush.msra.mxu0 %v1332
    %2141 = vmatpush.msra.mxu0 %v1331
    %2142 = vmatpush.msra.mxu0 %v1330
    %2143 = vmatmul.f32.gmra.mxu0 %v2111
    %v2144 = vpop.f32.mrf.mxu0
    %v2145 = vadd.f32 %v2086, %v2144
    %2146 = vmatmul.f32.gmra.mxu0 %v2113
    %v2147 = vpop.f32.mrf.mxu0
    %v2148 = vadd.f32 %v2086, %v2147
    %2149 = vmatmul.f32.gmra.mxu0 %v2115
    %v2150 = vpop.f32.mrf.mxu0
    %v2151 = vadd.f32 %v2086, %v2150
    %2152 = vmatmul.f32.gmra.mxu0 %v2117
    %v2153 = vpop.f32.mrf.mxu0
    %v2154 = vadd.f32 %v2086, %v2153
    %2155 = vmatmul.f32.gmra.mxu0 %v2119
    %v2156 = vpop.f32.mrf.mxu0
    %v2157 = vadd.f32 %v2086, %v2156
    %2158 = vmatmul.f32.gmra.mxu0 %v2121
    %v2159 = vpop.f32.mrf.mxu0
    %v2160 = vadd.f32 %v2086, %v2159
    %2161 = vmatmul.f32.gmra.mxu0 %v2123
    %v2162 = vpop.f32.mrf.mxu0
    %v2163 = vadd.f32 %v2086, %v2162
    %2164 = vmatmul.f32.gmra.mxu0 %v2125
    %v2165 = vpop.f32.mrf.mxu0
    %v2166 = vadd.f32 %v2086, %v2165
    %2167 = vdwg.mxu0
    %v2168 = vld [vmem:[%s1] sm:$0xff]
    %v2169 = vsel %vm294, 0.0, 0
    %2171 = vmatpush.msra.mxu0 0.0
    %2172 = vmatpush.msra.mxu0 0.0
    %2173 = vmatpush.msra.mxu0 0.0
    %2174 = vmatpush.msra.mxu0 0.0
    %2175 = vmatpush.msra.mxu0 0.0
    %2176 = vmatpush.msra.mxu0 0.0
    %2177 = vmatpush.msra.mxu0 0.0
    %2178 = vmatpush.msra.mxu0 0.0
    %2179 = vmatpush.msra.mxu0 0.0
    %2180 = vmatpush.msra.mxu0 0.0
    %2181 = vmatpush.msra.mxu0 0.0
    %2182 = vmatpush.msra.mxu0 0.0
    %2183 = vmatpush.msra.mxu0 %v1337
    %2184 = vmatpush.msra.mxu0 %v1336
    %2185 = vmatpush.msra.mxu0 %v1335
    %2186 = vmatpush.msra.mxu0 %v1334
    %2187 = vmatmul.f32.gmra.mxu0 %v2169
    %v2188 = vpop.f32.mrf.mxu0
    %v2189 = vadd.f32 0.0, %v2188
    %2190 = vdwg.mxu0
    %v2191 = vadd.f32 %v2145, %v2189
    %2193 = vset.pattern.permute.xlu0 0
    %2194 = vperm.xlu0 %2193, %v2168
    %v2195 = vpop.permute.xlu0 %2194
    %v2197 = vperm.slane %v1338, 0
    %v2198 = vmul.f32 %v2195, %v2197
    %v2199 = vadd.f32 %v2191, %v2198
    %v2200 = vxor.u32 %v2199, 2147483648
    %v2201 = vmul.f32 %v2200, 1.442695
    %v2202 = vpow.pop %v2201
    %v2203 = vadd.f32 %v2202, 1.0
    %v2204 = vrcp.pop %v2203
    %v2205 = vmul.f32 %v2203, %v2204
    %v2206 = vsub.f32 1.0, %v2205
    %v2207 = vmul.f32 %v2204, %v2206
    %v2208 = vadd.f32 %v2204, %v2207
    %vm2209 = vweird.f32 %v2203
    %vm2210 = vweird.f32 %v2204
    %vm2211 = vmor %vm2209, %vm2210
    %v2212 = vsel %vm2211, %v2204, %v2208
    %v2213 = vand.u32 2147483647, %v2203
    %vm2214 = vcmp.eq.f32.partialorder %v2213, 8.507059e+37
    %v2215 = vand.u32 %v2203, 2147483648
    %v2216 = vor.u32 1.1754944e-38, %v2215
    %v2217 = vsel %vm2214, %v2216, %v2212
    %v2218 = vmul.f32 1.0, %v2217
    %v2219 = vtanh.pop %v2199
    %v2220 = vmul.f32 %v2218, 0.0
    %2222 = vrot.lane.b32.xlu0 %v2219, 32
    %v2223 = vpop.permute.xlu0 %2222
    %v2225 = vmul.f32 %v2218, %v2223
    %2227 = vrot.lane.b32.xlu0 %v2225, 32
    %v2228 = vpop.permute.xlu0 %2227
    %v2230 = vadd.f32 %v2220, %v2228
    %v2231 = vtanh.pop %v2230
    %2233 = vrot.lane.b32.xlu0 %v2231, 32
    %v2234 = vpop.permute.xlu0 %2233
    %v2236 = vmul.f32 %v2218, %v2234
    %v2237 = vperm.slane %v1340, 0
    %2239 = vrot.lane.b32.xlu0 %v2237, 64
    %v2240 = vpop.permute.xlu0 %2239
    %v2242 = vmul.f32 %v2236, %v2240
    %2244 = vrot.lane.b32.xlu0 %v2242, 64
    %v2245 = vpop.permute.xlu0 %2244
    %v2247 = vsel %vm294, %v2245, 0.0
    %2248 = vadd.xlane.f32.xlu0 %v2247
    %v2249 = vpop.xlane.xlu0 %2248
    %v2250 = vperm.slane %v1341, 0
    %v2251 = vadd.f32 %v2249, %v2250
    %2253 = vrot.lane.b32.xlu0 %v2236, 64
    %v2254 = vpop.permute.xlu0 %2253
    %v2255 = vsel %vm294, %v2254, 0
    %2257 = vmatpush.msra.mxu0 0.0
    %2258 = vmatpush.msra.mxu0 0.0
    %2259 = vmatpush.msra.mxu0 0.0
    %2260 = vmatpush.msra.mxu0 0.0
    %2261 = vmatpush.msra.mxu0 0.0
    %2262 = vmatpush.msra.mxu0 0.0
    %2263 = vmatpush.msra.mxu0 0.0
    %2264 = vmatpush.msra.mxu0 0.0
    %2265 = vmatpush.msra.mxu0 0.0
    %2266 = vmatpush.msra.mxu0 0.0
    %2267 = vmatpush.msra.mxu0 0.0
    %2268 = vmatpush.msra.mxu0 0.0
    %2269 = vmatpush.msra.mxu0 %v1337
    %2270 = vmatpush.msra.mxu0 %v1336
    %2271 = vmatpush.msra.mxu0 %v1335
    %2272 = vmatpush.msra.mxu0 %v1334
    %2273 = vmatmul.f32.gmra.mxu0 %v2255
    %v2274 = vpop.f32.mrf.mxu0
    %v2275 = vadd.f32 0.0, %v2274
    %2276 = vdwg.mxu0
    %v2277 = vadd.f32 %v2148, %v2275
    %2279 = vset.pattern.permute.xlu0 0
    %2280 = vperm.xlu0 %2279, %v2251
    %v2281 = vpop.permute.xlu0 %2280
    %v2283 = vmul.f32 %v2281, %v2197
    %v2284 = vadd.f32 %v2277, %v2283
    %v2285 = vxor.u32 %v2284, 2147483648
    %v2286 = vmul.f32 %v2285, 1.442695
    %v2287 = vpow.pop %v2286
    %v2288 = vadd.f32 %v2287, 1.0
    %v2289 = vrcp.pop %v2288
    %v2290 = vmul.f32 %v2288, %v2289
    %v2291 = vsub.f32 1.0, %v2290
    %v2292 = vmul.f32 %v2289, %v2291
    %v2293 = vadd.f32 %v2289, %v2292
    %vm2294 = vweird.f32 %v2288
    %vm2295 = vweird.f32 %v2289
    %vm2296 = vmor %vm2294, %vm2295
    %v2297 = vsel %vm2296, %v2289, %v2293
    %v2298 = vand.u32 2147483647, %v2288
    %vm2299 = vcmp.eq.f32.partialorder %v2298, 8.507059e+37
    %v2300 = vand.u32 %v2288, 2147483648
    %v2301 = vor.u32 1.1754944e-38, %v2300
    %v2302 = vsel %vm2299, %v2301, %v2297
    %v2303 = vmul.f32 1.0, %v2302
    %v2304 = vtanh.pop %v2284
    %v2305 = vmul.f32 %v2303, %v2230
    %2307 = vrot.lane.b32.xlu0 %v2304, 32
    %v2308 = vpop.permute.xlu0 %2307
    %v2310 = vmul.f32 %v2303, %v2308
    %2312 = vrot.lane.b32.xlu0 %v2310, 32
    %v2313 = vpop.permute.xlu0 %2312
    %v2315 = vadd.f32 %v2305, %v2313
    %v2316 = vtanh.pop %v2315
    %2318 = vrot.lane.b32.xlu0 %v2316, 32
    %v2319 = vpop.permute.xlu0 %2318
    %v2321 = vmul.f32 %v2303, %v2319
    %v2322 = vmul.f32 %v2321, %v2240
    %2324 = vrot.lane.b32.xlu0 %v2322, 64
    %v2325 = vpop.permute.xlu0 %2324
    %v2327 = vsel %vm294, %v2325, 0.0
    %2328 = vadd.xlane.f32.xlu0 %v2327
    %v2329 = vpop.xlane.xlu0 %2328
    %v2330 = vadd.f32 %v2329, %v2250
    %2332 = vrot.lane.b32.xlu0 %v2321, 64
    %v2333 = vpop.permute.xlu0 %2332
    %v2334 = vsel %vm294, %v2333, 0
    %2336 = vmatpush.msra.mxu0 0.0
    %2337 = vmatpush.msra.mxu0 0.0
    %2338 = vmatpush.msra.mxu0 0.0
    %2339 = vmatpush.msra.mxu0 0.0
    %2340 = vmatpush.msra.mxu0 0.0
    %2341 = vmatpush.msra.mxu0 0.0
    %2342 = vmatpush.msra.mxu0 0.0
    %2343 = vmatpush.msra.mxu0 0.0
    %2344 = vmatpush.msra.mxu0 0.0
    %2345 = vmatpush.msra.mxu0 0.0
    %2346 = vmatpush.msra.mxu0 0.0
    %2347 = vmatpush.msra.mxu0 0.0
    %2348 = vmatpush.msra.mxu0 %v1337
    %2349 = vmatpush.msra.mxu0 %v1336
    %2350 = vmatpush.msra.mxu0 %v1335
    %2351 = vmatpush.msra.mxu0 %v1334
    %2352 = vmatmul.f32.gmra.mxu0 %v2334
    %v2353 = vpop.f32.mrf.mxu0
    %v2354 = vadd.f32 0.0, %v2353
    %2355 = vdwg.mxu0
    %v2356 = vadd.f32 %v2151, %v2354
    %2358 = vset.pattern.permute.xlu0 0
    %2359 = vperm.xlu0 %2358, %v2330
    %v2360 = vpop.permute.xlu0 %2359
    %v2362 = vmul.f32 %v2360, %v2197
    %v2363 = vadd.f32 %v2356, %v2362
    %v2364 = vxor.u32 %v2363, 2147483648
    %v2365 = vmul.f32 %v2364, 1.442695
    %v2366 = vpow.pop %v2365
    %v2367 = vadd.f32 %v2366, 1.0
    %v2368 = vrcp.pop %v2367
    %v2369 = vmul.f32 %v2367, %v2368
    %v2370 = vsub.f32 1.0, %v2369
    %v2371 = vmul.f32 %v2368, %v2370
    %v2372 = vadd.f32 %v2368, %v2371
    %vm2373 = vweird.f32 %v2367
    %vm2374 = vweird.f32 %v2368
    %vm2375 = vmor %vm2373, %vm2374
    %v2376 = vsel %vm2375, %v2368, %v2372
    %v2377 = vand.u32 2147483647, %v2367
    %vm2378 = vcmp.eq.f32.partialorder %v2377, 8.507059e+37
    %v2379 = vand.u32 %v2367, 2147483648
    %v2380 = vor.u32 1.1754944e-38, %v2379
    %v2381 = vsel %vm2378, %v2380, %v2376
    %v2382 = vmul.f32 1.0, %v2381
    %v2383 = vtanh.pop %v2363
    %v2384 = vmul.f32 %v2382, %v2315
    %2386 = vrot.lane.b32.xlu0 %v2383, 32
    %v2387 = vpop.permute.xlu0 %2386
    %v2389 = vmul.f32 %v2382, %v2387
    %2391 = vrot.lane.b32.xlu0 %v2389, 32
    %v2392 = vpop.permute.xlu0 %2391
    %v2394 = vadd.f32 %v2384, %v2392
    %v2395 = vtanh.pop %v2394
    %2397 = vrot.lane.b32.xlu0 %v2395, 32
    %v2398 = vpop.permute.xlu0 %2397
    %v2400 = vmul.f32 %v2382, %v2398
    %v2401 = vmul.f32 %v2400, %v2240
    %2403 = vrot.lane.b32.xlu0 %v2401, 64
    %v2404 = vpop.permute.xlu0 %2403
    %v2406 = vsel %vm294, %v2404, 0.0
    %2407 = vadd.xlane.f32.xlu0 %v2406
    %v2408 = vpop.xlane.xlu0 %2407
    %v2409 = vadd.f32 %v2408, %v2250
    %2411 = vrot.lane.b32.xlu0 %v2400, 64
    %v2412 = vpop.permute.xlu0 %2411
    %v2413 = vsel %vm294, %v2412, 0
    %2415 = vmatpush.msra.mxu0 0.0
    %2416 = vmatpush.msra.mxu0 0.0
    %2417 = vmatpush.msra.mxu0 0.0
    %2418 = vmatpush.msra.mxu0 0.0
    %2419 = vmatpush.msra.mxu0 0.0
    %2420 = vmatpush.msra.mxu0 0.0
    %2421 = vmatpush.msra.mxu0 0.0
    %2422 = vmatpush.msra.mxu0 0.0
    %2423 = vmatpush.msra.mxu0 0.0
    %2424 = vmatpush.msra.mxu0 0.0
    %2425 = vmatpush.msra.mxu0 0.0
    %2426 = vmatpush.msra.mxu0 0.0
    %2427 = vmatpush.msra.mxu0 %v1337
    %2428 = vmatpush.msra.mxu0 %v1336
    %2429 = vmatpush.msra.mxu0 %v1335
    %2430 = vmatpush.msra.mxu0 %v1334
    %2431 = vmatmul.f32.gmra.mxu0 %v2413
    %v2432 = vpop.f32.mrf.mxu0
    %v2433 = vadd.f32 0.0, %v2432
    %2434 = vdwg.mxu0
    %v2435 = vadd.f32 %v2154, %v2433
    %2437 = vset.pattern.permute.xlu0 0
    %2438 = vperm.xlu0 %2437, %v2409
    %v2439 = vpop.permute.xlu0 %2438
    %v2441 = vmul.f32 %v2439, %v2197
    %v2442 = vadd.f32 %v2435, %v2441
    %v2443 = vxor.u32 %v2442, 2147483648
    %v2444 = vmul.f32 %v2443, 1.442695
    %v2445 = vpow.pop %v2444
    %v2446 = vadd.f32 %v2445, 1.0
    %v2447 = vrcp.pop %v2446
    %v2448 = vmul.f32 %v2446, %v2447
    %v2449 = vsub.f32 1.0, %v2448
    %v2450 = vmul.f32 %v2447, %v2449
    %v2451 = vadd.f32 %v2447, %v2450
    %vm2452 = vweird.f32 %v2446
    %vm2453 = vweird.f32 %v2447
    %vm2454 = vmor %vm2452, %vm2453
    %v2455 = vsel %vm2454, %v2447, %v2451
    %v2456 = vand.u32 2147483647, %v2446
    %vm2457 = vcmp.eq.f32.partialorder %v2456, 8.507059e+37
    %v2458 = vand.u32 %v2446, 2147483648
    %v2459 = vor.u32 1.1754944e-38, %v2458
    %v2460 = vsel %vm2457, %v2459, %v2455
    %v2461 = vmul.f32 1.0, %v2460
    %v2462 = vtanh.pop %v2442
    %v2463 = vmul.f32 %v2461, %v2394
    %2465 = vrot.lane.b32.xlu0 %v2462, 32
    %v2466 = vpop.permute.xlu0 %2465
    %v2468 = vmul.f32 %v2461, %v2466
    %2470 = vrot.lane.b32.xlu0 %v2468, 32
    %v2471 = vpop.permute.xlu0 %2470
    %v2473 = vadd.f32 %v2463, %v2471
    %v2474 = vtanh.pop %v2473
    %2476 = vrot.lane.b32.xlu0 %v2474, 32
    %v2477 = vpop.permute.xlu0 %2476
    %v2479 = vmul.f32 %v2461, %v2477
    %v2480 = vmul.f32 %v2479, %v2240
    %2482 = vrot.lane.b32.xlu0 %v2480, 64
    %v2483 = vpop.permute.xlu0 %2482
    %v2485 = vsel %vm294, %v2483, 0.0
    %2486 = vadd.xlane.f32.xlu0 %v2485
    %v2487 = vpop.xlane.xlu0 %2486
    %v2488 = vadd.f32 %v2487, %v2250
    %2490 = vrot.lane.b32.xlu0 %v2479, 64
    %v2491 = vpop.permute.xlu0 %2490
    %v2492 = vsel %vm294, %v2491, 0
    %2494 = vmatpush.msra.mxu0 0.0
    %2495 = vmatpush.msra.mxu0 0.0
    %2496 = vmatpush.msra.mxu0 0.0
    %2497 = vmatpush.msra.mxu0 0.0
    %2498 = vmatpush.msra.mxu0 0.0
    %2499 = vmatpush.msra.mxu0 0.0
    %2500 = vmatpush.msra.mxu0 0.0
    %2501 = vmatpush.msra.mxu0 0.0
    %2502 = vmatpush.msra.mxu0 0.0
    %2503 = vmatpush.msra.mxu0 0.0
    %2504 = vmatpush.msra.mxu0 0.0
    %2505 = vmatpush.msra.mxu0 0.0
    %2506 = vmatpush.msra.mxu0 %v1337
    %2507 = vmatpush.msra.mxu0 %v1336
    %2508 = vmatpush.msra.mxu0 %v1335
    %2509 = vmatpush.msra.mxu0 %v1334
    %2510 = vmatmul.f32.gmra.mxu0 %v2492
    %v2511 = vpop.f32.mrf.mxu0
    %v2512 = vadd.f32 0.0, %v2511
    %2513 = vdwg.mxu0
    %v2514 = vadd.f32 %v2157, %v2512
    %2516 = vset.pattern.permute.xlu0 0
    %2517 = vperm.xlu0 %2516, %v2488
    %v2518 = vpop.permute.xlu0 %2517
    %v2520 = vmul.f32 %v2518, %v2197
    %v2521 = vadd.f32 %v2514, %v2520
    %v2522 = vxor.u32 %v2521, 2147483648
    %v2523 = vmul.f32 %v2522, 1.442695
    %v2524 = vpow.pop %v2523
    %v2525 = vadd.f32 %v2524, 1.0
    %v2526 = vrcp.pop %v2525
    %v2527 = vmul.f32 %v2525, %v2526
    %v2528 = vsub.f32 1.0, %v2527
    %v2529 = vmul.f32 %v2526, %v2528
    %v2530 = vadd.f32 %v2526, %v2529
    %vm2531 = vweird.f32 %v2525
    %vm2532 = vweird.f32 %v2526
    %vm2533 = vmor %vm2531, %vm2532
    %v2534 = vsel %vm2533, %v2526, %v2530
    %v2535 = vand.u32 2147483647, %v2525
    %vm2536 = vcmp.eq.f32.partialorder %v2535, 8.507059e+37
    %v2537 = vand.u32 %v2525, 2147483648
    %v2538 = vor.u32 1.1754944e-38, %v2537
    %v2539 = vsel %vm2536, %v2538, %v2534
    %v2540 = vmul.f32 1.0, %v2539
    %v2541 = vtanh.pop %v2521
    %v2542 = vmul.f32 %v2540, %v2473
    %2544 = vrot.lane.b32.xlu0 %v2541, 32
    %v2545 = vpop.permute.xlu0 %2544
    %v2547 = vmul.f32 %v2540, %v2545
    %2549 = vrot.lane.b32.xlu0 %v2547, 32
    %v2550 = vpop.permute.xlu0 %2549
    %v2552 = vadd.f32 %v2542, %v2550
    %v2553 = vtanh.pop %v2552
    %2555 = vrot.lane.b32.xlu0 %v2553, 32
    %v2556 = vpop.permute.xlu0 %2555
    %v2558 = vmul.f32 %v2540, %v2556
    %v2559 = vmul.f32 %v2558, %v2240
    %2561 = vrot.lane.b32.xlu0 %v2559, 64
    %v2562 = vpop.permute.xlu0 %2561
    %v2564 = vsel %vm294, %v2562, 0.0
    %2565 = vadd.xlane.f32.xlu0 %v2564
    %v2566 = vpop.xlane.xlu0 %2565
    %v2567 = vadd.f32 %v2566, %v2250
    %2569 = vrot.lane.b32.xlu0 %v2558, 64
    %v2570 = vpop.permute.xlu0 %2569
    %v2571 = vsel %vm294, %v2570, 0
    %2573 = vmatpush.msra.mxu0 0.0
    %2574 = vmatpush.msra.mxu0 0.0
    %2575 = vmatpush.msra.mxu0 0.0
    %2576 = vmatpush.msra.mxu0 0.0
    %2577 = vmatpush.msra.mxu0 0.0
    %2578 = vmatpush.msra.mxu0 0.0
    %2579 = vmatpush.msra.mxu0 0.0
    %2580 = vmatpush.msra.mxu0 0.0
    %2581 = vmatpush.msra.mxu0 0.0
    %2582 = vmatpush.msra.mxu0 0.0
    %2583 = vmatpush.msra.mxu0 0.0
    %2584 = vmatpush.msra.mxu0 0.0
    %2585 = vmatpush.msra.mxu0 %v1337
    %2586 = vmatpush.msra.mxu0 %v1336
    %2587 = vmatpush.msra.mxu0 %v1335
    %2588 = vmatpush.msra.mxu0 %v1334
    %2589 = vmatmul.f32.gmra.mxu0 %v2571
    %v2590 = vpop.f32.mrf.mxu0
    %v2591 = vadd.f32 0.0, %v2590
    %2592 = vdwg.mxu0
    %v2593 = vadd.f32 %v2160, %v2591
    %2595 = vset.pattern.permute.xlu0 0
    %2596 = vperm.xlu0 %2595, %v2567
    %v2597 = vpop.permute.xlu0 %2596
    %v2599 = vmul.f32 %v2597, %v2197
    %v2600 = vadd.f32 %v2593, %v2599
    %v2601 = vxor.u32 %v2600, 2147483648
    %v2602 = vmul.f32 %v2601, 1.442695
    %v2603 = vpow.pop %v2602
    %v2604 = vadd.f32 %v2603, 1.0
    %v2605 = vrcp.pop %v2604
    %v2606 = vmul.f32 %v2604, %v2605
    %v2607 = vsub.f32 1.0, %v2606
    %v2608 = vmul.f32 %v2605, %v2607
    %v2609 = vadd.f32 %v2605, %v2608
    %vm2610 = vweird.f32 %v2604
    %vm2611 = vweird.f32 %v2605
    %vm2612 = vmor %vm2610, %vm2611
    %v2613 = vsel %vm2612, %v2605, %v2609
    %v2614 = vand.u32 2147483647, %v2604
    %vm2615 = vcmp.eq.f32.partialorder %v2614, 8.507059e+37
    %v2616 = vand.u32 %v2604, 2147483648
    %v2617 = vor.u32 1.1754944e-38, %v2616
    %v2618 = vsel %vm2615, %v2617, %v2613
    %v2619 = vmul.f32 1.0, %v2618
    %v2620 = vtanh.pop %v2600
    %v2621 = vmul.f32 %v2619, %v2552
    %2623 = vrot.lane.b32.xlu0 %v2620, 32
    %v2624 = vpop.permute.xlu0 %2623
    %v2626 = vmul.f32 %v2619, %v2624
    %2628 = vrot.lane.b32.xlu0 %v2626, 32
    %v2629 = vpop.permute.xlu0 %2628
    %v2631 = vadd.f32 %v2621, %v2629
    %v2632 = vtanh.pop %v2631
    %2634 = vrot.lane.b32.xlu0 %v2632, 32
    %v2635 = vpop.permute.xlu0 %2634
    %v2637 = vmul.f32 %v2619, %v2635
    %v2638 = vmul.f32 %v2637, %v2240
    %2640 = vrot.lane.b32.xlu0 %v2638, 64
    %v2641 = vpop.permute.xlu0 %2640
    %v2643 = vsel %vm294, %v2641, 0.0
    %2644 = vadd.xlane.f32.xlu0 %v2643
    %v2645 = vpop.xlane.xlu0 %2644
    %v2646 = vadd.f32 %v2645, %v2250
    %2648 = vrot.lane.b32.xlu0 %v2637, 64
    %v2649 = vpop.permute.xlu0 %2648
    %v2650 = vsel %vm294, %v2649, 0
    %2652 = vmatpush.msra.mxu0 0.0
    %2653 = vmatpush.msra.mxu0 0.0
    %2654 = vmatpush.msra.mxu0 0.0
    %2655 = vmatpush.msra.mxu0 0.0
    %2656 = vmatpush.msra.mxu0 0.0
    %2657 = vmatpush.msra.mxu0 0.0
    %2658 = vmatpush.msra.mxu0 0.0
    %2659 = vmatpush.msra.mxu0 0.0
    %2660 = vmatpush.msra.mxu0 0.0
    %2661 = vmatpush.msra.mxu0 0.0
    %2662 = vmatpush.msra.mxu0 0.0
    %2663 = vmatpush.msra.mxu0 0.0
    %2664 = vmatpush.msra.mxu0 %v1337
    %2665 = vmatpush.msra.mxu0 %v1336
    %2666 = vmatpush.msra.mxu0 %v1335
    %2667 = vmatpush.msra.mxu0 %v1334
    %2668 = vmatmul.f32.gmra.mxu0 %v2650
    %v2669 = vpop.f32.mrf.mxu0
    %v2670 = vadd.f32 0.0, %v2669
    %2671 = vdwg.mxu0
    %v2672 = vadd.f32 %v2163, %v2670
    %2674 = vset.pattern.permute.xlu0 0
    %2675 = vperm.xlu0 %2674, %v2646
    %v2676 = vpop.permute.xlu0 %2675
    %v2678 = vmul.f32 %v2676, %v2197
    %v2679 = vadd.f32 %v2672, %v2678
    %v2680 = vxor.u32 %v2679, 2147483648
    %v2681 = vmul.f32 %v2680, 1.442695
    %v2682 = vpow.pop %v2681
    %v2683 = vadd.f32 %v2682, 1.0
    %v2684 = vrcp.pop %v2683
    %v2685 = vmul.f32 %v2683, %v2684
    %v2686 = vsub.f32 1.0, %v2685
    %v2687 = vmul.f32 %v2684, %v2686
    %v2688 = vadd.f32 %v2684, %v2687
    %vm2689 = vweird.f32 %v2683
    %vm2690 = vweird.f32 %v2684
    %vm2691 = vmor %vm2689, %vm2690
    %v2692 = vsel %vm2691, %v2684, %v2688
    %v2693 = vand.u32 2147483647, %v2683
    %vm2694 = vcmp.eq.f32.partialorder %v2693, 8.507059e+37
    %v2695 = vand.u32 %v2683, 2147483648
    %v2696 = vor.u32 1.1754944e-38, %v2695
    %v2697 = vsel %vm2694, %v2696, %v2692
    %v2698 = vmul.f32 1.0, %v2697
    %v2699 = vtanh.pop %v2679
    %v2700 = vmul.f32 %v2698, %v2631
    %2702 = vrot.lane.b32.xlu0 %v2699, 32
    %v2703 = vpop.permute.xlu0 %2702
    %v2705 = vmul.f32 %v2698, %v2703
    %2707 = vrot.lane.b32.xlu0 %v2705, 32
    %v2708 = vpop.permute.xlu0 %2707
    %v2710 = vadd.f32 %v2700, %v2708
    %v2711 = vtanh.pop %v2710
    %2713 = vrot.lane.b32.xlu0 %v2711, 32
    %v2714 = vpop.permute.xlu0 %2713
    %v2716 = vmul.f32 %v2698, %v2714
    %v2717 = vmul.f32 %v2716, %v2240
    %2719 = vrot.lane.b32.xlu0 %v2717, 64
    %v2720 = vpop.permute.xlu0 %2719
    %v2722 = vsel %vm294, %v2720, 0.0
    %2723 = vadd.xlane.f32.xlu0 %v2722
    %v2724 = vpop.xlane.xlu0 %2723
    %v2725 = vadd.f32 %v2724, %v2250
    %2727 = vrot.lane.b32.xlu0 %v2716, 64
    %v2728 = vpop.permute.xlu0 %2727
    %v2729 = vsel %vm294, %v2728, 0
    %2731 = vmatpush.msra.mxu0 0.0
    %2732 = vmatpush.msra.mxu0 0.0
    %2733 = vmatpush.msra.mxu0 0.0
    %2734 = vmatpush.msra.mxu0 0.0
    %2735 = vmatpush.msra.mxu0 0.0
    %2736 = vmatpush.msra.mxu0 0.0
    %2737 = vmatpush.msra.mxu0 0.0
    %2738 = vmatpush.msra.mxu0 0.0
    %2739 = vmatpush.msra.mxu0 0.0
    %2740 = vmatpush.msra.mxu0 0.0
    %2741 = vmatpush.msra.mxu0 0.0
    %2742 = vmatpush.msra.mxu0 0.0
    %2743 = vmatpush.msra.mxu0 %v1337
    %2744 = vmatpush.msra.mxu0 %v1336
    %2745 = vmatpush.msra.mxu0 %v1335
    %2746 = vmatpush.msra.mxu0 %v1334
    %2747 = vmatmul.f32.gmra.mxu0 %v2729
    %v2748 = vpop.f32.mrf.mxu0
    %v2749 = vadd.f32 0.0, %v2748
    %2750 = vdwg.mxu0
    %v2751 = vadd.f32 %v2166, %v2749
    %2753 = vset.pattern.permute.xlu0 0
    %2754 = vperm.xlu0 %2753, %v2725
    %v2755 = vpop.permute.xlu0 %2754
    %v2757 = vmul.f32 %v2755, %v2197
    %v2758 = vadd.f32 %v2751, %v2757
    %v2759 = vxor.u32 %v2758, 2147483648
    %v2760 = vmul.f32 %v2759, 1.442695
    %v2761 = vpow.pop %v2760
    %v2762 = vadd.f32 %v2761, 1.0
    %v2763 = vrcp.pop %v2762
    %v2764 = vmul.f32 %v2762, %v2763
    %v2765 = vsub.f32 1.0, %v2764
    %v2766 = vmul.f32 %v2763, %v2765
    %v2767 = vadd.f32 %v2763, %v2766
    %vm2768 = vweird.f32 %v2762
    %vm2769 = vweird.f32 %v2763
    %vm2770 = vmor %vm2768, %vm2769
    %v2771 = vsel %vm2770, %v2763, %v2767
    %v2772 = vand.u32 2147483647, %v2762
    %vm2773 = vcmp.eq.f32.partialorder %v2772, 8.507059e+37
    %v2774 = vand.u32 %v2762, 2147483648
    %v2775 = vor.u32 1.1754944e-38, %v2774
    %v2776 = vsel %vm2773, %v2775, %v2771
    %v2777 = vmul.f32 1.0, %v2776
    %v2778 = vtanh.pop %v2758
    %v2779 = vmul.f32 %v2777, %v2710
    %2781 = vrot.lane.b32.xlu0 %v2778, 32
    %v2782 = vpop.permute.xlu0 %2781
    %v2784 = vmul.f32 %v2777, %v2782
    %2786 = vrot.lane.b32.xlu0 %v2784, 32
    %v2787 = vpop.permute.xlu0 %2786
    %v2789 = vadd.f32 %v2779, %v2787
    %v2790 = vtanh.pop %v2789
    %2792 = vrot.lane.b32.xlu0 %v2790, 32
    %v2793 = vpop.permute.xlu0 %2792
    %v2795 = vmul.f32 %v2777, %v2793
    %v2796 = vmul.f32 %v2795, %v2240
    %2798 = vrot.lane.b32.xlu0 %v2796, 64
    %v2799 = vpop.permute.xlu0 %2798
    %v2801 = vsel %vm294, %v2799, 0.0
    %2802 = vadd.xlane.f32.xlu0 %v2801
    %v2803 = vpop.xlane.xlu0 %2802
    %v2804 = vadd.f32 %v2803, %v2250
    %vm2805 = vcmask 7168
    %2806 = vst.msk [vmem:[%s3] sm:$0xff] %vm2805, %v2804
    // Predicated region
    $region22: #{tpu_custom_call.1} parent=1 // pred_check
      _
    $region23: #{tpu_custom_call.1} parent=1 // pred_check_branch
      %2808 = sbr.rel (0) target = $region25
    $region24: #{tpu_custom_call.1} parent=1 // pred_region
      _
    $region25: #{tpu_custom_call.1} parent=1 // pred_fallthru
      _
    // Predicated region
    $region26: #{tpu_custom_call.1} parent=1 // pred_check
      _
    $region27: #{tpu_custom_call.1} parent=1 // pred_check_branch
      %2810 = sbr.rel (0) target = $region29
    $region28: #{tpu_custom_call.1} parent=1 // pred_region
      %2812 = vsyncadd [#allocation4], 0
      %s2814 = sshll.u32 [#allocation7], 4
      %s2815 = int_to_ptr.vmem [resolvable:$true] %s2814
      %s2816 = sshll.u32 %s4, 4
      %s2817 = int_to_ptr.hbm [resolvable:$true] %s2816
      %2819 = dma.vmem_to_hbm [thread:$0]  %s2815, 128, %s2817, [#allocation4]
    $region29: #{tpu_custom_call.1} parent=1 // pred_fallthru
      _
    // Predicated region
    $region30: #{tpu_custom_call.1} parent=1 // pred_check
      _
    $region31: #{tpu_custom_call.1} parent=1 // pred_check_branch
      %2821 = sbr.rel (0) target = $region33
    $region32: #{tpu_custom_call.1} parent=1 // pred_region
      %2823 = vsyncadd [#allocation9], 0
      %s2825 = sshll.u32 [#allocation8], 4
      %s2826 = int_to_ptr.vmem [resolvable:$true] %s2825
      %s2827 = sshll.u32 %s5, 4
      %s2828 = int_to_ptr.hbm [resolvable:$true] %s2827
      %2830 = dma.vmem_to_hbm [thread:$0]  %s2826, 128, %s2828, [#allocation9]
    $region33: #{tpu_custom_call.1} parent=1 // pred_fallthru
      _
    // Predicated region
    $region34: #{tpu_custom_call.1} parent=1 // pred_check
      _
    $region35: #{tpu_custom_call.1} parent=1 // pred_check_branch
      %2832 = sbr.rel (0) target = $region37
    $region36: #{tpu_custom_call.1} parent=1 // pred_region
      _
    $region37: #{tpu_custom_call.1} parent=1 // pred_fallthru
      _
    // Predicated region
    $region38: #{tpu_custom_call.1} parent=1 // pred_check
      _
    $region39: #{tpu_custom_call.1} parent=1 // pred_check_branch
      %2834 = sbr.rel (0) target = $region41
    $region40: #{tpu_custom_call.1} parent=1 // pred_region
      %2836 = dma.done [#allocation4], 128
    $region41: #{tpu_custom_call.1} parent=1 // pred_fallthru
      _
    // Predicated region
    $region42: #{tpu_custom_call.1} parent=1 // pred_check
      _
    $region43: #{tpu_custom_call.1} parent=1 // pred_check_branch
      %2838 = sbr.rel (0) target = $region45
    $region44: #{tpu_custom_call.1} parent=1 // pred_region
      %2840 = dma.done [#allocation9], 128
    $region45: #{tpu_custom_call.1} parent=1 // pred_fallthru
      _
    %2841 = vsyncpa [#allocation3], 1
    %2842 = vsyncpa [#allocation6], 1
    %2843 = vsyncpa [#allocation4], 1
    %2844 = vsyncpa [#allocation9], 1

</llo_original>
